<compile_context>
chip_gen: v7x
topology: tpu7x:2x2x1
jax: 0.10.0
libtpu: 0.0.40
codegen_flags: <defaults>
</compile_context>

<pallas_src>
import numpy as np
import jax
import jax.numpy as jnp
from jax.experimental import pallas as pl
from jax.experimental.pallas import tpu as pltpu


# ----------------------------------------------------------------------------
# In-kernel helper: fused conv(kxk, VALID) + bias + ReLU + MaxPool(2,2)
# on a whole batch block, with the batch stacked into the matmul M dimension.
#
# Activation layout:  xv[y, b, x*cin + ci]  (rows, batch, lane-packed NHWC).
# Folded band layout: band[ky, x*cin+ci, q*l_pad + xo*cout + co]
#                     = W[co, ci, ky, x - (2*xo + q)]  (zero outside range),
# so   sum_ky row(2*yo + p + ky) @ band[ky]  gives, in lane q*l_pad+xo*cout+co,
# the bias-free conv value at output pixel (2*yo+p, 2*xo+q, co).
# ----------------------------------------------------------------------------
def _conv_pool_stage(xv, band_ref, bias_ref):
    k = band_ref.shape[0]
    l_pad = bias_ref.shape[1]
    h_in, bblk, wc = xv.shape
    assert band_ref.shape[1] == wc and band_ref.shape[2] == 2 * l_pad
    assert h_in % 2 == 0 and (h_in - k + 1) % 2 == 0 and bblk % 8 == 0
    ho2 = (h_in - k + 1) // 2                 # pooled output rows
    hh = h_in // 2

    # k+1 distinct input row phases (s = p + ky), hoisted; each slice is a
    # contiguous, sublane-tile-aligned block -> no strided / masked loads.
    xv2 = xv.reshape(hh, 2 * bblk, wc)        # (row pair, [parity|batch], lanes)
    xpar = (xv2[:, :bblk, :], xv2[:, bblk:, :])
    xs = [xpar[s % 2][s // 2: s // 2 + ho2].reshape(ho2 * bblk, wc)
          for s in range(k + 1)]

    # Accumulate over kernel rows; both pool column phases (q) live side by
    # side in the folded band, both pool row phases (p) get an accumulator.
    acc = [jnp.zeros((ho2 * bblk, 2 * l_pad), jnp.float32) for _ in range(2)]
    for ky in range(k):
        bnd = band_ref[ky]                    # (wc, 2*l_pad), resident in VMEM
        for p in range(2):
            acc[p] = acc[p] + jnp.dot(xs[p + ky], bnd,
                                      preferred_element_type=jnp.float32)

    m = jnp.maximum(acc[0], acc[1])                   # max over row phase p
    m = jnp.maximum(m[:, :l_pad], m[:, l_pad:])       # max over col phase q
    # bias constant over the pool window, ReLU monotone -> max/bias/ReLU
    # commute; padded lanes stay exactly 0.
    return jnp.maximum(m + bias_ref[...], 0.0)        # (ho2*bblk, l_pad)


# ----------------------------------------------------------------------------
# One fused kernel for the whole network (per batch block).
# ----------------------------------------------------------------------------
def _lenet_fused_kernel(x_ref, band1_ref, bias1_ref, band2_ref, bias2_ref,
                        w1_ref, b1_ref, w2_ref, b2_ref, o_ref):
    bblk = x_ref.shape[1]

    # stage 1: conv1 + ReLU + pool  -> (h2*bblk, l1_pad), rows ordered (yo, b)
    a1 = _conv_pool_stage(x_ref[...], band1_ref, bias1_ref)
    h2 = a1.shape[0] // bblk

    # stage 2: conv2 + ReLU + pool  -> (h3*bblk, l2_pad)
    a2 = _conv_pool_stage(a1.reshape(h2, bblk, a1.shape[1]),
                          band2_ref, bias2_ref)

    # classifier: fc1 + ReLU as a sum of per-pooled-row matmuls (no repack),
    # then fc2.  Hidden and logits are 128-lane padded -> dense stores.
    h3 = w1_ref.shape[0]
    assert a2.shape[0] == h3 * bblk
    acc = jnp.zeros((bblk, w1_ref.shape[2]), jnp.float32)
    for yo in range(h3):
        acc = acc + jnp.dot(a2[yo * bblk:(yo + 1) * bblk, :], w1_ref[yo],
                            preferred_element_type=jnp.float32)
    hid = jnp.maximum(acc + b1_ref[...], 0.0)
    logits = jnp.dot(hid, w2_ref[...],
                     preferred_element_type=jnp.float32) + b2_ref[...]
    o_ref[...] = logits.astype(o_ref.dtype)


# ----------------------------------------------------------------------------
# One-time (outside-jit) weight relayout
# ----------------------------------------------------------------------------
def _ru128(v):
    return ((v + 127) // 128) * 128


def _folded_band(w_oihw, w_in, rows_pad, l_pad):
    """Banded, pool-column-phase-folded conv weights (k, rows_pad, 2*l_pad)."""
    w = np.asarray(w_oihw, np.float32)
    cout, cin, k, k2 = w.shape
    assert k == k2
    wo2 = (w_in - k + 1) // 2
    assert wo2 * cout <= l_pad and w_in * cin <= rows_pad
    wt = np.transpose(w, (3, 2, 1, 0))        # (kx, ky, cin, cout)
    band = np.zeros((k, rows_pad, 2 * l_pad), np.float32)
    for ky in range(k):
        for q in range(2):
            for xo in range(wo2):
                for kx in range(k):
                    x = 2 * xo + q + kx
                    band[ky, x * cin:(x + 1) * cin,
                         q * l_pad + xo * cout: q * l_pad + (xo + 1) * cout] = wt[kx, ky]
    return jnp.asarray(band)


def _tiled_bias(b, wo2, l_pad):
    b = np.asarray(b, np.float32)
    bt = np.zeros((1, l_pad), np.float32)
    bt[0, :wo2 * b.shape[0]] = np.tile(b, wo2)
    return jnp.asarray(bt)


def prepare_params(params, *, h=28, w=28, num_classes=10):
    k = params["conv1_w"].shape[2]
    cin = params["conv1_w"].shape[1]
    c1, c2 = params["conv1_w"].shape[0], params["conv2_w"].shape[0]
    hidden = params["fc1_w"].shape[0]
    h2, w2 = (h - k + 1) // 2, (w - k + 1) // 2
    h3, w3 = (h2 - k + 1) // 2, (w2 - k + 1) // 2
    assert params["fc1_w"].shape[1] == h3 * w3 * c2
    l1_pad, l2_pad = _ru128(w2 * c1), _ru128(w3 * c2)
    hd_pad, nc_pad = _ru128(hidden), _ru128(num_classes)

    # fc1: PyTorch flattens pooled features in NCHW (co, yo, xo) order; the
    # kernel consumes them row-by-row with NHWC (xo, co) lanes -> build a
    # per-row (h3, l2_pad, hd_pad) weight, zero-padded to the padded stage-2
    # lane layout and the padded hidden width.
    f1 = np.asarray(params["fc1_w"], np.float32).reshape(hidden, c2, h3, w3)
    w1p = np.zeros((h3, l2_pad, hd_pad), np.float32)
    w1p[:, :w3 * c2, :hidden] = np.transpose(f1, (2, 3, 1, 0)).reshape(h3, w3 * c2, hidden)
    b1p = np.zeros((1, hd_pad), np.float32)
    b1p[0, :hidden] = np.asarray(params["fc1_b"], np.float32)
    w2p = np.zeros((hd_pad, nc_pad), np.float32)
    w2p[:hidden, :num_classes] = np.asarray(params["fc2_w"], np.float32).T
    b2p = np.zeros((1, nc_pad), np.float32)
    b2p[0, :num_classes] = np.asarray(params["fc2_b"], np.float32)

    return {
        "band1": _folded_band(params["conv1_w"], w, w * cin, l1_pad),
        "bias1": _tiled_bias(params["conv1_b"], w2, l1_pad),
        # conv2 band is built against the 128-lane padded stage-1 output
        # layout (rows >= w2*c1 are zero) -> no in-kernel strip needed.
        "band2": _folded_band(params["conv2_w"], w2, l1_pad, l2_pad),
        "bias2": _tiled_bias(params["conv2_b"], w3, l2_pad),
        "fc1_w": jnp.asarray(w1p), "fc1_b": jnp.asarray(b1p),
        "fc2_w": jnp.asarray(w2p), "fc2_b": jnp.asarray(b2p),
    }


# ----------------------------------------------------------------------------
# Forward wrapper (single pallas_call), PyTorch-layout init, pure-JAX reference
# ----------------------------------------------------------------------------
def preact_lenet_pallas(prepped, x_nchw, *, num_classes, block_batch=16):
    n, cin, h, w = x_nchw.shape
    band1, band2 = prepped["band1"], prepped["band2"]
    k = band1.shape[0]
    wc1 = w * cin
    assert band1.shape[1] == wc1, "input size does not match prepared weights"
    l1_pad = prepped["bias1"].shape[1]
    l2_pad = prepped["bias2"].shape[1]
    h3 = prepped["fc1_w"].shape[0]
    hd_pad = prepped["fc1_w"].shape[2]
    nc_pad = prepped["fc2_w"].shape[1]
    h2 = (h - k + 1) // 2

    # batch blocking: multiple-of-8 block, batch zero-padded to a block multiple
    bblk = max(8, (min(block_batch, ((n + 7) // 8) * 8) // 8) * 8)
    npad = ((n + bblk - 1) // bblk) * bblk

    # single cheap relayout on the XLA side: NCHW -> (row, batch, x*cin) so the
    # kernel can stack the batch into the matmul M dimension (free for cin=1).
    xl = jnp.transpose(x_nchw, (2, 0, 3, 1)).reshape(h, n, wc1)
    if npad != n:
        xl = jnp.pad(xl, ((0, 0), (0, npad - n), (0, 0)))

    flops = (2 * k * 2 * (h2 * npad) * wc1 * (2 * l1_pad)
             + 2 * k * 2 * (h3 * npad) * l1_pad * (2 * l2_pad)
             + 2 * npad * (h3 * l2_pad) * hd_pad
             + 2 * npad * hd_pad * nc_pad)
    bytes_accessed = 4 * (xl.size + band1.size + band2.size
                          + prepped["bias1"].size + prepped["bias2"].size
                          + prepped["fc1_w"].size + prepped["fc1_b"].size
                          + prepped["fc2_w"].size + prepped["fc2_b"].size
                          + npad * nc_pad)

    out = pl.pallas_call(
        _lenet_fused_kernel,
        out_shape=jax.ShapeDtypeStruct((npad, nc_pad), x_nchw.dtype),
        grid=(npad // bblk,),
        in_specs=[
            pl.BlockSpec((h, bblk, wc1), lambda i: (0, i, 0)),
            # weights / biases: constant index_map -> resident across steps
            pl.BlockSpec(band1.shape, lambda i: (0, 0, 0)),
            pl.BlockSpec(prepped["bias1"].shape, lambda i: (0, 0)),
            pl.BlockSpec(band2.shape, lambda i: (0, 0, 0)),
            pl.BlockSpec(prepped["bias2"].shape, lambda i: (0, 0)),
            pl.BlockSpec(prepped["fc1_w"].shape, lambda i: (0, 0, 0)),
            pl.BlockSpec(prepped["fc1_b"].shape, lambda i: (0, 0)),
            pl.BlockSpec(prepped["fc2_w"].shape, lambda i: (0, 0)),
            pl.BlockSpec(prepped["fc2_b"].shape, lambda i: (0, 0)),
        ],
        out_specs=pl.BlockSpec((bblk, nc_pad), lambda i: (i, 0)),
        compiler_params=pltpu.CompilerParams(
            dimension_semantics=("parallel",)),
        cost_estimate=pl.CostEstimate(flops=flops, transcendentals=0,
                                      bytes_accessed=bytes_accessed),
    )(xl, band1, prepped["bias1"], band2, prepped["bias2"],
      prepped["fc1_w"], prepped["fc1_b"], prepped["fc2_w"], prepped["fc2_b"])
    return out[:n, :num_classes]                  # strip batch / lane padding


def init_params(key, scale=4, num_classes=10):
    c1, c2 = scale * 1, scale * 2
    fc1_out = scale * 16
    fc_in = 16 * c2
    ks = jax.random.split(key, 8)

    def u(k, shape, fan_in):
        bound = 1.0 / jnp.sqrt(jnp.float32(fan_in))
        return jax.random.uniform(k, shape, jnp.float32, -bound, bound)

    return {
        "conv1_w": u(ks[0], (c1, 1, 5, 5), 1 * 25),
        "conv1_b": u(ks[1], (c1,), 1 * 25),
        "conv2_w": u(ks[2], (c2, c1, 5, 5), c1 * 25),
        "conv2_b": u(ks[3], (c2,), c1 * 25),
        "fc1_w": u(ks[4], (fc1_out, fc_in), fc_in),
        "fc1_b": u(ks[5], (fc1_out,), fc_in),
        "fc2_w": u(ks[6], (num_classes, fc1_out), fc1_out),
        "fc2_b": u(ks[7], (num_classes,), fc1_out),
    }


def reference_forward(params, x_nchw):
    def conv(x, w, b):
        y = jax.lax.conv_general_dilated(
            x, w, (1, 1), "VALID", dimension_numbers=("NCHW", "OIHW", "NCHW"))
        return jax.nn.relu(y + b[None, :, None, None])

    def pool(x):
        return jax.lax.reduce_window(
            x, -jnp.inf, jax.lax.max, (1, 1, 2, 2), (1, 1, 2, 2), "VALID")

    x = pool(conv(x_nchw, params["conv1_w"], params["conv1_b"]))
    x = pool(conv(x, params["conv2_w"], params["conv2_b"]))
    x = x.reshape(x.shape[0], -1)
    x = jax.nn.relu(x @ params["fc1_w"].T + params["fc1_b"])
    return x @ params["fc2_w"].T + params["fc2_b"]


if __name__ == "__main__":
    key = jax.random.PRNGKey(0)
    pkey, xkey = jax.random.split(key)

    scale, num_classes, batch = 4, 10, 32        # 28x28 MNIST-sized input
    params = init_params(pkey, scale=scale, num_classes=num_classes)
    prepped = prepare_params(params, h=28, w=28, num_classes=num_classes)
    x = jax.random.normal(xkey, (batch, 1, 28, 28), jnp.float32)

    @jax.jit
    def forward(p, xin):
        # block_batch=16 -> 2 parallel grid steps (both v7x TensorCores busy)
        return preact_lenet_pallas(p, xin, num_classes=num_classes,
                                   block_batch=16)

    out = jax.block_until_ready(forward(prepped, x))
    ref = jax.block_until_ready(reference_forward(params, x))

    assert out.shape == (batch, num_classes), out.shape
    assert jnp.allclose(out, ref, rtol=1e-3, atol=1e-3), (
        float(jnp.max(jnp.abs(out - ref))))
    print("KERNEL_OK")
</pallas_src>

<mosaic_0001>
module attributes {stable_mosaic.version = 11 : i64} {
  func.func @_lenet_fused_kernel(%arg0: i32, %arg1: memref<28x16x28xf32, #tpu.memory_space<vmem>>, %arg2: memref<5x28x256xf32, #tpu.memory_space<vmem>>, %arg3: memref<1x128xf32, #tpu.memory_space<vmem>>, %arg4: memref<5x128x256xf32, #tpu.memory_space<vmem>>, %arg5: memref<1x128xf32, #tpu.memory_space<vmem>>, %arg6: memref<4x128x128xf32, #tpu.memory_space<vmem>>, %arg7: memref<1x128xf32, #tpu.memory_space<vmem>>, %arg8: memref<128x128xf32, #tpu.memory_space<vmem>>, %arg9: memref<1x128xf32, #tpu.memory_space<vmem>>, %arg10: memref<16x128xf32, #tpu.memory_space<vmem>>) attributes {dimension_semantics = [#tpu.dimension_semantics<parallel>], iteration_bounds = array<i64: 2>, scalar_prefetch = 0 : i64, scratch_operands = 0 : i64, tpu.core_type = #tpu.core_type<tc>, window_params = [{transform_indices = @transform_0, window_bounds = array<i64: 28, 16, 28>}, {pipeline_mode = #tpu.pipeline_mode<synchronous>, transform_indices = @transform_1, window_bounds = array<i64: 5, 28, 256>}, {pipeline_mode = #tpu.pipeline_mode<synchronous>, transform_indices = @transform_2, window_bounds = array<i64: 1, 128>}, {pipeline_mode = #tpu.pipeline_mode<synchronous>, transform_indices = @transform_3, window_bounds = array<i64: 5, 128, 256>}, {pipeline_mode = #tpu.pipeline_mode<synchronous>, transform_indices = @transform_4, window_bounds = array<i64: 1, 128>}, {pipeline_mode = #tpu.pipeline_mode<synchronous>, transform_indices = @transform_5, window_bounds = array<i64: 4, 128, 128>}, {pipeline_mode = #tpu.pipeline_mode<synchronous>, transform_indices = @transform_6, window_bounds = array<i64: 1, 128>}, {pipeline_mode = #tpu.pipeline_mode<synchronous>, transform_indices = @transform_7, window_bounds = array<i64: 128, 128>}, {pipeline_mode = #tpu.pipeline_mode<synchronous>, transform_indices = @transform_8, window_bounds = array<i64: 1, 128>}, {transform_indices = @transform_9, window_bounds = array<i64: 16, 128>}]} {
    %c0 = arith.constant 0 : index
    %c0_0 = arith.constant 0 : index
    %c0_1 = arith.constant 0 : index
    %0 = vector.load %arg1[%c0, %c0_0, %c0_1] : memref<28x16x28xf32, #tpu.memory_space<vmem>>, vector<28x16x28xf32>
    %1 = vector.shape_cast %0 : vector<28x16x28xf32> to vector<14x32x28xf32>
    %2 = vector.extract_strided_slice %1 {offsets = [0, 0, 0], sizes = [14, 16, 28], strides = [1, 1, 1]} : vector<14x32x28xf32> to vector<14x16x28xf32>
    %3 = vector.extract_strided_slice %1 {offsets = [0, 16, 0], sizes = [14, 16, 28], strides = [1, 1, 1]} : vector<14x32x28xf32> to vector<14x16x28xf32>
    %4 = vector.extract_strided_slice %2 {offsets = [0, 0, 0], sizes = [12, 16, 28], strides = [1, 1, 1]} : vector<14x16x28xf32> to vector<12x16x28xf32>
    %5 = vector.shape_cast %4 : vector<12x16x28xf32> to vector<192x28xf32>
    %6 = vector.extract_strided_slice %3 {offsets = [0, 0, 0], sizes = [12, 16, 28], strides = [1, 1, 1]} : vector<14x16x28xf32> to vector<12x16x28xf32>
    %7 = vector.shape_cast %6 : vector<12x16x28xf32> to vector<192x28xf32>
    %8 = vector.extract_strided_slice %2 {offsets = [1, 0, 0], sizes = [12, 16, 28], strides = [1, 1, 1]} : vector<14x16x28xf32> to vector<12x16x28xf32>
    %9 = vector.shape_cast %8 : vector<12x16x28xf32> to vector<192x28xf32>
    %10 = vector.extract_strided_slice %3 {offsets = [1, 0, 0], sizes = [12, 16, 28], strides = [1, 1, 1]} : vector<14x16x28xf32> to vector<12x16x28xf32>
    %11 = vector.shape_cast %10 : vector<12x16x28xf32> to vector<192x28xf32>
    %12 = vector.extract_strided_slice %2 {offsets = [2, 0, 0], sizes = [12, 16, 28], strides = [1, 1, 1]} : vector<14x16x28xf32> to vector<12x16x28xf32>
    %13 = vector.shape_cast %12 : vector<12x16x28xf32> to vector<192x28xf32>
    %14 = vector.extract_strided_slice %3 {offsets = [2, 0, 0], sizes = [12, 16, 28], strides = [1, 1, 1]} : vector<14x16x28xf32> to vector<12x16x28xf32>
    %15 = vector.shape_cast %14 : vector<12x16x28xf32> to vector<192x28xf32>
    %cst = arith.constant 0.000000e+00 : f32
    %16 = vector.broadcast %cst : f32 to vector<192x256xf32>
    %cst_2 = arith.constant 0.000000e+00 : f32
    %17 = vector.broadcast %cst_2 : f32 to vector<192x256xf32>
    %c0_3 = arith.constant 0 : index
    %c0_4 = arith.constant 0 : index
    %c0_5 = arith.constant 0 : index
    %18 = vector.load %arg2[%c0_3, %c0_4, %c0_5] : memref<5x28x256xf32, #tpu.memory_space<vmem>>, vector<1x28x256xf32>
    %19 = vector.shape_cast %18 : vector<1x28x256xf32> to vector<28x256xf32>
    %cst_6 = arith.constant dense<0.000000e+00> : vector<192x256xf32>
    %20 = tpu.matmul %5, %19, %cst_6 {dimension_numbers = #tpu.dot_dimension_numbers<[1], [0], [0], [1], [0, 0, 1, 1], [], []>} : vector<192x28xf32>, vector<28x256xf32>, vector<192x256xf32> -> vector<192x256xf32>
    %21 = arith.addf %16, %20 : vector<192x256xf32>
    %cst_7 = arith.constant dense<0.000000e+00> : vector<192x256xf32>
    %22 = tpu.matmul %7, %19, %cst_7 {dimension_numbers = #tpu.dot_dimension_numbers<[1], [0], [0], [1], [0, 0, 1, 1], [], []>} : vector<192x28xf32>, vector<28x256xf32>, vector<192x256xf32> -> vector<192x256xf32>
    %23 = arith.addf %17, %22 : vector<192x256xf32>
    %c1 = arith.constant 1 : index
    %c0_8 = arith.constant 0 : index
    %c0_9 = arith.constant 0 : index
    %24 = vector.load %arg2[%c1, %c0_8, %c0_9] : memref<5x28x256xf32, #tpu.memory_space<vmem>>, vector<1x28x256xf32>
    %25 = vector.shape_cast %24 : vector<1x28x256xf32> to vector<28x256xf32>
    %cst_10 = arith.constant dense<0.000000e+00> : vector<192x256xf32>
    %26 = tpu.matmul %7, %25, %cst_10 {dimension_numbers = #tpu.dot_dimension_numbers<[1], [0], [0], [1], [0, 0, 1, 1], [], []>} : vector<192x28xf32>, vector<28x256xf32>, vector<192x256xf32> -> vector<192x256xf32>
    %27 = arith.addf %21, %26 : vector<192x256xf32>
    %cst_11 = arith.constant dense<0.000000e+00> : vector<192x256xf32>
    %28 = tpu.matmul %9, %25, %cst_11 {dimension_numbers = #tpu.dot_dimension_numbers<[1], [0], [0], [1], [0, 0, 1, 1], [], []>} : vector<192x28xf32>, vector<28x256xf32>, vector<192x256xf32> -> vector<192x256xf32>
    %29 = arith.addf %23, %28 : vector<192x256xf32>
    %c2 = arith.constant 2 : index
    %c0_12 = arith.constant 0 : index
    %c0_13 = arith.constant 0 : index
    %30 = vector.load %arg2[%c2, %c0_12, %c0_13] : memref<5x28x256xf32, #tpu.memory_space<vmem>>, vector<1x28x256xf32>
    %31 = vector.shape_cast %30 : vector<1x28x256xf32> to vector<28x256xf32>
    %cst_14 = arith.constant dense<0.000000e+00> : vector<192x256xf32>
    %32 = tpu.matmul %9, %31, %cst_14 {dimension_numbers = #tpu.dot_dimension_numbers<[1], [0], [0], [1], [0, 0, 1, 1], [], []>} : vector<192x28xf32>, vector<28x256xf32>, vector<192x256xf32> -> vector<192x256xf32>
    %33 = arith.addf %27, %32 : vector<192x256xf32>
    %cst_15 = arith.constant dense<0.000000e+00> : vector<192x256xf32>
    %34 = tpu.matmul %11, %31, %cst_15 {dimension_numbers = #tpu.dot_dimension_numbers<[1], [0], [0], [1], [0, 0, 1, 1], [], []>} : vector<192x28xf32>, vector<28x256xf32>, vector<192x256xf32> -> vector<192x256xf32>
    %35 = arith.addf %29, %34 : vector<192x256xf32>
    %c3 = arith.constant 3 : index
    %c0_16 = arith.constant 0 : index
    %c0_17 = arith.constant 0 : index
    %36 = vector.load %arg2[%c3, %c0_16, %c0_17] : memref<5x28x256xf32, #tpu.memory_space<vmem>>, vector<1x28x256xf32>
    %37 = vector.shape_cast %36 : vector<1x28x256xf32> to vector<28x256xf32>
    %cst_18 = arith.constant dense<0.000000e+00> : vector<192x256xf32>
    %38 = tpu.matmul %11, %37, %cst_18 {dimension_numbers = #tpu.dot_dimension_numbers<[1], [0], [0], [1], [0, 0, 1, 1], [], []>} : vector<192x28xf32>, vector<28x256xf32>, vector<192x256xf32> -> vector<192x256xf32>
    %39 = arith.addf %33, %38 : vector<192x256xf32>
    %cst_19 = arith.constant dense<0.000000e+00> : vector<192x256xf32>
    %40 = tpu.matmul %13, %37, %cst_19 {dimension_numbers = #tpu.dot_dimension_numbers<[1], [0], [0], [1], [0, 0, 1, 1], [], []>} : vector<192x28xf32>, vector<28x256xf32>, vector<192x256xf32> -> vector<192x256xf32>
    %41 = arith.addf %35, %40 : vector<192x256xf32>
    %c4 = arith.constant 4 : index
    %c0_20 = arith.constant 0 : index
    %c0_21 = arith.constant 0 : index
    %42 = vector.load %arg2[%c4, %c0_20, %c0_21] : memref<5x28x256xf32, #tpu.memory_space<vmem>>, vector<1x28x256xf32>
    %43 = vector.shape_cast %42 : vector<1x28x256xf32> to vector<28x256xf32>
    %cst_22 = arith.constant dense<0.000000e+00> : vector<192x256xf32>
    %44 = tpu.matmul %13, %43, %cst_22 {dimension_numbers = #tpu.dot_dimension_numbers<[1], [0], [0], [1], [0, 0, 1, 1], [], []>} : vector<192x28xf32>, vector<28x256xf32>, vector<192x256xf32> -> vector<192x256xf32>
    %45 = arith.addf %39, %44 : vector<192x256xf32>
    %cst_23 = arith.constant dense<0.000000e+00> : vector<192x256xf32>
    %46 = tpu.matmul %15, %43, %cst_23 {dimension_numbers = #tpu.dot_dimension_numbers<[1], [0], [0], [1], [0, 0, 1, 1], [], []>} : vector<192x28xf32>, vector<28x256xf32>, vector<192x256xf32> -> vector<192x256xf32>
    %47 = arith.addf %41, %46 : vector<192x256xf32>
    %48 = arith.maximumf %45, %47 : vector<192x256xf32>
    %49 = vector.extract_strided_slice %48 {offsets = [0, 0], sizes = [192, 128], strides = [1, 1]} : vector<192x256xf32> to vector<192x128xf32>
    %50 = vector.extract_strided_slice %48 {offsets = [0, 128], sizes = [192, 128], strides = [1, 1]} : vector<192x256xf32> to vector<192x128xf32>
    %51 = arith.maximumf %49, %50 : vector<192x128xf32>
    %c0_24 = arith.constant 0 : index
    %c0_25 = arith.constant 0 : index
    %52 = vector.load %arg3[%c0_24, %c0_25] : memref<1x128xf32, #tpu.memory_space<vmem>>, vector<1x128xf32>
    %53 = vector.broadcast %52 : vector<1x128xf32> to vector<192x128xf32>
    %54 = arith.addf %51, %53 : vector<192x128xf32>
    %cst_26 = arith.constant 0.000000e+00 : f32
    %55 = vector.broadcast %cst_26 : f32 to vector<192x128xf32>
    %56 = arith.maximumf %54, %55 : vector<192x128xf32>
    %57 = vector.shape_cast %56 : vector<192x128xf32> to vector<12x16x128xf32>
    %58 = vector.shape_cast %57 : vector<12x16x128xf32> to vector<6x32x128xf32>
    %59 = vector.extract_strided_slice %58 {offsets = [0, 0, 0], sizes = [6, 16, 128], strides = [1, 1, 1]} : vector<6x32x128xf32> to vector<6x16x128xf32>
    %60 = vector.extract_strided_slice %58 {offsets = [0, 16, 0], sizes = [6, 16, 128], strides = [1, 1, 1]} : vector<6x32x128xf32> to vector<6x16x128xf32>
    %61 = vector.extract_strided_slice %59 {offsets = [0, 0, 0], sizes = [4, 16, 128], strides = [1, 1, 1]} : vector<6x16x128xf32> to vector<4x16x128xf32>
    %62 = vector.shape_cast %61 : vector<4x16x128xf32> to vector<64x128xf32>
    %63 = vector.extract_strided_slice %60 {offsets = [0, 0, 0], sizes = [4, 16, 128], strides = [1, 1, 1]} : vector<6x16x128xf32> to vector<4x16x128xf32>
    %64 = vector.shape_cast %63 : vector<4x16x128xf32> to vector<64x128xf32>
    %65 = vector.extract_strided_slice %59 {offsets = [1, 0, 0], sizes = [4, 16, 128], strides = [1, 1, 1]} : vector<6x16x128xf32> to vector<4x16x128xf32>
    %66 = vector.shape_cast %65 : vector<4x16x128xf32> to vector<64x128xf32>
    %67 = vector.extract_strided_slice %60 {offsets = [1, 0, 0], sizes = [4, 16, 128], strides = [1, 1, 1]} : vector<6x16x128xf32> to vector<4x16x128xf32>
    %68 = vector.shape_cast %67 : vector<4x16x128xf32> to vector<64x128xf32>
    %69 = vector.extract_strided_slice %59 {offsets = [2, 0, 0], sizes = [4, 16, 128], strides = [1, 1, 1]} : vector<6x16x128xf32> to vector<4x16x128xf32>
    %70 = vector.shape_cast %69 : vector<4x16x128xf32> to vector<64x128xf32>
    %71 = vector.extract_strided_slice %60 {offsets = [2, 0, 0], sizes = [4, 16, 128], strides = [1, 1, 1]} : vector<6x16x128xf32> to vector<4x16x128xf32>
    %72 = vector.shape_cast %71 : vector<4x16x128xf32> to vector<64x128xf32>
    %cst_27 = arith.constant 0.000000e+00 : f32
    %73 = vector.broadcast %cst_27 : f32 to vector<64x256xf32>
    %cst_28 = arith.constant 0.000000e+00 : f32
    %74 = vector.broadcast %cst_28 : f32 to vector<64x256xf32>
    %c0_29 = arith.constant 0 : index
    %c0_30 = arith.constant 0 : index
    %c0_31 = arith.constant 0 : index
    %75 = vector.load %arg4[%c0_29, %c0_30, %c0_31] : memref<5x128x256xf32, #tpu.memory_space<vmem>>, vector<1x128x256xf32>
    %76 = vector.shape_cast %75 : vector<1x128x256xf32> to vector<128x256xf32>
    %cst_32 = arith.constant dense<0.000000e+00> : vector<64x256xf32>
    %77 = tpu.matmul %62, %76, %cst_32 {dimension_numbers = #tpu.dot_dimension_numbers<[1], [0], [0], [1], [0, 0, 1, 1], [], []>} : vector<64x128xf32>, vector<128x256xf32>, vector<64x256xf32> -> vector<64x256xf32>
    %78 = arith.addf %73, %77 : vector<64x256xf32>
    %cst_33 = arith.constant dense<0.000000e+00> : vector<64x256xf32>
    %79 = tpu.matmul %64, %76, %cst_33 {dimension_numbers = #tpu.dot_dimension_numbers<[1], [0], [0], [1], [0, 0, 1, 1], [], []>} : vector<64x128xf32>, vector<128x256xf32>, vector<64x256xf32> -> vector<64x256xf32>
    %80 = arith.addf %74, %79 : vector<64x256xf32>
    %c1_34 = arith.constant 1 : index
    %c0_35 = arith.constant 0 : index
    %c0_36 = arith.constant 0 : index
    %81 = vector.load %arg4[%c1_34, %c0_35, %c0_36] : memref<5x128x256xf32, #tpu.memory_space<vmem>>, vector<1x128x256xf32>
    %82 = vector.shape_cast %81 : vector<1x128x256xf32> to vector<128x256xf32>
    %cst_37 = arith.constant dense<0.000000e+00> : vector<64x256xf32>
    %83 = tpu.matmul %64, %82, %cst_37 {dimension_numbers = #tpu.dot_dimension_numbers<[1], [0], [0], [1], [0, 0, 1, 1], [], []>} : vector<64x128xf32>, vector<128x256xf32>, vector<64x256xf32> -> vector<64x256xf32>
    %84 = arith.addf %78, %83 : vector<64x256xf32>
    %cst_38 = arith.constant dense<0.000000e+00> : vector<64x256xf32>
    %85 = tpu.matmul %66, %82, %cst_38 {dimension_numbers = #tpu.dot_dimension_numbers<[1], [0], [0], [1], [0, 0, 1, 1], [], []>} : vector<64x128xf32>, vector<128x256xf32>, vector<64x256xf32> -> vector<64x256xf32>
    %86 = arith.addf %80, %85 : vector<64x256xf32>
    %c2_39 = arith.constant 2 : index
    %c0_40 = arith.constant 0 : index
    %c0_41 = arith.constant 0 : index
    %87 = vector.load %arg4[%c2_39, %c0_40, %c0_41] : memref<5x128x256xf32, #tpu.memory_space<vmem>>, vector<1x128x256xf32>
    %88 = vector.shape_cast %87 : vector<1x128x256xf32> to vector<128x256xf32>
    %cst_42 = arith.constant dense<0.000000e+00> : vector<64x256xf32>
    %89 = tpu.matmul %66, %88, %cst_42 {dimension_numbers = #tpu.dot_dimension_numbers<[1], [0], [0], [1], [0, 0, 1, 1], [], []>} : vector<64x128xf32>, vector<128x256xf32>, vector<64x256xf32> -> vector<64x256xf32>
    %90 = arith.addf %84, %89 : vector<64x256xf32>
    %cst_43 = arith.constant dense<0.000000e+00> : vector<64x256xf32>
    %91 = tpu.matmul %68, %88, %cst_43 {dimension_numbers = #tpu.dot_dimension_numbers<[1], [0], [0], [1], [0, 0, 1, 1], [], []>} : vector<64x128xf32>, vector<128x256xf32>, vector<64x256xf32> -> vector<64x256xf32>
    %92 = arith.addf %86, %91 : vector<64x256xf32>
    %c3_44 = arith.constant 3 : index
    %c0_45 = arith.constant 0 : index
    %c0_46 = arith.constant 0 : index
    %93 = vector.load %arg4[%c3_44, %c0_45, %c0_46] : memref<5x128x256xf32, #tpu.memory_space<vmem>>, vector<1x128x256xf32>
    %94 = vector.shape_cast %93 : vector<1x128x256xf32> to vector<128x256xf32>
    %cst_47 = arith.constant dense<0.000000e+00> : vector<64x256xf32>
    %95 = tpu.matmul %68, %94, %cst_47 {dimension_numbers = #tpu.dot_dimension_numbers<[1], [0], [0], [1], [0, 0, 1, 1], [], []>} : vector<64x128xf32>, vector<128x256xf32>, vector<64x256xf32> -> vector<64x256xf32>
    %96 = arith.addf %90, %95 : vector<64x256xf32>
    %cst_48 = arith.constant dense<0.000000e+00> : vector<64x256xf32>
    %97 = tpu.matmul %70, %94, %cst_48 {dimension_numbers = #tpu.dot_dimension_numbers<[1], [0], [0], [1], [0, 0, 1, 1], [], []>} : vector<64x128xf32>, vector<128x256xf32>, vector<64x256xf32> -> vector<64x256xf32>
    %98 = arith.addf %92, %97 : vector<64x256xf32>
    %c4_49 = arith.constant 4 : index
    %c0_50 = arith.constant 0 : index
    %c0_51 = arith.constant 0 : index
    %99 = vector.load %arg4[%c4_49, %c0_50, %c0_51] : memref<5x128x256xf32, #tpu.memory_space<vmem>>, vector<1x128x256xf32>
    %100 = vector.shape_cast %99 : vector<1x128x256xf32> to vector<128x256xf32>
    %cst_52 = arith.constant dense<0.000000e+00> : vector<64x256xf32>
    %101 = tpu.matmul %70, %100, %cst_52 {dimension_numbers = #tpu.dot_dimension_numbers<[1], [0], [0], [1], [0, 0, 1, 1], [], []>} : vector<64x128xf32>, vector<128x256xf32>, vector<64x256xf32> -> vector<64x256xf32>
    %102 = arith.addf %96, %101 : vector<64x256xf32>
    %cst_53 = arith.constant dense<0.000000e+00> : vector<64x256xf32>
    %103 = tpu.matmul %72, %100, %cst_53 {dimension_numbers = #tpu.dot_dimension_numbers<[1], [0], [0], [1], [0, 0, 1, 1], [], []>} : vector<64x128xf32>, vector<128x256xf32>, vector<64x256xf32> -> vector<64x256xf32>
    %104 = arith.addf %98, %103 : vector<64x256xf32>
    %105 = arith.maximumf %102, %104 : vector<64x256xf32>
    %106 = vector.extract_strided_slice %105 {offsets = [0, 0], sizes = [64, 128], strides = [1, 1]} : vector<64x256xf32> to vector<64x128xf32>
    %107 = vector.extract_strided_slice %105 {offsets = [0, 128], sizes = [64, 128], strides = [1, 1]} : vector<64x256xf32> to vector<64x128xf32>
    %108 = arith.maximumf %106, %107 : vector<64x128xf32>
    %c0_54 = arith.constant 0 : index
    %c0_55 = arith.constant 0 : index
    %109 = vector.load %arg5[%c0_54, %c0_55] : memref<1x128xf32, #tpu.memory_space<vmem>>, vector<1x128xf32>
    %110 = vector.broadcast %109 : vector<1x128xf32> to vector<64x128xf32>
    %111 = arith.addf %108, %110 : vector<64x128xf32>
    %cst_56 = arith.constant 0.000000e+00 : f32
    %112 = vector.broadcast %cst_56 : f32 to vector<64x128xf32>
    %113 = arith.maximumf %111, %112 : vector<64x128xf32>
    %cst_57 = arith.constant 0.000000e+00 : f32
    %114 = vector.broadcast %cst_57 : f32 to vector<16x128xf32>
    %115 = vector.extract_strided_slice %113 {offsets = [0, 0], sizes = [16, 128], strides = [1, 1]} : vector<64x128xf32> to vector<16x128xf32>
    %c0_58 = arith.constant 0 : index
    %c0_59 = arith.constant 0 : index
    %c0_60 = arith.constant 0 : index
    %116 = vector.load %arg6[%c0_58, %c0_59, %c0_60] : memref<4x128x128xf32, #tpu.memory_space<vmem>>, vector<1x128x128xf32>
    %117 = vector.shape_cast %116 : vector<1x128x128xf32> to vector<128x128xf32>
    %cst_61 = arith.constant dense<0.000000e+00> : vector<16x128xf32>
    %118 = tpu.matmul %115, %117, %cst_61 {dimension_numbers = #tpu.dot_dimension_numbers<[1], [0], [0], [1], [0, 0, 1, 1], [], []>} : vector<16x128xf32>, vector<128x128xf32>, vector<16x128xf32> -> vector<16x128xf32>
    %119 = arith.addf %114, %118 : vector<16x128xf32>
    %120 = vector.extract_strided_slice %113 {offsets = [16, 0], sizes = [16, 128], strides = [1, 1]} : vector<64x128xf32> to vector<16x128xf32>
    %c1_62 = arith.constant 1 : index
    %c0_63 = arith.constant 0 : index
    %c0_64 = arith.constant 0 : index
    %121 = vector.load %arg6[%c1_62, %c0_63, %c0_64] : memref<4x128x128xf32, #tpu.memory_space<vmem>>, vector<1x128x128xf32>
    %122 = vector.shape_cast %121 : vector<1x128x128xf32> to vector<128x128xf32>
    %cst_65 = arith.constant dense<0.000000e+00> : vector<16x128xf32>
    %123 = tpu.matmul %120, %122, %cst_65 {dimension_numbers = #tpu.dot_dimension_numbers<[1], [0], [0], [1], [0, 0, 1, 1], [], []>} : vector<16x128xf32>, vector<128x128xf32>, vector<16x128xf32> -> vector<16x128xf32>
    %124 = arith.addf %119, %123 : vector<16x128xf32>
    %125 = vector.extract_strided_slice %113 {offsets = [32, 0], sizes = [16, 128], strides = [1, 1]} : vector<64x128xf32> to vector<16x128xf32>
    %c2_66 = arith.constant 2 : index
    %c0_67 = arith.constant 0 : index
    %c0_68 = arith.constant 0 : index
    %126 = vector.load %arg6[%c2_66, %c0_67, %c0_68] : memref<4x128x128xf32, #tpu.memory_space<vmem>>, vector<1x128x128xf32>
    %127 = vector.shape_cast %126 : vector<1x128x128xf32> to vector<128x128xf32>
    %cst_69 = arith.constant dense<0.000000e+00> : vector<16x128xf32>
    %128 = tpu.matmul %125, %127, %cst_69 {dimension_numbers = #tpu.dot_dimension_numbers<[1], [0], [0], [1], [0, 0, 1, 1], [], []>} : vector<16x128xf32>, vector<128x128xf32>, vector<16x128xf32> -> vector<16x128xf32>
    %129 = arith.addf %124, %128 : vector<16x128xf32>
    %130 = vector.extract_strided_slice %113 {offsets = [48, 0], sizes = [16, 128], strides = [1, 1]} : vector<64x128xf32> to vector<16x128xf32>
    %c3_70 = arith.constant 3 : index
    %c0_71 = arith.constant 0 : index
    %c0_72 = arith.constant 0 : index
    %131 = vector.load %arg6[%c3_70, %c0_71, %c0_72] : memref<4x128x128xf32, #tpu.memory_space<vmem>>, vector<1x128x128xf32>
    %132 = vector.shape_cast %131 : vector<1x128x128xf32> to vector<128x128xf32>
    %cst_73 = arith.constant dense<0.000000e+00> : vector<16x128xf32>
    %133 = tpu.matmul %130, %132, %cst_73 {dimension_numbers = #tpu.dot_dimension_numbers<[1], [0], [0], [1], [0, 0, 1, 1], [], []>} : vector<16x128xf32>, vector<128x128xf32>, vector<16x128xf32> -> vector<16x128xf32>
    %134 = arith.addf %129, %133 : vector<16x128xf32>
    %c0_74 = arith.constant 0 : index
    %c0_75 = arith.constant 0 : index
    %135 = vector.load %arg7[%c0_74, %c0_75] : memref<1x128xf32, #tpu.memory_space<vmem>>, vector<1x128xf32>
    %136 = vector.broadcast %135 : vector<1x128xf32> to vector<16x128xf32>
    %137 = arith.addf %134, %136 : vector<16x128xf32>
    %cst_76 = arith.constant 0.000000e+00 : f32
    %138 = vector.broadcast %cst_76 : f32 to vector<16x128xf32>
    %139 = arith.maximumf %137, %138 : vector<16x128xf32>
    %c0_77 = arith.constant 0 : index
    %c0_78 = arith.constant 0 : index
    %140 = vector.load %arg8[%c0_77, %c0_78] : memref<128x128xf32, #tpu.memory_space<vmem>>, vector<128x128xf32>
    %cst_79 = arith.constant dense<0.000000e+00> : vector<16x128xf32>
    %141 = tpu.matmul %139, %140, %cst_79 {dimension_numbers = #tpu.dot_dimension_numbers<[1], [0], [0], [1], [0, 0, 1, 1], [], []>} : vector<16x128xf32>, vector<128x128xf32>, vector<16x128xf32> -> vector<16x128xf32>
    %c0_80 = arith.constant 0 : index
    %c0_81 = arith.constant 0 : index
    %142 = vector.load %arg9[%c0_80, %c0_81] : memref<1x128xf32, #tpu.memory_space<vmem>>, vector<1x128xf32>
    %143 = vector.broadcast %142 : vector<1x128xf32> to vector<16x128xf32>
    %144 = arith.addf %141, %143 : vector<16x128xf32>
    %c0_82 = arith.constant 0 : index
    %c0_83 = arith.constant 0 : index
    %145 = vector.load %arg10[%c0_82, %c0_83] : memref<16x128xf32, #tpu.memory_space<vmem>>, vector<16x128xf32>
    tpu.vector_store %arg10[%c0_82, %c0_83], %144 {strides = array<i32>} : memref<16x128xf32, #tpu.memory_space<vmem>>, vector<16x128xf32>,
    return
  }
  func.func @transform_0(%arg0: i32) -> (i32, i32, i32) {
    %c0_i32 = arith.constant 0 : i32
    %c0_i32_0 = arith.constant 0 : i32
    %c0_i32_1 = arith.constant 0 : i32
    return %c0_i32, %arg0, %c0_i32_0 : i32, i32, i32
  }
  func.func @transform_1(%arg0: i32) -> (i32, i32, i32) {
    %c0_i32 = arith.constant 0 : i32
    %c0_i32_0 = arith.constant 0 : i32
    %c0_i32_1 = arith.constant 0 : i32
    %c0_i32_2 = arith.constant 0 : i32
    return %c0_i32, %c0_i32_0, %c0_i32_1 : i32, i32, i32
  }
  func.func @transform_2(%arg0: i32) -> (i32, i32) {
    %c0_i32 = arith.constant 0 : i32
    %c0_i32_0 = arith.constant 0 : i32
    %c0_i32_1 = arith.constant 0 : i32
    return %c0_i32, %c0_i32_0 : i32, i32
  }
  func.func @transform_3(%arg0: i32) -> (i32, i32, i32) {
    %c0_i32 = arith.constant 0 : i32
    %c0_i32_0 = arith.constant 0 : i32
    %c0_i32_1 = arith.constant 0 : i32
    %c0_i32_2 = arith.constant 0 : i32
    return %c0_i32, %c0_i32_0, %c0_i32_1 : i32, i32, i32
  }
  func.func @transform_4(%arg0: i32) -> (i32, i32) {
    %c0_i32 = arith.constant 0 : i32
    %c0_i32_0 = arith.constant 0 : i32
    %c0_i32_1 = arith.constant 0 : i32
    return %c0_i32, %c0_i32_0 : i32, i32
  }
  func.func @transform_5(%arg0: i32) -> (i32, i32, i32) {
    %c0_i32 = arith.constant 0 : i32
    %c0_i32_0 = arith.constant 0 : i32
    %c0_i32_1 = arith.constant 0 : i32
    %c0_i32_2 = arith.constant 0 : i32
    return %c0_i32, %c0_i32_0, %c0_i32_1 : i32, i32, i32
  }
  func.func @transform_6(%arg0: i32) -> (i32, i32) {
    %c0_i32 = arith.constant 0 : i32
    %c0_i32_0 = arith.constant 0 : i32
    %c0_i32_1 = arith.constant 0 : i32
    return %c0_i32, %c0_i32_0 : i32, i32
  }
  func.func @transform_7(%arg0: i32) -> (i32, i32) {
    %c0_i32 = arith.constant 0 : i32
    %c0_i32_0 = arith.constant 0 : i32
    %c0_i32_1 = arith.constant 0 : i32
    return %c0_i32, %c0_i32_0 : i32, i32
  }
  func.func @transform_8(%arg0: i32) -> (i32, i32) {
    %c0_i32 = arith.constant 0 : i32
    %c0_i32_0 = arith.constant 0 : i32
    %c0_i32_1 = arith.constant 0 : i32
    return %c0_i32, %c0_i32_0 : i32, i32
  }
  func.func @transform_9(%arg0: i32) -> (i32, i32) {
    %c0_i32 = arith.constant 0 : i32
    %c0_i32_0 = arith.constant 0 : i32
    return %arg0, %c0_i32 : i32, i32
  }
}

</mosaic_0001>

<llo_original>
// kernel: forward.1
$region0: #{forward.1}
  #allocation0 [shape = 'u32[]', space=smem, size = 0x4, offset = 0x4, fixed_abs, tag = 'smem constant byte address 0x4 - core index']
  #allocation1 [shape = 'u32[144,128]{1,0:T(1,128)}', space=vmem, size = 0x12000, scoped, tag = 'internal scratch']
  %s0 = inlined_call_operand.vmem [shape: f32[28,32,28], index: 0, kind: input, shape index: {}]
  %s1 = inlined_call_operand.vmem [shape: f32[5,28,256], index: 1, kind: input, shape index: {}]
  %s2 = inlined_call_operand.vmem [shape: f32[1,128], index: 2, kind: input, shape index: {}]
  %s3 = inlined_call_operand.vmem [shape: f32[5,128,256], index: 3, kind: input, shape index: {}]
  %s4 = inlined_call_operand.vmem [shape: f32[1,128], index: 4, kind: input, shape index: {}]
  %s5 = inlined_call_operand.hbm [shape: f32[4,128,128], index: 5, kind: input, shape index: {}]
  %s6 = inlined_call_operand.vmem [shape: f32[1,128], index: 6, kind: input, shape index: {}]
  %s7 = inlined_call_operand.hbm [shape: f32[128,128], index: 7, kind: input, shape index: {}]
  %s8 = inlined_call_operand.vmem [shape: f32[1,128], index: 8, kind: input, shape index: {}]
  %s9 = inlined_call_operand.vmem [shape: f32[32,128], index: 9, kind: output, shape index: {}]
  %s10 = sld [smem:[#allocation0]]
  $region115: #{forward.1} parent=0
    _
  %s12 = ssub.s32 1, %s10
  %s13 = scalar_select 0, %s12, %s10
  $region1: #{forward.1} parent=0
    #allocation2 [shape = 'u8[458752]{0}', space=vmem, size = 0x70000, scoped, tag = 'input window, operand 0']
    #allocation3 [shape = 'u8[262144]{0}', space=vmem, size = 0x40000, scoped, tag = 'input window, operand 5, single buffered']
    #allocation4 [shape = 's32[2]{0}', space=sflag, size = 0x8, scoped, tag = 'scoped memory for forward.1']
    #allocation5 [shape = 'u8[65536]{0}', space=vmem, size = 0x10000, scoped, tag = 'input window, operand 7, single buffered']
    #allocation6 [shape = 's32[1]{0}', space=sflag, size = 0x4, scoped, tag = 'scoped memory for forward.1']
    %14 = vsyncpa [#allocation4], 0
    %15 = vsyncpa [#allocation6], 0
    loop: start=0, step=1, limit=4
    $region2: #{forward.1} parent=1 // loop_pre_header
      _
    $region3: #{forward.1} parent=1 // loop_header
      %s17 = sphi 0, %s21
      %p18 = scmp.ge.s32.totalorder %s17, 4
      %s27 = sphi 0, %s29
      %s30 = sphi 0, %s27
      %s31 = sphi 0, %s30
      %s47 = sphi 0, %s31
      %s51 = sphi 0, %s51
      %s53 = sphi 0, %s51
      %s54 = sphi 0, %s53
      %s68 = sphi 0, %s54
      %s72 = sphi 0, %s72
      %s74 = sphi 0, %s72
      %s75 = sphi 0, %s74
      %s89 = sphi 0, %s75
      %s93 = sphi 0, %s93
      %s95 = sphi 0, %s93
      %s96 = sphi 0, %s95
      %s110 = sphi 0, %s96
      %s114 = sphi 0, %s114
      %s116 = sphi 0, %s114
      %s117 = sphi 0, %s116
      %s131 = sphi 0, %s117
      %s135 = sphi 0, %s135
      %s137 = sphi 0, %s135
      %s138 = sphi 0, %s137
      %s152 = sphi 0, %s138
      %s156 = sphi 0, %s156
      %s158 = sphi 0, %s156
      %s159 = sphi 0, %s158
      %s173 = sphi 0, %s159
      %s177 = sphi 0, %s177
      %s179 = sphi 0, %s177
      %s180 = sphi 0, %s179
      %s194 = sphi 0, %s180
      %s198 = sphi 0, %s198
      %s200 = sphi 0, %s198
      %s201 = sphi 0, %s200
      %s215 = sphi 0, %s201
      %s221 = sphi 0, %s223
      %s224 = sphi 0, %s221
      %s225 = sphi 0, %s224
      %s241 = sphi 0, %s225
    $region4: #{forward.1} parent=1 // loop_header_branch
      %20 = sbr.rel (%p18) target = $region8
    $region5: #{forward.1} parent=1 // loop_body
      %s22 = ssub.s32 %s17, 1
      %s23 = ssub.s32 %s17, 2
      %s24 = sadd.s32 %s17, 1
      %s25 = ssub.s32 %s17, %s24
      %p26 = scmp.eq.s32.totalorder %s25, 0
      %s28 = sadd.s32 %s27, 1
      %s29 = scalar_select %p26, %s27, %s28
      %p32 = pneg %p26
      %p33 = scmp.eq.s32.totalorder %s17, 1
      %p34 = por %p32, %p33
      %p35 = scmp.ne.s32.totalorder %s27, %s30
      %p36 = scmp.eq.s32.totalorder %s17, 0
      %p37 = por %p35, %p36
      %p38 = scmp.ne.s32.totalorder %s27, %s30
      %p39 = scmp.eq.s32.totalorder %s22, 1
      %p40 = por %p38, %p39
      %p41 = scmp.ne.s32.totalorder %s30, %s31
      %p42 = scmp.eq.s32.totalorder %s22, 0
      %p43 = por %p41, %p42
      %p44 = scmp.ne.s32.totalorder %s30, %s31
      %p45 = scmp.eq.s32.totalorder %s23, 1
      %p46 = por %p44, %p45
      %p48 = scmp.ne.s32.totalorder %s31, %s47
      %p49 = scmp.eq.s32.totalorder %s23, 0
      %p50 = por %p48, %p49
      %s52 = sadd.s32 %s51, 1
      %p55 = scmp.eq.s32.totalorder %s17, 1
      %p56 = scmp.ne.s32.totalorder %s51, %s53
      %p57 = scmp.eq.s32.totalorder %s17, 0
      %p58 = por %p56, %p57
      %p59 = scmp.ne.s32.totalorder %s51, %s53
      %p60 = scmp.eq.s32.totalorder %s22, 1
      %p61 = por %p59, %p60
      %p62 = scmp.ne.s32.totalorder %s53, %s54
      %p63 = scmp.eq.s32.totalorder %s22, 0
      %p64 = por %p62, %p63
      %p65 = scmp.ne.s32.totalorder %s53, %s54
      %p66 = scmp.eq.s32.totalorder %s23, 1
      %p67 = por %p65, %p66
      %p69 = scmp.ne.s32.totalorder %s54, %s68
      %p70 = scmp.eq.s32.totalorder %s23, 0
      %p71 = por %p69, %p70
      %s73 = sadd.s32 %s72, 1
      %p76 = scmp.eq.s32.totalorder %s17, 1
      %p77 = scmp.ne.s32.totalorder %s72, %s74
      %p78 = scmp.eq.s32.totalorder %s17, 0
      %p79 = por %p77, %p78
      %p80 = scmp.ne.s32.totalorder %s72, %s74
      %p81 = scmp.eq.s32.totalorder %s22, 1
      %p82 = por %p80, %p81
      %p83 = scmp.ne.s32.totalorder %s74, %s75
      %p84 = scmp.eq.s32.totalorder %s22, 0
      %p85 = por %p83, %p84
      %p86 = scmp.ne.s32.totalorder %s74, %s75
      %p87 = scmp.eq.s32.totalorder %s23, 1
      %p88 = por %p86, %p87
      %p90 = scmp.ne.s32.totalorder %s75, %s89
      %p91 = scmp.eq.s32.totalorder %s23, 0
      %p92 = por %p90, %p91
      %s94 = sadd.s32 %s93, 1
      %p97 = scmp.eq.s32.totalorder %s17, 1
      %p98 = scmp.ne.s32.totalorder %s93, %s95
      %p99 = scmp.eq.s32.totalorder %s17, 0
      %p100 = por %p98, %p99
      %p101 = scmp.ne.s32.totalorder %s93, %s95
      %p102 = scmp.eq.s32.totalorder %s22, 1
      %p103 = por %p101, %p102
      %p104 = scmp.ne.s32.totalorder %s95, %s96
      %p105 = scmp.eq.s32.totalorder %s22, 0
      %p106 = por %p104, %p105
      %p107 = scmp.ne.s32.totalorder %s95, %s96
      %p108 = scmp.eq.s32.totalorder %s23, 1
      %p109 = por %p107, %p108
      %p111 = scmp.ne.s32.totalorder %s96, %s110
      %p112 = scmp.eq.s32.totalorder %s23, 0
      %p113 = por %p111, %p112
      %s115 = sadd.s32 %s114, 1
      %p118 = scmp.eq.s32.totalorder %s17, 1
      %p119 = scmp.ne.s32.totalorder %s114, %s116
      %p120 = scmp.eq.s32.totalorder %s17, 0
      %p121 = por %p119, %p120
      %p122 = scmp.ne.s32.totalorder %s114, %s116
      %p123 = scmp.eq.s32.totalorder %s22, 1
      %p124 = por %p122, %p123
      %p125 = scmp.ne.s32.totalorder %s116, %s117
      %p126 = scmp.eq.s32.totalorder %s22, 0
      %p127 = por %p125, %p126
      %p128 = scmp.ne.s32.totalorder %s116, %s117
      %p129 = scmp.eq.s32.totalorder %s23, 1
      %p130 = por %p128, %p129
      %p132 = scmp.ne.s32.totalorder %s117, %s131
      %p133 = scmp.eq.s32.totalorder %s23, 0
      %p134 = por %p132, %p133
      %s136 = sadd.s32 %s135, 1
      %p139 = scmp.eq.s32.totalorder %s17, 1
      %p140 = scmp.ne.s32.totalorder %s135, %s137
      %p141 = scmp.eq.s32.totalorder %s17, 0
      %p142 = por %p140, %p141
      %p143 = scmp.ne.s32.totalorder %s135, %s137
      %p144 = scmp.eq.s32.totalorder %s22, 1
      %p145 = por %p143, %p144
      %p146 = scmp.ne.s32.totalorder %s137, %s138
      %p147 = scmp.eq.s32.totalorder %s22, 0
      %p148 = por %p146, %p147
      %p149 = scmp.ne.s32.totalorder %s137, %s138
      %p150 = scmp.eq.s32.totalorder %s23, 1
      %p151 = por %p149, %p150
      %p153 = scmp.ne.s32.totalorder %s138, %s152
      %p154 = scmp.eq.s32.totalorder %s23, 0
      %p155 = por %p153, %p154
      %s157 = sadd.s32 %s156, 1
      %p160 = scmp.eq.s32.totalorder %s17, 1
      %p161 = scmp.ne.s32.totalorder %s156, %s158
      %p162 = scmp.eq.s32.totalorder %s17, 0
      %p163 = por %p161, %p162
      %p164 = scmp.ne.s32.totalorder %s156, %s158
      %p165 = scmp.eq.s32.totalorder %s22, 1
      %p166 = por %p164, %p165
      %p167 = scmp.ne.s32.totalorder %s158, %s159
      %p168 = scmp.eq.s32.totalorder %s22, 0
      %p169 = por %p167, %p168
      %p170 = scmp.ne.s32.totalorder %s158, %s159
      %p171 = scmp.eq.s32.totalorder %s23, 1
      %p172 = por %p170, %p171
      %p174 = scmp.ne.s32.totalorder %s159, %s173
      %p175 = scmp.eq.s32.totalorder %s23, 0
      %p176 = por %p174, %p175
      %s178 = sadd.s32 %s177, 1
      %p181 = scmp.eq.s32.totalorder %s17, 1
      %p182 = scmp.ne.s32.totalorder %s177, %s179
      %p183 = scmp.eq.s32.totalorder %s17, 0
      %p184 = por %p182, %p183
      %p185 = scmp.ne.s32.totalorder %s177, %s179
      %p186 = scmp.eq.s32.totalorder %s22, 1
      %p187 = por %p185, %p186
      %p188 = scmp.ne.s32.totalorder %s179, %s180
      %p189 = scmp.eq.s32.totalorder %s22, 0
      %p190 = por %p188, %p189
      %p191 = scmp.ne.s32.totalorder %s179, %s180
      %p192 = scmp.eq.s32.totalorder %s23, 1
      %p193 = por %p191, %p192
      %p195 = scmp.ne.s32.totalorder %s180, %s194
      %p196 = scmp.eq.s32.totalorder %s23, 0
      %p197 = por %p195, %p196
      %s199 = sadd.s32 %s198, 1
      %p202 = scmp.eq.s32.totalorder %s17, 1
      %p203 = scmp.ne.s32.totalorder %s198, %s200
      %p204 = scmp.eq.s32.totalorder %s17, 0
      %p205 = por %p203, %p204
      %p206 = scmp.ne.s32.totalorder %s198, %s200
      %p207 = scmp.eq.s32.totalorder %s22, 1
      %p208 = por %p206, %p207
      %p209 = scmp.ne.s32.totalorder %s200, %s201
      %p210 = scmp.eq.s32.totalorder %s22, 0
      %p211 = por %p209, %p210
      %p212 = scmp.ne.s32.totalorder %s200, %s201
      %p213 = scmp.eq.s32.totalorder %s23, 1
      %p214 = por %p212, %p213
      %p216 = scmp.ne.s32.totalorder %s201, %s215
      %p217 = scmp.eq.s32.totalorder %s23, 0
      %p218 = por %p216, %p217
      %s219 = ssub.s32 %s17, %s24
      %p220 = scmp.eq.s32.totalorder %s219, 0
      %s222 = sadd.s32 %s221, 1
      %s223 = scalar_select %p220, %s221, %s222
      %p226 = pneg %p220
      %p227 = scmp.eq.s32.totalorder %s17, 1
      %p228 = por %p226, %p227
      %p229 = scmp.ne.s32.totalorder %s221, %s224
      %p230 = scmp.eq.s32.totalorder %s17, 0
      %p231 = por %p229, %p230
      %p232 = scmp.ne.s32.totalorder %s221, %s224
      %p233 = scmp.eq.s32.totalorder %s22, 1
      %p234 = por %p232, %p233
      %p235 = scmp.ne.s32.totalorder %s224, %s225
      %p236 = scmp.eq.s32.totalorder %s22, 0
      %p237 = por %p235, %p236
      %p238 = scmp.ne.s32.totalorder %s224, %s225
      %p239 = scmp.eq.s32.totalorder %s23, 1
      %p240 = por %p238, %p239
      %p242 = scmp.ne.s32.totalorder %s225, %s241
      %p243 = scmp.eq.s32.totalorder %s23, 0
      %p244 = por %p242, %p243
      %p245 = scmp.le.s32.totalorder 1, %s17
      %p246 = scmp.lt.s32.totalorder %s17, 3
      %p247 = pnand %p245, %p246
      %p248 = pneg %p247
      // Predicated region
      $region9: #{forward.1} parent=5 // pred_check
        _
      $region10: #{forward.1} parent=5 // pred_check_branch
        %250 = sbr.rel (%p247) target = $region12
      $region11: #{forward.1} parent=5 // pred_region
        %s251 = ssub.s32 %s17, 1
        // Predicated region
        $region13: #{forward.1} parent=11 // pred_check
          %p252 = pneg %p64
        $region14: #{forward.1} parent=11 // pred_check_branch
          %254 = sbr.rel (%p252) target = $region16
        $region15: #{forward.1} parent=11 // pred_region
          _
        $region16: #{forward.1} parent=11 // pred_fallthru
          _
        // Predicated region
        $region17: #{forward.1} parent=11 // pred_check
          %p255 = pneg %p85
        $region18: #{forward.1} parent=11 // pred_check_branch
          %257 = sbr.rel (%p255) target = $region20
        $region19: #{forward.1} parent=11 // pred_region
          _
        $region20: #{forward.1} parent=11 // pred_fallthru
          _
        // Predicated region
        $region21: #{forward.1} parent=11 // pred_check
          %p258 = pneg %p106
        $region22: #{forward.1} parent=11 // pred_check_branch
          %260 = sbr.rel (%p258) target = $region24
        $region23: #{forward.1} parent=11 // pred_region
          _
        $region24: #{forward.1} parent=11 // pred_fallthru
          _
        // Predicated region
        $region25: #{forward.1} parent=11 // pred_check
          %p261 = pneg %p127
        $region26: #{forward.1} parent=11 // pred_check_branch
          %263 = sbr.rel (%p261) target = $region28
        $region27: #{forward.1} parent=11 // pred_region
          _
        $region28: #{forward.1} parent=11 // pred_fallthru
          _
        // Predicated region
        $region29: #{forward.1} parent=11 // pred_check
          %p264 = pneg %p148
        $region30: #{forward.1} parent=11 // pred_check_branch
          %266 = sbr.rel (%p264) target = $region32
        $region31: #{forward.1} parent=11 // pred_region
          %s268 = ssub.s32 8192, 8192
          %269 = vsyncadd [#allocation4], %s268
          %s270 = sshll.u32 [#allocation3], 4
          %s271 = int_to_ptr.vmem [resolvable:$true] %s270
          %276 = dma.hbm_to_vmem [thread:$0]  %s5, 8192, %s271, [#allocation4], 128, 128, 8
        $region32: #{forward.1} parent=11 // pred_fallthru
          _
        // Predicated region
        $region33: #{forward.1} parent=11 // pred_check
          %p277 = pneg %p169
        $region34: #{forward.1} parent=11 // pred_check_branch
          %279 = sbr.rel (%p277) target = $region36
        $region35: #{forward.1} parent=11 // pred_region
          _
        $region36: #{forward.1} parent=11 // pred_fallthru
          _
        // Predicated region
        $region37: #{forward.1} parent=11 // pred_check
          %p280 = pneg %p190
        $region38: #{forward.1} parent=11 // pred_check_branch
          %282 = sbr.rel (%p280) target = $region40
        $region39: #{forward.1} parent=11 // pred_region
          %s284 = ssub.s32 2048, 2048
          %285 = vsyncadd [#allocation6], %s284
          %s286 = sshll.u32 [#allocation5], 4
          %s287 = int_to_ptr.vmem [resolvable:$true] %s286
          %292 = dma.hbm_to_vmem [thread:$0]  %s7, 2048, %s287, [#allocation6], 128, 128, 8
        $region40: #{forward.1} parent=11 // pred_fallthru
          _
        // Predicated region
        $region41: #{forward.1} parent=11 // pred_check
          %p293 = pneg %p211
        $region42: #{forward.1} parent=11 // pred_check_branch
          %295 = sbr.rel (%p293) target = $region44
        $region43: #{forward.1} parent=11 // pred_region
          _
        $region44: #{forward.1} parent=11 // pred_fallthru
          _
      $region12: #{forward.1} parent=5 // pred_fallthru
        _
      %p296 = scmp.lt.s32.totalorder %s17, 2
      // Predicated region
      $region45: #{forward.1} parent=5 // pred_check
        %p297 = pneg %p296
      $region46: #{forward.1} parent=5 // pred_check_branch
        %299 = sbr.rel (%p297) target = $region48
      $region47: #{forward.1} parent=5 // pred_region
        // Predicated region
        $region49: #{forward.1} parent=47 // pred_check
          %p300 = pneg %p37
        $region50: #{forward.1} parent=47 // pred_check_branch
          %302 = sbr.rel (%p300) target = $region52
        $region51: #{forward.1} parent=47 // pred_region
          %s303 = sand.u32 %s27, 1
          %s304 = sand.u32 %s27, 1
          %s305 = smul.addr %s304, 448
          %s306 = scalar_lea.vmem [#allocation2], %s305
          %s307 = smul.u32 2, %s17
          %s308 = smul.addr %s307, 8
          %s309 = scalar_lea.vmem %s0, %s308
          // Predicated region
          $region53: #{forward.1} parent=51 // pred_check
            _
          $region54: #{forward.1} parent=51 // pred_check_branch
            %311 = sbr.rel (0) target = $region56
          $region55: #{forward.1} parent=51 // pred_region
            // Predicated region
            $region57: #{forward.1} parent=55 // pred_check
              _
            $region58: #{forward.1} parent=55 // pred_check_branch
              %313 = sbr.rel (0) target = $region60
            $region59: #{forward.1} parent=55 // pred_region
              // Predicated region
              $region72: #{forward.1} parent=59 // pred_check
                _
              $region73: #{forward.1} parent=59 // pred_check_branch
                %438 = sbr.rel (0) target = $region75
              $region74: #{forward.1} parent=59 // pred_region
                loop: start=0, step=1, limit=1
                $region76: #{forward.1} parent=74 // loop_pre_header
                  _
                $region77: #{forward.1} parent=74 // loop_header
                  %s440 = sphi 0, %s444
                  %p441 = scmp.ge.s32.totalorder %s440, 1
                  %s445 = sphi %s309, %s309
                  %s446 = sphi %s306, %s306
                $region78: #{forward.1} parent=74 // loop_header_branch
                  %443 = sbr.rel (%p441) target = $region82
                $region79: #{forward.1} parent=74 // loop_body
                  %v447 = vld [vmem:[%s445] sm:$0xff]
                  %448 = vst [vmem:[%s446] sm:$0xff] %v447
                  %v449 = vld [vmem:[%s445 + $0x8] sm:$0xff]
                  %450 = vst [vmem:[%s446 + $0x8] sm:$0xff] %v449
                  %v451 = vld [vmem:[%s445 + $0x20] sm:$0xff]
                  %452 = vst [vmem:[%s446 + $0x10] sm:$0xff] %v451
                  %v453 = vld [vmem:[%s445 + $0x28] sm:$0xff]
                  %454 = vst [vmem:[%s446 + $0x18] sm:$0xff] %v453
                  %v455 = vld [vmem:[%s445 + $0x40] sm:$0xff]
                  %456 = vst [vmem:[%s446 + $0x20] sm:$0xff] %v455
                  %v457 = vld [vmem:[%s445 + $0x48] sm:$0xff]
                  %458 = vst [vmem:[%s446 + $0x28] sm:$0xff] %v457
                  %v459 = vld [vmem:[%s445 + $0x60] sm:$0xff]
                  %460 = vst [vmem:[%s446 + $0x30] sm:$0xff] %v459
                  %v461 = vld [vmem:[%s445 + $0x68] sm:$0xff]
                  %462 = vst [vmem:[%s446 + $0x38] sm:$0xff] %v461
                  %v463 = vld [vmem:[%s445 + $0x80] sm:$0xff]
                  %464 = vst [vmem:[%s446 + $0x40] sm:$0xff] %v463
                  %v465 = vld [vmem:[%s445 + $0x88] sm:$0xff]
                  %466 = vst [vmem:[%s446 + $0x48] sm:$0xff] %v465
                  %v467 = vld [vmem:[%s445 + $0xa0] sm:$0xff]
                  %468 = vst [vmem:[%s446 + $0x50] sm:$0xff] %v467
                  %v469 = vld [vmem:[%s445 + $0xa8] sm:$0xff]
                  %470 = vst [vmem:[%s446 + $0x58] sm:$0xff] %v469
                  %v471 = vld [vmem:[%s445 + $0xc0] sm:$0xff]
                  %472 = vst [vmem:[%s446 + $0x60] sm:$0xff] %v471
                  %v473 = vld [vmem:[%s445 + $0xc8] sm:$0xff]
                  %474 = vst [vmem:[%s446 + $0x68] sm:$0xff] %v473
                  %v475 = vld [vmem:[%s445 + $0xe0] sm:$0xff]
                  %476 = vst [vmem:[%s446 + $0x70] sm:$0xff] %v475
                  %v477 = vld [vmem:[%s445 + $0xe8] sm:$0xff]
                  %478 = vst [vmem:[%s446 + $0x78] sm:$0xff] %v477
                  %v479 = vld [vmem:[%s445 + $0x100] sm:$0xff]
                  %480 = vst [vmem:[%s446 + $0x80] sm:$0xff] %v479
                  %v481 = vld [vmem:[%s445 + $0x108] sm:$0xff]
                  %482 = vst [vmem:[%s446 + $0x88] sm:$0xff] %v481
                  %v483 = vld [vmem:[%s445 + $0x120] sm:$0xff]
                  %484 = vst [vmem:[%s446 + $0x90] sm:$0xff] %v483
                  %v485 = vld [vmem:[%s445 + $0x128] sm:$0xff]
                  %486 = vst [vmem:[%s446 + $0x98] sm:$0xff] %v485
                  %v487 = vld [vmem:[%s445 + $0x140] sm:$0xff]
                  %488 = vst [vmem:[%s446 + $0xa0] sm:$0xff] %v487
                  %v489 = vld [vmem:[%s445 + $0x148] sm:$0xff]
                  %490 = vst [vmem:[%s446 + $0xa8] sm:$0xff] %v489
                  %v491 = vld [vmem:[%s445 + $0x160] sm:$0xff]
                  %492 = vst [vmem:[%s446 + $0xb0] sm:$0xff] %v491
                  %v493 = vld [vmem:[%s445 + $0x168] sm:$0xff]
                  %494 = vst [vmem:[%s446 + $0xb8] sm:$0xff] %v493
                  %v495 = vld [vmem:[%s445 + $0x180] sm:$0xff]
                  %496 = vst [vmem:[%s446 + $0xc0] sm:$0xff] %v495
                  %v497 = vld [vmem:[%s445 + $0x188] sm:$0xff]
                  %498 = vst [vmem:[%s446 + $0xc8] sm:$0xff] %v497
                  %v499 = vld [vmem:[%s445 + $0x1a0] sm:$0xff]
                  %500 = vst [vmem:[%s446 + $0xd0] sm:$0xff] %v499
                  %v501 = vld [vmem:[%s445 + $0x1a8] sm:$0xff]
                  %502 = vst [vmem:[%s446 + $0xd8] sm:$0xff] %v501
                  %v503 = vld [vmem:[%s445 + $0x1c0] sm:$0xff]
                  %504 = vst [vmem:[%s446 + $0xe0] sm:$0xff] %v503
                  %v505 = vld [vmem:[%s445 + $0x1c8] sm:$0xff]
                  %506 = vst [vmem:[%s446 + $0xe8] sm:$0xff] %v505
                  %v507 = vld [vmem:[%s445 + $0x1e0] sm:$0xff]
                  %508 = vst [vmem:[%s446 + $0xf0] sm:$0xff] %v507
                  %v509 = vld [vmem:[%s445 + $0x1e8] sm:$0xff]
                  %510 = vst [vmem:[%s446 + $0xf8] sm:$0xff] %v509
                  %v511 = vld [vmem:[%s445 + $0x200] sm:$0xff]
                  %512 = vst [vmem:[%s446 + $0x100] sm:$0xff] %v511
                  %v513 = vld [vmem:[%s445 + $0x208] sm:$0xff]
                  %514 = vst [vmem:[%s446 + $0x108] sm:$0xff] %v513
                  %v515 = vld [vmem:[%s445 + $0x220] sm:$0xff]
                  %516 = vst [vmem:[%s446 + $0x110] sm:$0xff] %v515
                  %v517 = vld [vmem:[%s445 + $0x228] sm:$0xff]
                  %518 = vst [vmem:[%s446 + $0x118] sm:$0xff] %v517
                  %v519 = vld [vmem:[%s445 + $0x240] sm:$0xff]
                  %520 = vst [vmem:[%s446 + $0x120] sm:$0xff] %v519
                  %v521 = vld [vmem:[%s445 + $0x248] sm:$0xff]
                  %522 = vst [vmem:[%s446 + $0x128] sm:$0xff] %v521
                  %v523 = vld [vmem:[%s445 + $0x260] sm:$0xff]
                  %524 = vst [vmem:[%s446 + $0x130] sm:$0xff] %v523
                  %v525 = vld [vmem:[%s445 + $0x268] sm:$0xff]
                  %526 = vst [vmem:[%s446 + $0x138] sm:$0xff] %v525
                  %v527 = vld [vmem:[%s445 + $0x280] sm:$0xff]
                  %528 = vst [vmem:[%s446 + $0x140] sm:$0xff] %v527
                  %v529 = vld [vmem:[%s445 + $0x288] sm:$0xff]
                  %530 = vst [vmem:[%s446 + $0x148] sm:$0xff] %v529
                  %v531 = vld [vmem:[%s445 + $0x2a0] sm:$0xff]
                  %532 = vst [vmem:[%s446 + $0x150] sm:$0xff] %v531
                  %v533 = vld [vmem:[%s445 + $0x2a8] sm:$0xff]
                  %534 = vst [vmem:[%s446 + $0x158] sm:$0xff] %v533
                  %v535 = vld [vmem:[%s445 + $0x2c0] sm:$0xff]
                  %536 = vst [vmem:[%s446 + $0x160] sm:$0xff] %v535
                  %v537 = vld [vmem:[%s445 + $0x2c8] sm:$0xff]
                  %538 = vst [vmem:[%s446 + $0x168] sm:$0xff] %v537
                  %v539 = vld [vmem:[%s445 + $0x2e0] sm:$0xff]
                  %540 = vst [vmem:[%s446 + $0x170] sm:$0xff] %v539
                  %v541 = vld [vmem:[%s445 + $0x2e8] sm:$0xff]
                  %542 = vst [vmem:[%s446 + $0x178] sm:$0xff] %v541
                  %v543 = vld [vmem:[%s445 + $0x300] sm:$0xff]
                  %544 = vst [vmem:[%s446 + $0x180] sm:$0xff] %v543
                  %v545 = vld [vmem:[%s445 + $0x308] sm:$0xff]
                  %546 = vst [vmem:[%s446 + $0x188] sm:$0xff] %v545
                  %v547 = vld [vmem:[%s445 + $0x320] sm:$0xff]
                  %548 = vst [vmem:[%s446 + $0x190] sm:$0xff] %v547
                  %v549 = vld [vmem:[%s445 + $0x328] sm:$0xff]
                  %550 = vst [vmem:[%s446 + $0x198] sm:$0xff] %v549
                  %v551 = vld [vmem:[%s445 + $0x340] sm:$0xff]
                  %552 = vst [vmem:[%s446 + $0x1a0] sm:$0xff] %v551
                  %v553 = vld [vmem:[%s445 + $0x348] sm:$0xff]
                  %554 = vst [vmem:[%s446 + $0x1a8] sm:$0xff] %v553
                  %v555 = vld [vmem:[%s445 + $0x360] sm:$0xff]
                  %556 = vst [vmem:[%s446 + $0x1b0] sm:$0xff] %v555
                  %v557 = vld [vmem:[%s445 + $0x368] sm:$0xff]
                  %558 = vst [vmem:[%s446 + $0x1b8] sm:$0xff] %v557
                $region80: #{forward.1} parent=74 // loop_footer
                  %s444 = sadd.s32 1, %s440
                $region81: #{forward.1} parent=74 // loop_footer_branch
                  %439 = sbr.rel target = $region77
                $region82: #{forward.1} parent=74 // loop_exit
                  _
              $region75: #{forward.1} parent=59 // pred_fallthru
                _
              // Predicated region
              $region83: #{forward.1} parent=59 // pred_check
                _
              $region84: #{forward.1} parent=59 // pred_check_branch
                %560 = sbr.rel target = $region86
              $region85: #{forward.1} parent=59 // pred_region
                _
              $region86: #{forward.1} parent=59 // pred_fallthru
                _
            $region60: #{forward.1} parent=55 // pred_fallthru
              _
            // Predicated region
            $region61: #{forward.1} parent=55 // pred_check
              _
            $region62: #{forward.1} parent=55 // pred_check_branch
              %315 = sbr.rel target = $region64
            $region63: #{forward.1} parent=55 // pred_region
              loop: start=0, step=1, limit=1
              $region65: #{forward.1} parent=63 // loop_pre_header
                _
              $region66: #{forward.1} parent=63 // loop_header
                %s318 = sphi 0, %s322
                %p319 = scmp.ge.s32.totalorder %s318, 1
                %s323 = sphi %s309, %s309
                %s324 = sphi %s306, %s306
              $region67: #{forward.1} parent=63 // loop_header_branch
                %321 = sbr.rel (%p319) target = $region71
              $region68: #{forward.1} parent=63 // loop_body
                %v325 = vld [vmem:[%s323] sm:$0xff]
                %326 = vst [vmem:[%s324] sm:$0xff] %v325
                %v327 = vld [vmem:[%s323 + $0x8] sm:$0xff]
                %328 = vst [vmem:[%s324 + $0x8] sm:$0xff] %v327
                %v329 = vld [vmem:[%s323 + $0x20] sm:$0xff]
                %330 = vst [vmem:[%s324 + $0x10] sm:$0xff] %v329
                %v331 = vld [vmem:[%s323 + $0x28] sm:$0xff]
                %332 = vst [vmem:[%s324 + $0x18] sm:$0xff] %v331
                %v333 = vld [vmem:[%s323 + $0x40] sm:$0xff]
                %334 = vst [vmem:[%s324 + $0x20] sm:$0xff] %v333
                %v335 = vld [vmem:[%s323 + $0x48] sm:$0xff]
                %336 = vst [vmem:[%s324 + $0x28] sm:$0xff] %v335
                %v337 = vld [vmem:[%s323 + $0x60] sm:$0xff]
                %338 = vst [vmem:[%s324 + $0x30] sm:$0xff] %v337
                %v339 = vld [vmem:[%s323 + $0x68] sm:$0xff]
                %340 = vst [vmem:[%s324 + $0x38] sm:$0xff] %v339
                %v341 = vld [vmem:[%s323 + $0x80] sm:$0xff]
                %342 = vst [vmem:[%s324 + $0x40] sm:$0xff] %v341
                %v343 = vld [vmem:[%s323 + $0x88] sm:$0xff]
                %344 = vst [vmem:[%s324 + $0x48] sm:$0xff] %v343
                %v345 = vld [vmem:[%s323 + $0xa0] sm:$0xff]
                %346 = vst [vmem:[%s324 + $0x50] sm:$0xff] %v345
                %v347 = vld [vmem:[%s323 + $0xa8] sm:$0xff]
                %348 = vst [vmem:[%s324 + $0x58] sm:$0xff] %v347
                %v349 = vld [vmem:[%s323 + $0xc0] sm:$0xff]
                %350 = vst [vmem:[%s324 + $0x60] sm:$0xff] %v349
                %v351 = vld [vmem:[%s323 + $0xc8] sm:$0xff]
                %352 = vst [vmem:[%s324 + $0x68] sm:$0xff] %v351
                %v353 = vld [vmem:[%s323 + $0xe0] sm:$0xff]
                %354 = vst [vmem:[%s324 + $0x70] sm:$0xff] %v353
                %v355 = vld [vmem:[%s323 + $0xe8] sm:$0xff]
                %356 = vst [vmem:[%s324 + $0x78] sm:$0xff] %v355
                %v357 = vld [vmem:[%s323 + $0x100] sm:$0xff]
                %358 = vst [vmem:[%s324 + $0x80] sm:$0xff] %v357
                %v359 = vld [vmem:[%s323 + $0x108] sm:$0xff]
                %360 = vst [vmem:[%s324 + $0x88] sm:$0xff] %v359
                %v361 = vld [vmem:[%s323 + $0x120] sm:$0xff]
                %362 = vst [vmem:[%s324 + $0x90] sm:$0xff] %v361
                %v363 = vld [vmem:[%s323 + $0x128] sm:$0xff]
                %364 = vst [vmem:[%s324 + $0x98] sm:$0xff] %v363
                %v365 = vld [vmem:[%s323 + $0x140] sm:$0xff]
                %366 = vst [vmem:[%s324 + $0xa0] sm:$0xff] %v365
                %v367 = vld [vmem:[%s323 + $0x148] sm:$0xff]
                %368 = vst [vmem:[%s324 + $0xa8] sm:$0xff] %v367
                %v369 = vld [vmem:[%s323 + $0x160] sm:$0xff]
                %370 = vst [vmem:[%s324 + $0xb0] sm:$0xff] %v369
                %v371 = vld [vmem:[%s323 + $0x168] sm:$0xff]
                %372 = vst [vmem:[%s324 + $0xb8] sm:$0xff] %v371
                %v373 = vld [vmem:[%s323 + $0x180] sm:$0xff]
                %374 = vst [vmem:[%s324 + $0xc0] sm:$0xff] %v373
                %v375 = vld [vmem:[%s323 + $0x188] sm:$0xff]
                %376 = vst [vmem:[%s324 + $0xc8] sm:$0xff] %v375
                %v377 = vld [vmem:[%s323 + $0x1a0] sm:$0xff]
                %378 = vst [vmem:[%s324 + $0xd0] sm:$0xff] %v377
                %v379 = vld [vmem:[%s323 + $0x1a8] sm:$0xff]
                %380 = vst [vmem:[%s324 + $0xd8] sm:$0xff] %v379
                %v381 = vld [vmem:[%s323 + $0x1c0] sm:$0xff]
                %382 = vst [vmem:[%s324 + $0xe0] sm:$0xff] %v381
                %v383 = vld [vmem:[%s323 + $0x1c8] sm:$0xff]
                %384 = vst [vmem:[%s324 + $0xe8] sm:$0xff] %v383
                %v385 = vld [vmem:[%s323 + $0x1e0] sm:$0xff]
                %386 = vst [vmem:[%s324 + $0xf0] sm:$0xff] %v385
                %v387 = vld [vmem:[%s323 + $0x1e8] sm:$0xff]
                %388 = vst [vmem:[%s324 + $0xf8] sm:$0xff] %v387
                %v389 = vld [vmem:[%s323 + $0x200] sm:$0xff]
                %390 = vst [vmem:[%s324 + $0x100] sm:$0xff] %v389
                %v391 = vld [vmem:[%s323 + $0x208] sm:$0xff]
                %392 = vst [vmem:[%s324 + $0x108] sm:$0xff] %v391
                %v393 = vld [vmem:[%s323 + $0x220] sm:$0xff]
                %394 = vst [vmem:[%s324 + $0x110] sm:$0xff] %v393
                %v395 = vld [vmem:[%s323 + $0x228] sm:$0xff]
                %396 = vst [vmem:[%s324 + $0x118] sm:$0xff] %v395
                %v397 = vld [vmem:[%s323 + $0x240] sm:$0xff]
                %398 = vst [vmem:[%s324 + $0x120] sm:$0xff] %v397
                %v399 = vld [vmem:[%s323 + $0x248] sm:$0xff]
                %400 = vst [vmem:[%s324 + $0x128] sm:$0xff] %v399
                %v401 = vld [vmem:[%s323 + $0x260] sm:$0xff]
                %402 = vst [vmem:[%s324 + $0x130] sm:$0xff] %v401
                %v403 = vld [vmem:[%s323 + $0x268] sm:$0xff]
                %404 = vst [vmem:[%s324 + $0x138] sm:$0xff] %v403
                %v405 = vld [vmem:[%s323 + $0x280] sm:$0xff]
                %406 = vst [vmem:[%s324 + $0x140] sm:$0xff] %v405
                %v407 = vld [vmem:[%s323 + $0x288] sm:$0xff]
                %408 = vst [vmem:[%s324 + $0x148] sm:$0xff] %v407
                %v409 = vld [vmem:[%s323 + $0x2a0] sm:$0xff]
                %410 = vst [vmem:[%s324 + $0x150] sm:$0xff] %v409
                %v411 = vld [vmem:[%s323 + $0x2a8] sm:$0xff]
                %412 = vst [vmem:[%s324 + $0x158] sm:$0xff] %v411
                %v413 = vld [vmem:[%s323 + $0x2c0] sm:$0xff]
                %414 = vst [vmem:[%s324 + $0x160] sm:$0xff] %v413
                %v415 = vld [vmem:[%s323 + $0x2c8] sm:$0xff]
                %416 = vst [vmem:[%s324 + $0x168] sm:$0xff] %v415
                %v417 = vld [vmem:[%s323 + $0x2e0] sm:$0xff]
                %418 = vst [vmem:[%s324 + $0x170] sm:$0xff] %v417
                %v419 = vld [vmem:[%s323 + $0x2e8] sm:$0xff]
                %420 = vst [vmem:[%s324 + $0x178] sm:$0xff] %v419
                %v421 = vld [vmem:[%s323 + $0x300] sm:$0xff]
                %422 = vst [vmem:[%s324 + $0x180] sm:$0xff] %v421
                %v423 = vld [vmem:[%s323 + $0x308] sm:$0xff]
                %424 = vst [vmem:[%s324 + $0x188] sm:$0xff] %v423
                %v425 = vld [vmem:[%s323 + $0x320] sm:$0xff]
                %426 = vst [vmem:[%s324 + $0x190] sm:$0xff] %v425
                %v427 = vld [vmem:[%s323 + $0x328] sm:$0xff]
                %428 = vst [vmem:[%s324 + $0x198] sm:$0xff] %v427
                %v429 = vld [vmem:[%s323 + $0x340] sm:$0xff]
                %430 = vst [vmem:[%s324 + $0x1a0] sm:$0xff] %v429
                %v431 = vld [vmem:[%s323 + $0x348] sm:$0xff]
                %432 = vst [vmem:[%s324 + $0x1a8] sm:$0xff] %v431
                %v433 = vld [vmem:[%s323 + $0x360] sm:$0xff]
                %434 = vst [vmem:[%s324 + $0x1b0] sm:$0xff] %v433
                %v435 = vld [vmem:[%s323 + $0x368] sm:$0xff]
                %436 = vst [vmem:[%s324 + $0x1b8] sm:$0xff] %v435
              $region69: #{forward.1} parent=63 // loop_footer
                %s322 = sadd.s32 1, %s318
              $region70: #{forward.1} parent=63 // loop_footer_branch
                %317 = sbr.rel target = $region66
              $region71: #{forward.1} parent=63 // loop_exit
                _
            $region64: #{forward.1} parent=55 // pred_fallthru
              _
          $region56: #{forward.1} parent=51 // pred_fallthru
            _
          %561 = vnop
        $region52: #{forward.1} parent=47 // pred_fallthru
          _
      $region48: #{forward.1} parent=5 // pred_fallthru
        _
      %p562 = scmp.le.s32.totalorder 1, %s17
      %p563 = scmp.lt.s32.totalorder %s17, 3
      %p564 = pnand %p562, %p563
      %p565 = pneg %p564
      // Predicated region
      $region87: #{forward.1} parent=5 // pred_check
        _
      $region88: #{forward.1} parent=5 // pred_check_branch
        %567 = sbr.rel (%p564) target = $region90
      $region89: #{forward.1} parent=5 // pred_region
        %s568 = ssub.s32 %s17, 1
        %s569 = sand.u32 %s30, 1
        %s570 = sand.u32 %s30, 1
        %s571 = smul.addr %s570, 448
        %s572 = scalar_lea.vmem [#allocation2], %s571
        // Predicated region
        $region91: #{forward.1} parent=89 // pred_check
          %p573 = pneg %p43
        $region92: #{forward.1} parent=89 // pred_check_branch
          %575 = sbr.rel (%p573) target = $region94
        $region93: #{forward.1} parent=89 // pred_region
          _
        $region94: #{forward.1} parent=89 // pred_fallthru
          _
        // Predicated region
        $region95: #{forward.1} parent=89 // pred_check
          %p576 = pneg %p148
        $region96: #{forward.1} parent=89 // pred_check_branch
          %578 = sbr.rel (%p576) target = $region98
        $region97: #{forward.1} parent=89 // pred_region
          %579 = dma.done [#allocation4], 8192
        $region98: #{forward.1} parent=89 // pred_fallthru
          _
        // Predicated region
        $region99: #{forward.1} parent=89 // pred_check
          %p580 = pneg %p190
        $region100: #{forward.1} parent=89 // pred_check_branch
          %582 = sbr.rel (%p580) target = $region102
        $region101: #{forward.1} parent=89 // pred_region
          %583 = dma.done [#allocation6], 2048
        $region102: #{forward.1} parent=89 // pred_fallthru
          _
        %s584 = sand.u32 %s30, 1
        %s585 = sand.u32 %s30, 1
        %s586 = smul.addr %s585, 448
        %s587 = scalar_lea.vmem [#allocation2], %s586
        %p588 = pneg %p43
        %p589 = pneg %p40
        %p590 = pneg %p64
        %p591 = pneg %p61
        %p592 = pneg %p85
        %p593 = pneg %p82
        %p594 = pneg %p106
        %p595 = pneg %p103
        %p596 = pneg %p127
        %p597 = pneg %p124
        %p598 = pneg %p148
        %p599 = pneg %p145
        %p600 = pneg %p169
        %p601 = pneg %p166
        %p602 = pneg %p190
        %p603 = pneg %p187
        %p604 = pneg %p211
        %p605 = pneg %p208
        %p606 = pneg %p237
        %p607 = pneg %p234
        %s608 = smul.u32 2, %s22
        %p609 = scmp.lt.s32.totalorder %s608, 3
        %s610 = scalar_select %p609, %s608, 3
        %s611 = smul.addr %s610, 8
        %s612 = scalar_lea.vmem %s9, %s611
        %s613 = smul.u32 2, %s22
        %s614 = smul.u32 2, %s22
        %p615 = scmp.lt.s32.totalorder %s614, 3
        %s616 = scalar_select %p615, %s614, 3
        %s617 = smul.addr %s616, 8
        %s618 = scalar_lea.vmem %s9, %s617
        %s619 = smul.u32 2, %s22
        %v620 = vld [vmem:[%s572] sm:$0xff]
        %v621 = vld [vmem:[%s572 + $0x8] sm:$0xff]
        %v622 = vld [vmem:[%s572 + $0x10] sm:$0xff]
        %v623 = vld [vmem:[%s572 + $0x18] sm:$0xff]
        %v624 = vld [vmem:[%s572 + $0x20] sm:$0xff]
        %v625 = vld [vmem:[%s572 + $0x28] sm:$0xff]
        %v626 = vld [vmem:[%s572 + $0x30] sm:$0xff]
        %v627 = vld [vmem:[%s572 + $0x38] sm:$0xff]
        %v628 = vld [vmem:[%s572 + $0x40] sm:$0xff]
        %v629 = vld [vmem:[%s572 + $0x48] sm:$0xff]
        %v630 = vld [vmem:[%s572 + $0x50] sm:$0xff]
        %v631 = vld [vmem:[%s572 + $0x58] sm:$0xff]
        %v632 = vld [vmem:[%s572 + $0x60] sm:$0xff]
        %v633 = vld [vmem:[%s572 + $0x68] sm:$0xff]
        %v634 = vld [vmem:[%s572 + $0x70] sm:$0xff]
        %v635 = vld [vmem:[%s572 + $0x78] sm:$0xff]
        %v636 = vld [vmem:[%s572 + $0x80] sm:$0xff]
        %v637 = vld [vmem:[%s572 + $0x88] sm:$0xff]
        %v638 = vld [vmem:[%s572 + $0x90] sm:$0xff]
        %v639 = vld [vmem:[%s572 + $0x98] sm:$0xff]
        %v640 = vld [vmem:[%s572 + $0xa0] sm:$0xff]
        %v641 = vld [vmem:[%s572 + $0xa8] sm:$0xff]
        %v642 = vld [vmem:[%s572 + $0xb0] sm:$0xff]
        %v643 = vld [vmem:[%s572 + $0xb8] sm:$0xff]
        %v644 = vld [vmem:[%s572 + $0xc0] sm:$0xff]
        %v645 = vld [vmem:[%s572 + $0xc8] sm:$0xff]
        %v646 = vld [vmem:[%s572 + $0xd0] sm:$0xff]
        %v647 = vld [vmem:[%s572 + $0xd8] sm:$0xff]
        %v648 = vld [vmem:[%s572 + $0xe0] sm:$0xff]
        %v649 = vld [vmem:[%s572 + $0xe8] sm:$0xff]
        %v650 = vld [vmem:[%s572 + $0xf0] sm:$0xff]
        %v651 = vld [vmem:[%s572 + $0xf8] sm:$0xff]
        %v652 = vld [vmem:[%s572 + $0x100] sm:$0xff]
        %v653 = vld [vmem:[%s572 + $0x108] sm:$0xff]
        %v654 = vld [vmem:[%s572 + $0x110] sm:$0xff]
        %v655 = vld [vmem:[%s572 + $0x118] sm:$0xff]
        %v656 = vld [vmem:[%s572 + $0x120] sm:$0xff]
        %v657 = vld [vmem:[%s572 + $0x128] sm:$0xff]
        %v658 = vld [vmem:[%s572 + $0x130] sm:$0xff]
        %v659 = vld [vmem:[%s572 + $0x138] sm:$0xff]
        %v660 = vld [vmem:[%s572 + $0x140] sm:$0xff]
        %v661 = vld [vmem:[%s572 + $0x148] sm:$0xff]
        %v662 = vld [vmem:[%s572 + $0x150] sm:$0xff]
        %v663 = vld [vmem:[%s572 + $0x158] sm:$0xff]
        %v664 = vld [vmem:[%s572 + $0x160] sm:$0xff]
        %v665 = vld [vmem:[%s572 + $0x168] sm:$0xff]
        %v666 = vld [vmem:[%s572 + $0x170] sm:$0xff]
        %v667 = vld [vmem:[%s572 + $0x178] sm:$0xff]
        %v668 = vld [vmem:[%s572 + $0x180] sm:$0xff]
        %v669 = vld [vmem:[%s572 + $0x188] sm:$0xff]
        %v670 = vld [vmem:[%s572 + $0x190] sm:$0xff]
        %v671 = vld [vmem:[%s572 + $0x198] sm:$0xff]
        %v672 = vld [vmem:[%s572 + $0x1a0] sm:$0xff]
        %v673 = vld [vmem:[%s572 + $0x1a8] sm:$0xff]
        %v674 = vld [vmem:[%s572 + $0x1b0] sm:$0xff]
        %v675 = vld [vmem:[%s572 + $0x1b8] sm:$0xff]
        %v676 = vld [vmem:[%s1] sm:$0xff]
        %v677 = vld [vmem:[%s1 + $0x8] sm:$0xff]
        %v678 = vld [vmem:[%s1 + $0x10] sm:$0xff]
        %v679 = vld [vmem:[%s1 + $0x18] sm:$0xff]
        %v680 = vld [vmem:[%s1 + $0x20] sm:$0xff]
        %v681 = vld [vmem:[%s1 + $0x28] sm:$0xff]
        %v682 = vld [vmem:[%s1 + $0x30] sm:$0xf]
        %v683 = vld [vmem:[%s1 + $0x38] sm:$0xf]
        %s684 = scalar_lea.vmem %s1, 64
        %v685 = vld [vmem:[%s684] sm:$0xff]
        %v686 = vld [vmem:[%s684 + $0x8] sm:$0xff]
        %v687 = vld [vmem:[%s684 + $0x10] sm:$0xff]
        %v688 = vld [vmem:[%s684 + $0x18] sm:$0xff]
        %v689 = vld [vmem:[%s684 + $0x20] sm:$0xff]
        %v690 = vld [vmem:[%s684 + $0x28] sm:$0xff]
        %v691 = vld [vmem:[%s684 + $0x30] sm:$0xf]
        %v692 = vld [vmem:[%s684 + $0x38] sm:$0xf]
        %vm693 = vcmask 228352
        %v695 = vsel %vm693, %v622, 0
        %v698 = vsel %vm693, %v623, 0
        %v701 = vsel %vm693, %v626, 0
        %v704 = vsel %vm693, %v627, 0
        %v707 = vsel %vm693, %v630, 0
        %v710 = vsel %vm693, %v631, 0
        %v713 = vsel %vm693, %v634, 0
        %v716 = vsel %vm693, %v635, 0
        %v719 = vsel %vm693, %v638, 0
        %v722 = vsel %vm693, %v639, 0
        %v725 = vsel %vm693, %v642, 0
        %v728 = vsel %vm693, %v643, 0
        %v731 = vsel %vm693, %v646, 0
        %v734 = vsel %vm693, %v647, 0
        %v737 = vsel %vm693, %v650, 0
        %v740 = vsel %vm693, %v651, 0
        %v743 = vsel %vm693, %v654, 0
        %v746 = vsel %vm693, %v655, 0
        %v749 = vsel %vm693, %v658, 0
        %v752 = vsel %vm693, %v659, 0
        %v755 = vsel %vm693, %v662, 0
        %v758 = vsel %vm693, %v663, 0
        %v761 = vsel %vm693, %v666, 0
        %v764 = vsel %vm693, %v667, 0
        %vm766 = vcmask 1043456
        %v768 = vsel %vm766, %v691, 0
        %v771 = vsel %vm766, %v692, 0
        %773 = vmatprep.subr.mxu0 %v686
        %774 = vmatpush1.msra.mxu0 %v685
        %775 = vmatprep.subr.mxu0 %v688
        %776 = vmatpush1.msra.mxu0 %v687
        %777 = vmatprep.subr.mxu0 %v690
        %778 = vmatpush1.msra.mxu0 %v689
        %779 = vmatprep.subr.mxu0 %v771
        %780 = vmatpush1.msra.mxu0 %v768
        %781 = vmatprep.subr.mxu0 0.0
        %782 = vmatpush1.msra.mxu0 0.0
        %783 = vmatprep.subr.mxu0 0.0
        %784 = vmatpush1.msra.mxu0 0.0
        %785 = vmatprep.subr.mxu0 0.0
        %786 = vmatpush1.msra.mxu0 0.0
        %787 = vmatprep.subr.mxu0 0.0
        %788 = vmatpush1.msra.mxu0 0.0
        %789 = vmatprep.subr.mxu0 0.0
        %790 = vmatpush1.msra.mxu0 0.0
        %791 = vmatprep.subr.mxu0 0.0
        %792 = vmatpush1.msra.mxu0 0.0
        %793 = vmatprep.subr.mxu0 0.0
        %794 = vmatpush1.msra.mxu0 0.0
        %795 = vmatprep.subr.mxu0 0.0
        %796 = vmatpush1.msra.mxu0 0.0
        %797 = vmatprep.subr.mxu0 0.0
        %798 = vmatpush1.msra.mxu0 0.0
        %799 = vmatprep.subr.mxu0 0.0
        %800 = vmatpush1.msra.mxu0 0.0
        %801 = vmatprep.subr.mxu0 0.0
        %802 = vmatpush1.msra.mxu0 0.0
        %803 = vmatprep.subr.mxu0 0.0
        %804 = vmatpush1.msra.mxu0 0.0
        %805 = vmatprep.subr.mxu0 0.0
        %806 = vmatpush1.msra.mxu0 0.0
        %807 = vmatprep.subr.mxu0 0.0
        %808 = vmatpush1.msra.mxu0 0.0
        %809 = vmatprep.subr.mxu0 0.0
        %810 = vmatpush1.msra.mxu0 0.0
        %811 = vmatprep.subr.mxu0 0.0
        %812 = vmatpush1.msra.mxu0 0.0
        %813 = vmatprep.subr.mxu0 0.0
        %814 = vmatpush1.msra.mxu0 0.0
        %815 = vmatprep.subr.mxu0 0.0
        %816 = vmatpush1.msra.mxu0 0.0
        %817 = vmatprep.subr.mxu0 0.0
        %818 = vmatpush1.msra.mxu0 0.0
        %819 = vmatprep.subr.mxu0 0.0
        %820 = vmatpush1.msra.mxu0 0.0
        %821 = vmatprep.subr.mxu0 0.0
        %822 = vmatpush1.msra.mxu0 0.0
        %823 = vmatprep.subr.mxu0 0.0
        %824 = vmatpush1.msra.mxu0 0.0
        %825 = vmatprep.subr.mxu0 0.0
        %826 = vmatpush1.msra.mxu0 0.0
        %827 = vmatprep.subr.mxu0 0.0
        %828 = vmatpush1.msra.mxu0 0.0
        %829 = vmatprep.subr.mxu0 0.0
        %830 = vmatpush1.msra.mxu0 0.0
        %831 = vmatprep.subr.mxu0 0.0
        %832 = vmatpush1.msra.mxu0 0.0
        %833 = vmatprep.subr.mxu0 0.0
        %834 = vmatpush1.msra.mxu0 0.0
        %835 = vmatprep.subr.mxu0 0.0
        %836 = vmatpush1.msra.mxu0 0.0
        %837 = vmatprep.mubr.f32.mxu0 0.0
        %838 = vmatmul.mubr.f32.gmra.mrb[0].mxu0 %v695
        %v839 = vpop.f32.mrb[0].mxu0
        %v840 = vadd.f32 0.0, %v839
        %v841 = vpop.f32.mrb[0].mxu0
        %v842 = vadd.f32 0.0, %v841
        %843 = vmatprep.mubr.f32.mxu0 0.0
        %844 = vmatmul.mubr.f32.gmra.mrb[0].mxu0 %v698
        %v845 = vpop.f32.mrb[0].mxu0
        %v846 = vadd.f32 0.0, %v845
        %v847 = vpop.f32.mrb[0].mxu0
        %v848 = vadd.f32 0.0, %v847
        %849 = vmatprep.mubr.f32.mxu0 0.0
        %850 = vmatmul.mubr.f32.gmra.mrb[0].mxu0 %v701
        %v851 = vpop.f32.mrb[0].mxu0
        %v852 = vadd.f32 0.0, %v851
        %v853 = vpop.f32.mrb[0].mxu0
        %v854 = vadd.f32 0.0, %v853
        %855 = vmatprep.mubr.f32.mxu0 0.0
        %856 = vmatmul.mubr.f32.gmra.mrb[0].mxu0 %v704
        %v857 = vpop.f32.mrb[0].mxu0
        %v858 = vadd.f32 0.0, %v857
        %v859 = vpop.f32.mrb[0].mxu0
        %v860 = vadd.f32 0.0, %v859
        %861 = vmatprep.mubr.f32.mxu0 0.0
        %862 = vmatmul.mubr.f32.gmra.mrb[0].mxu0 %v707
        %v863 = vpop.f32.mrb[0].mxu0
        %v864 = vadd.f32 0.0, %v863
        %v865 = vpop.f32.mrb[0].mxu0
        %v866 = vadd.f32 0.0, %v865
        %867 = vmatprep.mubr.f32.mxu0 0.0
        %868 = vmatmul.mubr.f32.gmra.mrb[0].mxu0 %v710
        %v869 = vpop.f32.mrb[0].mxu0
        %v870 = vadd.f32 0.0, %v869
        %v871 = vpop.f32.mrb[0].mxu0
        %v872 = vadd.f32 0.0, %v871
        %873 = vmatprep.mubr.f32.mxu0 0.0
        %874 = vmatmul.mubr.f32.gmra.mrb[0].mxu0 %v713
        %v875 = vpop.f32.mrb[0].mxu0
        %v876 = vadd.f32 0.0, %v875
        %v877 = vpop.f32.mrb[0].mxu0
        %v878 = vadd.f32 0.0, %v877
        %879 = vmatprep.mubr.f32.mxu0 0.0
        %880 = vmatmul.mubr.f32.gmra.mrb[0].mxu0 %v716
        %v881 = vpop.f32.mrb[0].mxu0
        %v882 = vadd.f32 0.0, %v881
        %v883 = vpop.f32.mrb[0].mxu0
        %v884 = vadd.f32 0.0, %v883
        %885 = vmatprep.mubr.f32.mxu0 0.0
        %886 = vmatmul.mubr.f32.gmra.mrb[0].mxu0 %v719
        %v887 = vpop.f32.mrb[0].mxu0
        %v888 = vadd.f32 0.0, %v887
        %v889 = vpop.f32.mrb[0].mxu0
        %v890 = vadd.f32 0.0, %v889
        %891 = vmatprep.mubr.f32.mxu0 0.0
        %892 = vmatmul.mubr.f32.gmra.mrb[0].mxu0 %v722
        %v893 = vpop.f32.mrb[0].mxu0
        %v894 = vadd.f32 0.0, %v893
        %v895 = vpop.f32.mrb[0].mxu0
        %v896 = vadd.f32 0.0, %v895
        %897 = vmatprep.mubr.f32.mxu0 0.0
        %898 = vmatmul.mubr.f32.gmra.mrb[0].mxu0 %v725
        %v899 = vpop.f32.mrb[0].mxu0
        %v900 = vadd.f32 0.0, %v899
        %v901 = vpop.f32.mrb[0].mxu0
        %v902 = vadd.f32 0.0, %v901
        %903 = vmatprep.mubr.f32.mxu0 0.0
        %904 = vmatmul.mubr.f32.gmra.mrb[0].mxu0 %v728
        %v905 = vpop.f32.mrb[0].mxu0
        %v906 = vadd.f32 0.0, %v905
        %v907 = vpop.f32.mrb[0].mxu0
        %v908 = vadd.f32 0.0, %v907
        %909 = vmatprep.mubr.f32.mxu0 0.0
        %910 = vmatmul.mubr.f32.gmra.mrb[0].mxu0 %v731
        %v911 = vpop.f32.mrb[0].mxu0
        %v912 = vadd.f32 0.0, %v911
        %v913 = vpop.f32.mrb[0].mxu0
        %v914 = vadd.f32 0.0, %v913
        %915 = vmatprep.mubr.f32.mxu0 0.0
        %916 = vmatmul.mubr.f32.gmra.mrb[0].mxu0 %v734
        %v917 = vpop.f32.mrb[0].mxu0
        %v918 = vadd.f32 0.0, %v917
        %v919 = vpop.f32.mrb[0].mxu0
        %v920 = vadd.f32 0.0, %v919
        %921 = vmatprep.mubr.f32.mxu0 0.0
        %922 = vmatmul.mubr.f32.gmra.mrb[0].mxu0 %v737
        %v923 = vpop.f32.mrb[0].mxu0
        %v924 = vadd.f32 0.0, %v923
        %v925 = vpop.f32.mrb[0].mxu0
        %v926 = vadd.f32 0.0, %v925
        %927 = vmatprep.mubr.f32.mxu0 0.0
        %928 = vmatmul.mubr.f32.gmra.mrb[0].mxu0 %v740
        %v929 = vpop.f32.mrb[0].mxu0
        %v930 = vadd.f32 0.0, %v929
        %v931 = vpop.f32.mrb[0].mxu0
        %v932 = vadd.f32 0.0, %v931
        %933 = vmatprep.mubr.f32.mxu0 0.0
        %934 = vmatmul.mubr.f32.gmra.mrb[0].mxu0 %v743
        %v935 = vpop.f32.mrb[0].mxu0
        %v936 = vadd.f32 0.0, %v935
        %v937 = vpop.f32.mrb[0].mxu0
        %v938 = vadd.f32 0.0, %v937
        %939 = vmatprep.mubr.f32.mxu0 0.0
        %940 = vmatmul.mubr.f32.gmra.mrb[0].mxu0 %v746
        %v941 = vpop.f32.mrb[0].mxu0
        %v942 = vadd.f32 0.0, %v941
        %v943 = vpop.f32.mrb[0].mxu0
        %v944 = vadd.f32 0.0, %v943
        %945 = vmatprep.mubr.f32.mxu0 0.0
        %946 = vmatmul.mubr.f32.gmra.mrb[0].mxu0 %v749
        %v947 = vpop.f32.mrb[0].mxu0
        %v948 = vadd.f32 0.0, %v947
        %v949 = vpop.f32.mrb[0].mxu0
        %v950 = vadd.f32 0.0, %v949
        %951 = vmatprep.mubr.f32.mxu0 0.0
        %952 = vmatmul.mubr.f32.gmra.mrb[0].mxu0 %v752
        %v953 = vpop.f32.mrb[0].mxu0
        %v954 = vadd.f32 0.0, %v953
        %v955 = vpop.f32.mrb[0].mxu0
        %v956 = vadd.f32 0.0, %v955
        %957 = vmatprep.mubr.f32.mxu0 0.0
        %958 = vmatmul.mubr.f32.gmra.mrb[0].mxu0 %v755
        %v959 = vpop.f32.mrb[0].mxu0
        %v960 = vadd.f32 0.0, %v959
        %v961 = vpop.f32.mrb[0].mxu0
        %v962 = vadd.f32 0.0, %v961
        %963 = vmatprep.mubr.f32.mxu0 0.0
        %964 = vmatmul.mubr.f32.gmra.mrb[0].mxu0 %v758
        %v965 = vpop.f32.mrb[0].mxu0
        %v966 = vadd.f32 0.0, %v965
        %v967 = vpop.f32.mrb[0].mxu0
        %v968 = vadd.f32 0.0, %v967
        %969 = vmatprep.mubr.f32.mxu0 0.0
        %970 = vmatmul.mubr.f32.gmra.mrb[0].mxu0 %v761
        %v971 = vpop.f32.mrb[0].mxu0
        %v972 = vadd.f32 0.0, %v971
        %v973 = vpop.f32.mrb[0].mxu0
        %v974 = vadd.f32 0.0, %v973
        %975 = vmatprep.mubr.f32.mxu0 0.0
        %976 = vmatmul.mubr.f32.gmra.mrb[0].mxu0 %v764
        %v977 = vpop.f32.mrb[0].mxu0
        %v978 = vadd.f32 0.0, %v977
        %v979 = vpop.f32.mrb[0].mxu0
        %v980 = vadd.f32 0.0, %v979
        %981 = vdwg.mxu0
        %v983 = vsel %vm693, %v620, 0
        %v986 = vsel %vm693, %v621, 0
        %v989 = vsel %vm693, %v624, 0
        %v992 = vsel %vm693, %v625, 0
        %v995 = vsel %vm693, %v628, 0
        %v998 = vsel %vm693, %v629, 0
        %v1001 = vsel %vm693, %v632, 0
        %v1004 = vsel %vm693, %v633, 0
        %v1007 = vsel %vm693, %v636, 0
        %v1010 = vsel %vm693, %v637, 0
        %v1013 = vsel %vm693, %v640, 0
        %v1016 = vsel %vm693, %v641, 0
        %v1019 = vsel %vm693, %v644, 0
        %v1022 = vsel %vm693, %v645, 0
        %v1025 = vsel %vm693, %v648, 0
        %v1028 = vsel %vm693, %v649, 0
        %v1031 = vsel %vm693, %v652, 0
        %v1034 = vsel %vm693, %v653, 0
        %v1037 = vsel %vm693, %v656, 0
        %v1040 = vsel %vm693, %v657, 0
        %v1043 = vsel %vm693, %v660, 0
        %v1046 = vsel %vm693, %v661, 0
        %v1049 = vsel %vm693, %v664, 0
        %v1052 = vsel %vm693, %v665, 0
        %v1055 = vsel %vm766, %v682, 0
        %v1058 = vsel %vm766, %v683, 0
        %1060 = vmatprep.subr.mxu0 %v677
        %1061 = vmatpush1.msra.mxu0 %v676
        %1062 = vmatprep.subr.mxu0 %v679
        %1063 = vmatpush1.msra.mxu0 %v678
        %1064 = vmatprep.subr.mxu0 %v681
        %1065 = vmatpush1.msra.mxu0 %v680
        %1066 = vmatprep.subr.mxu0 %v1058
        %1067 = vmatpush1.msra.mxu0 %v1055
        %1068 = vmatprep.subr.mxu0 0.0
        %1069 = vmatpush1.msra.mxu0 0.0
        %1070 = vmatprep.subr.mxu0 0.0
        %1071 = vmatpush1.msra.mxu0 0.0
        %1072 = vmatprep.subr.mxu0 0.0
        %1073 = vmatpush1.msra.mxu0 0.0
        %1074 = vmatprep.subr.mxu0 0.0
        %1075 = vmatpush1.msra.mxu0 0.0
        %1076 = vmatprep.subr.mxu0 0.0
        %1077 = vmatpush1.msra.mxu0 0.0
        %1078 = vmatprep.subr.mxu0 0.0
        %1079 = vmatpush1.msra.mxu0 0.0
        %1080 = vmatprep.subr.mxu0 0.0
        %1081 = vmatpush1.msra.mxu0 0.0
        %1082 = vmatprep.subr.mxu0 0.0
        %1083 = vmatpush1.msra.mxu0 0.0
        %1084 = vmatprep.subr.mxu0 0.0
        %1085 = vmatpush1.msra.mxu0 0.0
        %1086 = vmatprep.subr.mxu0 0.0
        %1087 = vmatpush1.msra.mxu0 0.0
        %1088 = vmatprep.subr.mxu0 0.0
        %1089 = vmatpush1.msra.mxu0 0.0
        %1090 = vmatprep.subr.mxu0 0.0
        %1091 = vmatpush1.msra.mxu0 0.0
        %1092 = vmatprep.subr.mxu0 0.0
        %1093 = vmatpush1.msra.mxu0 0.0
        %1094 = vmatprep.subr.mxu0 0.0
        %1095 = vmatpush1.msra.mxu0 0.0
        %1096 = vmatprep.subr.mxu0 0.0
        %1097 = vmatpush1.msra.mxu0 0.0
        %1098 = vmatprep.subr.mxu0 0.0
        %1099 = vmatpush1.msra.mxu0 0.0
        %1100 = vmatprep.subr.mxu0 0.0
        %1101 = vmatpush1.msra.mxu0 0.0
        %1102 = vmatprep.subr.mxu0 0.0
        %1103 = vmatpush1.msra.mxu0 0.0
        %1104 = vmatprep.subr.mxu0 0.0
        %1105 = vmatpush1.msra.mxu0 0.0
        %1106 = vmatprep.subr.mxu0 0.0
        %1107 = vmatpush1.msra.mxu0 0.0
        %1108 = vmatprep.subr.mxu0 0.0
        %1109 = vmatpush1.msra.mxu0 0.0
        %1110 = vmatprep.subr.mxu0 0.0
        %1111 = vmatpush1.msra.mxu0 0.0
        %1112 = vmatprep.subr.mxu0 0.0
        %1113 = vmatpush1.msra.mxu0 0.0
        %1114 = vmatprep.subr.mxu0 0.0
        %1115 = vmatpush1.msra.mxu0 0.0
        %1116 = vmatprep.subr.mxu0 0.0
        %1117 = vmatpush1.msra.mxu0 0.0
        %1118 = vmatprep.subr.mxu0 0.0
        %1119 = vmatpush1.msra.mxu0 0.0
        %1120 = vmatprep.subr.mxu0 0.0
        %1121 = vmatpush1.msra.mxu0 0.0
        %1122 = vmatprep.subr.mxu0 0.0
        %1123 = vmatpush1.msra.mxu0 0.0
        %1124 = vmatprep.mubr.f32.mxu0 0.0
        %1125 = vmatmul.mubr.f32.gmra.mrb[0].mxu0 %v983
        %v1126 = vpop.f32.mrb[0].mxu0
        %v1127 = vadd.f32 %v840, %v1126
        %v1128 = vpop.f32.mrb[0].mxu0
        %v1129 = vadd.f32 %v842, %v1128
        %1130 = vmatprep.mubr.f32.mxu0 0.0
        %1131 = vmatmul.mubr.f32.gmra.mrb[0].mxu0 %v986
        %v1132 = vpop.f32.mrb[0].mxu0
        %v1133 = vadd.f32 %v846, %v1132
        %v1134 = vpop.f32.mrb[0].mxu0
        %v1135 = vadd.f32 %v848, %v1134
        %1136 = vmatprep.mubr.f32.mxu0 0.0
        %1137 = vmatmul.mubr.f32.gmra.mrb[0].mxu0 %v989
        %v1138 = vpop.f32.mrb[0].mxu0
        %v1139 = vadd.f32 %v852, %v1138
        %v1140 = vpop.f32.mrb[0].mxu0
        %v1141 = vadd.f32 %v854, %v1140
        %1142 = vmatprep.mubr.f32.mxu0 0.0
        %1143 = vmatmul.mubr.f32.gmra.mrb[0].mxu0 %v992
        %v1144 = vpop.f32.mrb[0].mxu0
        %v1145 = vadd.f32 %v858, %v1144
        %v1146 = vpop.f32.mrb[0].mxu0
        %v1147 = vadd.f32 %v860, %v1146
        %1148 = vmatprep.mubr.f32.mxu0 0.0
        %1149 = vmatmul.mubr.f32.gmra.mrb[0].mxu0 %v995
        %v1150 = vpop.f32.mrb[0].mxu0
        %v1151 = vadd.f32 %v864, %v1150
        %v1152 = vpop.f32.mrb[0].mxu0
        %v1153 = vadd.f32 %v866, %v1152
        %1154 = vmatprep.mubr.f32.mxu0 0.0
        %1155 = vmatmul.mubr.f32.gmra.mrb[0].mxu0 %v998
        %v1156 = vpop.f32.mrb[0].mxu0
        %v1157 = vadd.f32 %v870, %v1156
        %v1158 = vpop.f32.mrb[0].mxu0
        %v1159 = vadd.f32 %v872, %v1158
        %1160 = vmatprep.mubr.f32.mxu0 0.0
        %1161 = vmatmul.mubr.f32.gmra.mrb[0].mxu0 %v1001
        %v1162 = vpop.f32.mrb[0].mxu0
        %v1163 = vadd.f32 %v876, %v1162
        %v1164 = vpop.f32.mrb[0].mxu0
        %v1165 = vadd.f32 %v878, %v1164
        %1166 = vmatprep.mubr.f32.mxu0 0.0
        %1167 = vmatmul.mubr.f32.gmra.mrb[0].mxu0 %v1004
        %v1168 = vpop.f32.mrb[0].mxu0
        %v1169 = vadd.f32 %v882, %v1168
        %v1170 = vpop.f32.mrb[0].mxu0
        %v1171 = vadd.f32 %v884, %v1170
        %1172 = vmatprep.mubr.f32.mxu0 0.0
        %1173 = vmatmul.mubr.f32.gmra.mrb[0].mxu0 %v1007
        %v1174 = vpop.f32.mrb[0].mxu0
        %v1175 = vadd.f32 %v888, %v1174
        %v1176 = vpop.f32.mrb[0].mxu0
        %v1177 = vadd.f32 %v890, %v1176
        %1178 = vmatprep.mubr.f32.mxu0 0.0
        %1179 = vmatmul.mubr.f32.gmra.mrb[0].mxu0 %v1010
        %v1180 = vpop.f32.mrb[0].mxu0
        %v1181 = vadd.f32 %v894, %v1180
        %v1182 = vpop.f32.mrb[0].mxu0
        %v1183 = vadd.f32 %v896, %v1182
        %1184 = vmatprep.mubr.f32.mxu0 0.0
        %1185 = vmatmul.mubr.f32.gmra.mrb[0].mxu0 %v1013
        %v1186 = vpop.f32.mrb[0].mxu0
        %v1187 = vadd.f32 %v900, %v1186
        %v1188 = vpop.f32.mrb[0].mxu0
        %v1189 = vadd.f32 %v902, %v1188
        %1190 = vmatprep.mubr.f32.mxu0 0.0
        %1191 = vmatmul.mubr.f32.gmra.mrb[0].mxu0 %v1016
        %v1192 = vpop.f32.mrb[0].mxu0
        %v1193 = vadd.f32 %v906, %v1192
        %v1194 = vpop.f32.mrb[0].mxu0
        %v1195 = vadd.f32 %v908, %v1194
        %1196 = vmatprep.mubr.f32.mxu0 0.0
        %1197 = vmatmul.mubr.f32.gmra.mrb[0].mxu0 %v1019
        %v1198 = vpop.f32.mrb[0].mxu0
        %v1199 = vadd.f32 %v912, %v1198
        %v1200 = vpop.f32.mrb[0].mxu0
        %v1201 = vadd.f32 %v914, %v1200
        %1202 = vmatprep.mubr.f32.mxu0 0.0
        %1203 = vmatmul.mubr.f32.gmra.mrb[0].mxu0 %v1022
        %v1204 = vpop.f32.mrb[0].mxu0
        %v1205 = vadd.f32 %v918, %v1204
        %v1206 = vpop.f32.mrb[0].mxu0
        %v1207 = vadd.f32 %v920, %v1206
        %1208 = vmatprep.mubr.f32.mxu0 0.0
        %1209 = vmatmul.mubr.f32.gmra.mrb[0].mxu0 %v1025
        %v1210 = vpop.f32.mrb[0].mxu0
        %v1211 = vadd.f32 %v924, %v1210
        %v1212 = vpop.f32.mrb[0].mxu0
        %v1213 = vadd.f32 %v926, %v1212
        %1214 = vmatprep.mubr.f32.mxu0 0.0
        %1215 = vmatmul.mubr.f32.gmra.mrb[0].mxu0 %v1028
        %v1216 = vpop.f32.mrb[0].mxu0
        %v1217 = vadd.f32 %v930, %v1216
        %v1218 = vpop.f32.mrb[0].mxu0
        %v1219 = vadd.f32 %v932, %v1218
        %1220 = vmatprep.mubr.f32.mxu0 0.0
        %1221 = vmatmul.mubr.f32.gmra.mrb[0].mxu0 %v1031
        %v1222 = vpop.f32.mrb[0].mxu0
        %v1223 = vadd.f32 %v936, %v1222
        %v1224 = vpop.f32.mrb[0].mxu0
        %v1225 = vadd.f32 %v938, %v1224
        %1226 = vmatprep.mubr.f32.mxu0 0.0
        %1227 = vmatmul.mubr.f32.gmra.mrb[0].mxu0 %v1034
        %v1228 = vpop.f32.mrb[0].mxu0
        %v1229 = vadd.f32 %v942, %v1228
        %v1230 = vpop.f32.mrb[0].mxu0
        %v1231 = vadd.f32 %v944, %v1230
        %1232 = vmatprep.mubr.f32.mxu0 0.0
        %1233 = vmatmul.mubr.f32.gmra.mrb[0].mxu0 %v1037
        %v1234 = vpop.f32.mrb[0].mxu0
        %v1235 = vadd.f32 %v948, %v1234
        %v1236 = vpop.f32.mrb[0].mxu0
        %v1237 = vadd.f32 %v950, %v1236
        %1238 = vmatprep.mubr.f32.mxu0 0.0
        %1239 = vmatmul.mubr.f32.gmra.mrb[0].mxu0 %v1040
        %v1240 = vpop.f32.mrb[0].mxu0
        %v1241 = vadd.f32 %v954, %v1240
        %v1242 = vpop.f32.mrb[0].mxu0
        %v1243 = vadd.f32 %v956, %v1242
        %1244 = vmatprep.mubr.f32.mxu0 0.0
        %1245 = vmatmul.mubr.f32.gmra.mrb[0].mxu0 %v1043
        %v1246 = vpop.f32.mrb[0].mxu0
        %v1247 = vadd.f32 %v960, %v1246
        %v1248 = vpop.f32.mrb[0].mxu0
        %v1249 = vadd.f32 %v962, %v1248
        %1250 = vmatprep.mubr.f32.mxu0 0.0
        %1251 = vmatmul.mubr.f32.gmra.mrb[0].mxu0 %v1046
        %v1252 = vpop.f32.mrb[0].mxu0
        %v1253 = vadd.f32 %v966, %v1252
        %v1254 = vpop.f32.mrb[0].mxu0
        %v1255 = vadd.f32 %v968, %v1254
        %1256 = vmatprep.mubr.f32.mxu0 0.0
        %1257 = vmatmul.mubr.f32.gmra.mrb[0].mxu0 %v1049
        %v1258 = vpop.f32.mrb[0].mxu0
        %v1259 = vadd.f32 %v972, %v1258
        %v1260 = vpop.f32.mrb[0].mxu0
        %v1261 = vadd.f32 %v974, %v1260
        %1262 = vmatprep.mubr.f32.mxu0 0.0
        %1263 = vmatmul.mubr.f32.gmra.mrb[0].mxu0 %v1052
        %v1264 = vpop.f32.mrb[0].mxu0
        %v1265 = vadd.f32 %v978, %v1264
        %v1266 = vpop.f32.mrb[0].mxu0
        %v1267 = vadd.f32 %v980, %v1266
        %1268 = vdwg.mxu0
        %v1270 = vsel %vm693, %v668, 0
        %v1273 = vsel %vm693, %v669, 0
        %1275 = vmatprep.subr.mxu0 %v686
        %1276 = vmatpush1.msra.mxu0 %v685
        %1277 = vmatprep.subr.mxu0 %v688
        %1278 = vmatpush1.msra.mxu0 %v687
        %1279 = vmatprep.subr.mxu0 %v690
        %1280 = vmatpush1.msra.mxu0 %v689
        %1281 = vmatprep.subr.mxu0 %v771
        %1282 = vmatpush1.msra.mxu0 %v768
        %1283 = vmatprep.subr.mxu0 0.0
        %1284 = vmatpush1.msra.mxu0 0.0
        %1285 = vmatprep.subr.mxu0 0.0
        %1286 = vmatpush1.msra.mxu0 0.0
        %1287 = vmatprep.subr.mxu0 0.0
        %1288 = vmatpush1.msra.mxu0 0.0
        %1289 = vmatprep.subr.mxu0 0.0
        %1290 = vmatpush1.msra.mxu0 0.0
        %1291 = vmatprep.subr.mxu0 0.0
        %1292 = vmatpush1.msra.mxu0 0.0
        %1293 = vmatprep.subr.mxu0 0.0
        %1294 = vmatpush1.msra.mxu0 0.0
        %1295 = vmatprep.subr.mxu0 0.0
        %1296 = vmatpush1.msra.mxu0 0.0
        %1297 = vmatprep.subr.mxu0 0.0
        %1298 = vmatpush1.msra.mxu0 0.0
        %1299 = vmatprep.subr.mxu0 0.0
        %1300 = vmatpush1.msra.mxu0 0.0
        %1301 = vmatprep.subr.mxu0 0.0
        %1302 = vmatpush1.msra.mxu0 0.0
        %1303 = vmatprep.subr.mxu0 0.0
        %1304 = vmatpush1.msra.mxu0 0.0
        %1305 = vmatprep.subr.mxu0 0.0
        %1306 = vmatpush1.msra.mxu0 0.0
        %1307 = vmatprep.subr.mxu0 0.0
        %1308 = vmatpush1.msra.mxu0 0.0
        %1309 = vmatprep.subr.mxu0 0.0
        %1310 = vmatpush1.msra.mxu0 0.0
        %1311 = vmatprep.subr.mxu0 0.0
        %1312 = vmatpush1.msra.mxu0 0.0
        %1313 = vmatprep.subr.mxu0 0.0
        %1314 = vmatpush1.msra.mxu0 0.0
        %1315 = vmatprep.subr.mxu0 0.0
        %1316 = vmatpush1.msra.mxu0 0.0
        %1317 = vmatprep.subr.mxu0 0.0
        %1318 = vmatpush1.msra.mxu0 0.0
        %1319 = vmatprep.subr.mxu0 0.0
        %1320 = vmatpush1.msra.mxu0 0.0
        %1321 = vmatprep.subr.mxu0 0.0
        %1322 = vmatpush1.msra.mxu0 0.0
        %1323 = vmatprep.subr.mxu0 0.0
        %1324 = vmatpush1.msra.mxu0 0.0
        %1325 = vmatprep.subr.mxu0 0.0
        %1326 = vmatpush1.msra.mxu0 0.0
        %1327 = vmatprep.subr.mxu0 0.0
        %1328 = vmatpush1.msra.mxu0 0.0
        %1329 = vmatprep.subr.mxu0 0.0
        %1330 = vmatpush1.msra.mxu0 0.0
        %1331 = vmatprep.subr.mxu0 0.0
        %1332 = vmatpush1.msra.mxu0 0.0
        %1333 = vmatprep.subr.mxu0 0.0
        %1334 = vmatpush1.msra.mxu0 0.0
        %1335 = vmatprep.subr.mxu0 0.0
        %1336 = vmatpush1.msra.mxu0 0.0
        %1337 = vmatprep.subr.mxu0 0.0
        %1338 = vmatpush1.msra.mxu0 0.0
        %1339 = vmatprep.mubr.f32.mxu0 0.0
        %1340 = vmatmul.mubr.f32.gmra.mrb[0].mxu0 %v989
        %v1341 = vpop.f32.mrb[0].mxu0
        %v1342 = vadd.f32 0.0, %v1341
        %v1343 = vpop.f32.mrb[0].mxu0
        %v1344 = vadd.f32 0.0, %v1343
        %1345 = vmatprep.mubr.f32.mxu0 0.0
        %1346 = vmatmul.mubr.f32.gmra.mrb[0].mxu0 %v992
        %v1347 = vpop.f32.mrb[0].mxu0
        %v1348 = vadd.f32 0.0, %v1347
        %v1349 = vpop.f32.mrb[0].mxu0
        %v1350 = vadd.f32 0.0, %v1349
        %1351 = vmatprep.mubr.f32.mxu0 0.0
        %1352 = vmatmul.mubr.f32.gmra.mrb[0].mxu0 %v995
        %v1353 = vpop.f32.mrb[0].mxu0
        %v1354 = vadd.f32 0.0, %v1353
        %v1355 = vpop.f32.mrb[0].mxu0
        %v1356 = vadd.f32 0.0, %v1355
        %1357 = vmatprep.mubr.f32.mxu0 0.0
        %1358 = vmatmul.mubr.f32.gmra.mrb[0].mxu0 %v998
        %v1359 = vpop.f32.mrb[0].mxu0
        %v1360 = vadd.f32 0.0, %v1359
        %v1361 = vpop.f32.mrb[0].mxu0
        %v1362 = vadd.f32 0.0, %v1361
        %1363 = vmatprep.mubr.f32.mxu0 0.0
        %1364 = vmatmul.mubr.f32.gmra.mrb[0].mxu0 %v1001
        %v1365 = vpop.f32.mrb[0].mxu0
        %v1366 = vadd.f32 0.0, %v1365
        %v1367 = vpop.f32.mrb[0].mxu0
        %v1368 = vadd.f32 0.0, %v1367
        %1369 = vmatprep.mubr.f32.mxu0 0.0
        %1370 = vmatmul.mubr.f32.gmra.mrb[0].mxu0 %v1004
        %v1371 = vpop.f32.mrb[0].mxu0
        %v1372 = vadd.f32 0.0, %v1371
        %v1373 = vpop.f32.mrb[0].mxu0
        %v1374 = vadd.f32 0.0, %v1373
        %1375 = vmatprep.mubr.f32.mxu0 0.0
        %1376 = vmatmul.mubr.f32.gmra.mrb[0].mxu0 %v1007
        %v1377 = vpop.f32.mrb[0].mxu0
        %v1378 = vadd.f32 0.0, %v1377
        %v1379 = vpop.f32.mrb[0].mxu0
        %v1380 = vadd.f32 0.0, %v1379
        %1381 = vmatprep.mubr.f32.mxu0 0.0
        %1382 = vmatmul.mubr.f32.gmra.mrb[0].mxu0 %v1010
        %v1383 = vpop.f32.mrb[0].mxu0
        %v1384 = vadd.f32 0.0, %v1383
        %v1385 = vpop.f32.mrb[0].mxu0
        %v1386 = vadd.f32 0.0, %v1385
        %1387 = vmatprep.mubr.f32.mxu0 0.0
        %1388 = vmatmul.mubr.f32.gmra.mrb[0].mxu0 %v1013
        %v1389 = vpop.f32.mrb[0].mxu0
        %v1390 = vadd.f32 0.0, %v1389
        %v1391 = vpop.f32.mrb[0].mxu0
        %v1392 = vadd.f32 0.0, %v1391
        %1393 = vmatprep.mubr.f32.mxu0 0.0
        %1394 = vmatmul.mubr.f32.gmra.mrb[0].mxu0 %v1016
        %v1395 = vpop.f32.mrb[0].mxu0
        %v1396 = vadd.f32 0.0, %v1395
        %v1397 = vpop.f32.mrb[0].mxu0
        %v1398 = vadd.f32 0.0, %v1397
        %1399 = vmatprep.mubr.f32.mxu0 0.0
        %1400 = vmatmul.mubr.f32.gmra.mrb[0].mxu0 %v1019
        %v1401 = vpop.f32.mrb[0].mxu0
        %v1402 = vadd.f32 0.0, %v1401
        %v1403 = vpop.f32.mrb[0].mxu0
        %v1404 = vadd.f32 0.0, %v1403
        %1405 = vmatprep.mubr.f32.mxu0 0.0
        %1406 = vmatmul.mubr.f32.gmra.mrb[0].mxu0 %v1022
        %v1407 = vpop.f32.mrb[0].mxu0
        %v1408 = vadd.f32 0.0, %v1407
        %v1409 = vpop.f32.mrb[0].mxu0
        %v1410 = vadd.f32 0.0, %v1409
        %1411 = vmatprep.mubr.f32.mxu0 0.0
        %1412 = vmatmul.mubr.f32.gmra.mrb[0].mxu0 %v1025
        %v1413 = vpop.f32.mrb[0].mxu0
        %v1414 = vadd.f32 0.0, %v1413
        %v1415 = vpop.f32.mrb[0].mxu0
        %v1416 = vadd.f32 0.0, %v1415
        %1417 = vmatprep.mubr.f32.mxu0 0.0
        %1418 = vmatmul.mubr.f32.gmra.mrb[0].mxu0 %v1028
        %v1419 = vpop.f32.mrb[0].mxu0
        %v1420 = vadd.f32 0.0, %v1419
        %v1421 = vpop.f32.mrb[0].mxu0
        %v1422 = vadd.f32 0.0, %v1421
        %1423 = vmatprep.mubr.f32.mxu0 0.0
        %1424 = vmatmul.mubr.f32.gmra.mrb[0].mxu0 %v1031
        %v1425 = vpop.f32.mrb[0].mxu0
        %v1426 = vadd.f32 0.0, %v1425
        %v1427 = vpop.f32.mrb[0].mxu0
        %v1428 = vadd.f32 0.0, %v1427
        %1429 = vmatprep.mubr.f32.mxu0 0.0
        %1430 = vmatmul.mubr.f32.gmra.mrb[0].mxu0 %v1034
        %v1431 = vpop.f32.mrb[0].mxu0
        %v1432 = vadd.f32 0.0, %v1431
        %v1433 = vpop.f32.mrb[0].mxu0
        %v1434 = vadd.f32 0.0, %v1433
        %1435 = vmatprep.mubr.f32.mxu0 0.0
        %1436 = vmatmul.mubr.f32.gmra.mrb[0].mxu0 %v1037
        %v1437 = vpop.f32.mrb[0].mxu0
        %v1438 = vadd.f32 0.0, %v1437
        %v1439 = vpop.f32.mrb[0].mxu0
        %v1440 = vadd.f32 0.0, %v1439
        %1441 = vmatprep.mubr.f32.mxu0 0.0
        %1442 = vmatmul.mubr.f32.gmra.mrb[0].mxu0 %v1040
        %v1443 = vpop.f32.mrb[0].mxu0
        %v1444 = vadd.f32 0.0, %v1443
        %v1445 = vpop.f32.mrb[0].mxu0
        %v1446 = vadd.f32 0.0, %v1445
        %1447 = vmatprep.mubr.f32.mxu0 0.0
        %1448 = vmatmul.mubr.f32.gmra.mrb[0].mxu0 %v1043
        %v1449 = vpop.f32.mrb[0].mxu0
        %v1450 = vadd.f32 0.0, %v1449
        %v1451 = vpop.f32.mrb[0].mxu0
        %v1452 = vadd.f32 0.0, %v1451
        %1453 = vmatprep.mubr.f32.mxu0 0.0
        %1454 = vmatmul.mubr.f32.gmra.mrb[0].mxu0 %v1046
        %v1455 = vpop.f32.mrb[0].mxu0
        %v1456 = vadd.f32 0.0, %v1455
        %v1457 = vpop.f32.mrb[0].mxu0
        %v1458 = vadd.f32 0.0, %v1457
        %1459 = vmatprep.mubr.f32.mxu0 0.0
        %1460 = vmatmul.mubr.f32.gmra.mrb[0].mxu0 %v1049
        %v1461 = vpop.f32.mrb[0].mxu0
        %v1462 = vadd.f32 0.0, %v1461
        %v1463 = vpop.f32.mrb[0].mxu0
        %v1464 = vadd.f32 0.0, %v1463
        %1465 = vmatprep.mubr.f32.mxu0 0.0
        %1466 = vmatmul.mubr.f32.gmra.mrb[0].mxu0 %v1052
        %v1467 = vpop.f32.mrb[0].mxu0
        %v1468 = vadd.f32 0.0, %v1467
        %v1469 = vpop.f32.mrb[0].mxu0
        %v1470 = vadd.f32 0.0, %v1469
        %1471 = vmatprep.mubr.f32.mxu0 0.0
        %1472 = vmatmul.mubr.f32.gmra.mrb[0].mxu0 %v1270
        %v1473 = vpop.f32.mrb[0].mxu0
        %v1474 = vadd.f32 0.0, %v1473
        %v1475 = vpop.f32.mrb[0].mxu0
        %v1476 = vadd.f32 0.0, %v1475
        %1477 = vmatprep.mubr.f32.mxu0 0.0
        %1478 = vmatmul.mubr.f32.gmra.mrb[0].mxu0 %v1273
        %v1479 = vpop.f32.mrb[0].mxu0
        %v1480 = vadd.f32 0.0, %v1479
        %v1481 = vpop.f32.mrb[0].mxu0
        %v1482 = vadd.f32 0.0, %v1481
        %1483 = vdwg.mxu0
        %1484 = vmatprep.subr.mxu0 %v677
        %1485 = vmatpush1.msra.mxu0 %v676
        %1486 = vmatprep.subr.mxu0 %v679
        %1487 = vmatpush1.msra.mxu0 %v678
        %1488 = vmatprep.subr.mxu0 %v681
        %1489 = vmatpush1.msra.mxu0 %v680
        %1490 = vmatprep.subr.mxu0 %v1058
        %1491 = vmatpush1.msra.mxu0 %v1055
        %1492 = vmatprep.subr.mxu0 0.0
        %1493 = vmatpush1.msra.mxu0 0.0
        %1494 = vmatprep.subr.mxu0 0.0
        %1495 = vmatpush1.msra.mxu0 0.0
        %1496 = vmatprep.subr.mxu0 0.0
        %1497 = vmatpush1.msra.mxu0 0.0
        %1498 = vmatprep.subr.mxu0 0.0
        %1499 = vmatpush1.msra.mxu0 0.0
        %1500 = vmatprep.subr.mxu0 0.0
        %1501 = vmatpush1.msra.mxu0 0.0
        %1502 = vmatprep.subr.mxu0 0.0
        %1503 = vmatpush1.msra.mxu0 0.0
        %1504 = vmatprep.subr.mxu0 0.0
        %1505 = vmatpush1.msra.mxu0 0.0
        %1506 = vmatprep.subr.mxu0 0.0
        %1507 = vmatpush1.msra.mxu0 0.0
        %1508 = vmatprep.subr.mxu0 0.0
        %1509 = vmatpush1.msra.mxu0 0.0
        %1510 = vmatprep.subr.mxu0 0.0
        %1511 = vmatpush1.msra.mxu0 0.0
        %1512 = vmatprep.subr.mxu0 0.0
        %1513 = vmatpush1.msra.mxu0 0.0
        %1514 = vmatprep.subr.mxu0 0.0
        %1515 = vmatpush1.msra.mxu0 0.0
        %1516 = vmatprep.subr.mxu0 0.0
        %1517 = vmatpush1.msra.mxu0 0.0
        %1518 = vmatprep.subr.mxu0 0.0
        %1519 = vmatpush1.msra.mxu0 0.0
        %1520 = vmatprep.subr.mxu0 0.0
        %1521 = vmatpush1.msra.mxu0 0.0
        %1522 = vmatprep.subr.mxu0 0.0
        %1523 = vmatpush1.msra.mxu0 0.0
        %1524 = vmatprep.subr.mxu0 0.0
        %1525 = vmatpush1.msra.mxu0 0.0
        %1526 = vmatprep.subr.mxu0 0.0
        %1527 = vmatpush1.msra.mxu0 0.0
        %1528 = vmatprep.subr.mxu0 0.0
        %1529 = vmatpush1.msra.mxu0 0.0
        %1530 = vmatprep.subr.mxu0 0.0
        %1531 = vmatpush1.msra.mxu0 0.0
        %1532 = vmatprep.subr.mxu0 0.0
        %1533 = vmatpush1.msra.mxu0 0.0
        %1534 = vmatprep.subr.mxu0 0.0
        %1535 = vmatpush1.msra.mxu0 0.0
        %1536 = vmatprep.subr.mxu0 0.0
        %1537 = vmatpush1.msra.mxu0 0.0
        %1538 = vmatprep.subr.mxu0 0.0
        %1539 = vmatpush1.msra.mxu0 0.0
        %1540 = vmatprep.subr.mxu0 0.0
        %1541 = vmatpush1.msra.mxu0 0.0
        %1542 = vmatprep.subr.mxu0 0.0
        %1543 = vmatpush1.msra.mxu0 0.0
        %1544 = vmatprep.subr.mxu0 0.0
        %1545 = vmatpush1.msra.mxu0 0.0
        %1546 = vmatprep.subr.mxu0 0.0
        %1547 = vmatpush1.msra.mxu0 0.0
        %1548 = vmatprep.mubr.f32.mxu0 0.0
        %1549 = vmatmul.mubr.f32.gmra.mrb[0].mxu0 %v695
        %v1550 = vpop.f32.mrb[0].mxu0
        %v1551 = vadd.f32 %v1342, %v1550
        %v1552 = vpop.f32.mrb[0].mxu0
        %v1553 = vadd.f32 %v1344, %v1552
        %1554 = vmatprep.mubr.f32.mxu0 0.0
        %1555 = vmatmul.mubr.f32.gmra.mrb[0].mxu0 %v698
        %v1556 = vpop.f32.mrb[0].mxu0
        %v1557 = vadd.f32 %v1348, %v1556
        %v1558 = vpop.f32.mrb[0].mxu0
        %v1559 = vadd.f32 %v1350, %v1558
        %1560 = vmatprep.mubr.f32.mxu0 0.0
        %1561 = vmatmul.mubr.f32.gmra.mrb[0].mxu0 %v701
        %v1562 = vpop.f32.mrb[0].mxu0
        %v1563 = vadd.f32 %v1354, %v1562
        %v1564 = vpop.f32.mrb[0].mxu0
        %v1565 = vadd.f32 %v1356, %v1564
        %1566 = vmatprep.mubr.f32.mxu0 0.0
        %1567 = vmatmul.mubr.f32.gmra.mrb[0].mxu0 %v704
        %v1568 = vpop.f32.mrb[0].mxu0
        %v1569 = vadd.f32 %v1360, %v1568
        %v1570 = vpop.f32.mrb[0].mxu0
        %v1571 = vadd.f32 %v1362, %v1570
        %1572 = vmatprep.mubr.f32.mxu0 0.0
        %1573 = vmatmul.mubr.f32.gmra.mrb[0].mxu0 %v707
        %v1574 = vpop.f32.mrb[0].mxu0
        %v1575 = vadd.f32 %v1366, %v1574
        %v1576 = vpop.f32.mrb[0].mxu0
        %v1577 = vadd.f32 %v1368, %v1576
        %1578 = vmatprep.mubr.f32.mxu0 0.0
        %1579 = vmatmul.mubr.f32.gmra.mrb[0].mxu0 %v710
        %v1580 = vpop.f32.mrb[0].mxu0
        %v1581 = vadd.f32 %v1372, %v1580
        %v1582 = vpop.f32.mrb[0].mxu0
        %v1583 = vadd.f32 %v1374, %v1582
        %1584 = vmatprep.mubr.f32.mxu0 0.0
        %1585 = vmatmul.mubr.f32.gmra.mrb[0].mxu0 %v713
        %v1586 = vpop.f32.mrb[0].mxu0
        %v1587 = vadd.f32 %v1378, %v1586
        %v1588 = vpop.f32.mrb[0].mxu0
        %v1589 = vadd.f32 %v1380, %v1588
        %1590 = vmatprep.mubr.f32.mxu0 0.0
        %1591 = vmatmul.mubr.f32.gmra.mrb[0].mxu0 %v716
        %v1592 = vpop.f32.mrb[0].mxu0
        %v1593 = vadd.f32 %v1384, %v1592
        %v1594 = vpop.f32.mrb[0].mxu0
        %v1595 = vadd.f32 %v1386, %v1594
        %1596 = vmatprep.mubr.f32.mxu0 0.0
        %1597 = vmatmul.mubr.f32.gmra.mrb[0].mxu0 %v719
        %v1598 = vpop.f32.mrb[0].mxu0
        %v1599 = vadd.f32 %v1390, %v1598
        %v1600 = vpop.f32.mrb[0].mxu0
        %v1601 = vadd.f32 %v1392, %v1600
        %1602 = vmatprep.mubr.f32.mxu0 0.0
        %1603 = vmatmul.mubr.f32.gmra.mrb[0].mxu0 %v722
        %v1604 = vpop.f32.mrb[0].mxu0
        %v1605 = vadd.f32 %v1396, %v1604
        %v1606 = vpop.f32.mrb[0].mxu0
        %v1607 = vadd.f32 %v1398, %v1606
        %1608 = vmatprep.mubr.f32.mxu0 0.0
        %1609 = vmatmul.mubr.f32.gmra.mrb[0].mxu0 %v725
        %v1610 = vpop.f32.mrb[0].mxu0
        %v1611 = vadd.f32 %v1402, %v1610
        %v1612 = vpop.f32.mrb[0].mxu0
        %v1613 = vadd.f32 %v1404, %v1612
        %1614 = vmatprep.mubr.f32.mxu0 0.0
        %1615 = vmatmul.mubr.f32.gmra.mrb[0].mxu0 %v728
        %v1616 = vpop.f32.mrb[0].mxu0
        %v1617 = vadd.f32 %v1408, %v1616
        %v1618 = vpop.f32.mrb[0].mxu0
        %v1619 = vadd.f32 %v1410, %v1618
        %1620 = vmatprep.mubr.f32.mxu0 0.0
        %1621 = vmatmul.mubr.f32.gmra.mrb[0].mxu0 %v731
        %v1622 = vpop.f32.mrb[0].mxu0
        %v1623 = vadd.f32 %v1414, %v1622
        %v1624 = vpop.f32.mrb[0].mxu0
        %v1625 = vadd.f32 %v1416, %v1624
        %1626 = vmatprep.mubr.f32.mxu0 0.0
        %1627 = vmatmul.mubr.f32.gmra.mrb[0].mxu0 %v734
        %v1628 = vpop.f32.mrb[0].mxu0
        %v1629 = vadd.f32 %v1420, %v1628
        %v1630 = vpop.f32.mrb[0].mxu0
        %v1631 = vadd.f32 %v1422, %v1630
        %1632 = vmatprep.mubr.f32.mxu0 0.0
        %1633 = vmatmul.mubr.f32.gmra.mrb[0].mxu0 %v737
        %v1634 = vpop.f32.mrb[0].mxu0
        %v1635 = vadd.f32 %v1426, %v1634
        %v1636 = vpop.f32.mrb[0].mxu0
        %v1637 = vadd.f32 %v1428, %v1636
        %1638 = vmatprep.mubr.f32.mxu0 0.0
        %1639 = vmatmul.mubr.f32.gmra.mrb[0].mxu0 %v740
        %v1640 = vpop.f32.mrb[0].mxu0
        %v1641 = vadd.f32 %v1432, %v1640
        %v1642 = vpop.f32.mrb[0].mxu0
        %v1643 = vadd.f32 %v1434, %v1642
        %1644 = vmatprep.mubr.f32.mxu0 0.0
        %1645 = vmatmul.mubr.f32.gmra.mrb[0].mxu0 %v743
        %v1646 = vpop.f32.mrb[0].mxu0
        %v1647 = vadd.f32 %v1438, %v1646
        %v1648 = vpop.f32.mrb[0].mxu0
        %v1649 = vadd.f32 %v1440, %v1648
        %1650 = vmatprep.mubr.f32.mxu0 0.0
        %1651 = vmatmul.mubr.f32.gmra.mrb[0].mxu0 %v746
        %v1652 = vpop.f32.mrb[0].mxu0
        %v1653 = vadd.f32 %v1444, %v1652
        %v1654 = vpop.f32.mrb[0].mxu0
        %v1655 = vadd.f32 %v1446, %v1654
        %1656 = vmatprep.mubr.f32.mxu0 0.0
        %1657 = vmatmul.mubr.f32.gmra.mrb[0].mxu0 %v749
        %v1658 = vpop.f32.mrb[0].mxu0
        %v1659 = vadd.f32 %v1450, %v1658
        %v1660 = vpop.f32.mrb[0].mxu0
        %v1661 = vadd.f32 %v1452, %v1660
        %1662 = vmatprep.mubr.f32.mxu0 0.0
        %1663 = vmatmul.mubr.f32.gmra.mrb[0].mxu0 %v752
        %v1664 = vpop.f32.mrb[0].mxu0
        %v1665 = vadd.f32 %v1456, %v1664
        %v1666 = vpop.f32.mrb[0].mxu0
        %v1667 = vadd.f32 %v1458, %v1666
        %1668 = vmatprep.mubr.f32.mxu0 0.0
        %1669 = vmatmul.mubr.f32.gmra.mrb[0].mxu0 %v755
        %v1670 = vpop.f32.mrb[0].mxu0
        %v1671 = vadd.f32 %v1462, %v1670
        %v1672 = vpop.f32.mrb[0].mxu0
        %v1673 = vadd.f32 %v1464, %v1672
        %1674 = vmatprep.mubr.f32.mxu0 0.0
        %1675 = vmatmul.mubr.f32.gmra.mrb[0].mxu0 %v758
        %v1676 = vpop.f32.mrb[0].mxu0
        %v1677 = vadd.f32 %v1468, %v1676
        %v1678 = vpop.f32.mrb[0].mxu0
        %v1679 = vadd.f32 %v1470, %v1678
        %1680 = vmatprep.mubr.f32.mxu0 0.0
        %1681 = vmatmul.mubr.f32.gmra.mrb[0].mxu0 %v761
        %v1682 = vpop.f32.mrb[0].mxu0
        %v1683 = vadd.f32 %v1474, %v1682
        %v1684 = vpop.f32.mrb[0].mxu0
        %v1685 = vadd.f32 %v1476, %v1684
        %1686 = vmatprep.mubr.f32.mxu0 0.0
        %1687 = vmatmul.mubr.f32.gmra.mrb[0].mxu0 %v764
        %v1688 = vpop.f32.mrb[0].mxu0
        %v1689 = vadd.f32 %v1480, %v1688
        %v1690 = vpop.f32.mrb[0].mxu0
        %v1691 = vadd.f32 %v1482, %v1690
        %1692 = vdwg.mxu0
        %s1693 = scalar_lea.vmem %s1, 128
        %v1694 = vld [vmem:[%s1693] sm:$0xff]
        %v1695 = vld [vmem:[%s1693 + $0x8] sm:$0xff]
        %v1696 = vld [vmem:[%s1693 + $0x10] sm:$0xff]
        %v1697 = vld [vmem:[%s1693 + $0x18] sm:$0xff]
        %v1698 = vld [vmem:[%s1693 + $0x20] sm:$0xff]
        %v1699 = vld [vmem:[%s1693 + $0x28] sm:$0xff]
        %v1700 = vld [vmem:[%s1693 + $0x30] sm:$0xf]
        %v1701 = vld [vmem:[%s1693 + $0x38] sm:$0xf]
        %v1703 = vsel %vm766, %v1700, 0
        %v1706 = vsel %vm766, %v1701, 0
        %1708 = vmatprep.subr.mxu0 %v1695
        %1709 = vmatpush1.msra.mxu0 %v1694
        %1710 = vmatprep.subr.mxu0 %v1697
        %1711 = vmatpush1.msra.mxu0 %v1696
        %1712 = vmatprep.subr.mxu0 %v1699
        %1713 = vmatpush1.msra.mxu0 %v1698
        %1714 = vmatprep.subr.mxu0 %v1706
        %1715 = vmatpush1.msra.mxu0 %v1703
        %1716 = vmatprep.subr.mxu0 0.0
        %1717 = vmatpush1.msra.mxu0 0.0
        %1718 = vmatprep.subr.mxu0 0.0
        %1719 = vmatpush1.msra.mxu0 0.0
        %1720 = vmatprep.subr.mxu0 0.0
        %1721 = vmatpush1.msra.mxu0 0.0
        %1722 = vmatprep.subr.mxu0 0.0
        %1723 = vmatpush1.msra.mxu0 0.0
        %1724 = vmatprep.subr.mxu0 0.0
        %1725 = vmatpush1.msra.mxu0 0.0
        %1726 = vmatprep.subr.mxu0 0.0
        %1727 = vmatpush1.msra.mxu0 0.0
        %1728 = vmatprep.subr.mxu0 0.0
        %1729 = vmatpush1.msra.mxu0 0.0
        %1730 = vmatprep.subr.mxu0 0.0
        %1731 = vmatpush1.msra.mxu0 0.0
        %1732 = vmatprep.subr.mxu0 0.0
        %1733 = vmatpush1.msra.mxu0 0.0
        %1734 = vmatprep.subr.mxu0 0.0
        %1735 = vmatpush1.msra.mxu0 0.0
        %1736 = vmatprep.subr.mxu0 0.0
        %1737 = vmatpush1.msra.mxu0 0.0
        %1738 = vmatprep.subr.mxu0 0.0
        %1739 = vmatpush1.msra.mxu0 0.0
        %1740 = vmatprep.subr.mxu0 0.0
        %1741 = vmatpush1.msra.mxu0 0.0
        %1742 = vmatprep.subr.mxu0 0.0
        %1743 = vmatpush1.msra.mxu0 0.0
        %1744 = vmatprep.subr.mxu0 0.0
        %1745 = vmatpush1.msra.mxu0 0.0
        %1746 = vmatprep.subr.mxu0 0.0
        %1747 = vmatpush1.msra.mxu0 0.0
        %1748 = vmatprep.subr.mxu0 0.0
        %1749 = vmatpush1.msra.mxu0 0.0
        %1750 = vmatprep.subr.mxu0 0.0
        %1751 = vmatpush1.msra.mxu0 0.0
        %1752 = vmatprep.subr.mxu0 0.0
        %1753 = vmatpush1.msra.mxu0 0.0
        %1754 = vmatprep.subr.mxu0 0.0
        %1755 = vmatpush1.msra.mxu0 0.0
        %1756 = vmatprep.subr.mxu0 0.0
        %1757 = vmatpush1.msra.mxu0 0.0
        %1758 = vmatprep.subr.mxu0 0.0
        %1759 = vmatpush1.msra.mxu0 0.0
        %1760 = vmatprep.subr.mxu0 0.0
        %1761 = vmatpush1.msra.mxu0 0.0
        %1762 = vmatprep.subr.mxu0 0.0
        %1763 = vmatpush1.msra.mxu0 0.0
        %1764 = vmatprep.subr.mxu0 0.0
        %1765 = vmatpush1.msra.mxu0 0.0
        %1766 = vmatprep.subr.mxu0 0.0
        %1767 = vmatpush1.msra.mxu0 0.0
        %1768 = vmatprep.subr.mxu0 0.0
        %1769 = vmatpush1.msra.mxu0 0.0
        %1770 = vmatprep.subr.mxu0 0.0
        %1771 = vmatpush1.msra.mxu0 0.0
        %1772 = vmatprep.mubr.f32.mxu0 0.0
        %1773 = vmatmul.mubr.f32.gmra.mrb[0].mxu0 %v989
        %v1774 = vpop.f32.mrb[0].mxu0
        %v1775 = vadd.f32 0.0, %v1774
        %v1776 = vpop.f32.mrb[0].mxu0
        %v1777 = vadd.f32 0.0, %v1776
        %1778 = vmatprep.mubr.f32.mxu0 0.0
        %1779 = vmatmul.mubr.f32.gmra.mrb[0].mxu0 %v992
        %v1780 = vpop.f32.mrb[0].mxu0
        %v1781 = vadd.f32 0.0, %v1780
        %v1782 = vpop.f32.mrb[0].mxu0
        %v1783 = vadd.f32 0.0, %v1782
        %1784 = vmatprep.mubr.f32.mxu0 0.0
        %1785 = vmatmul.mubr.f32.gmra.mrb[0].mxu0 %v995
        %v1786 = vpop.f32.mrb[0].mxu0
        %v1787 = vadd.f32 0.0, %v1786
        %v1788 = vpop.f32.mrb[0].mxu0
        %v1789 = vadd.f32 0.0, %v1788
        %1790 = vmatprep.mubr.f32.mxu0 0.0
        %1791 = vmatmul.mubr.f32.gmra.mrb[0].mxu0 %v998
        %v1792 = vpop.f32.mrb[0].mxu0
        %v1793 = vadd.f32 0.0, %v1792
        %v1794 = vpop.f32.mrb[0].mxu0
        %v1795 = vadd.f32 0.0, %v1794
        %1796 = vmatprep.mubr.f32.mxu0 0.0
        %1797 = vmatmul.mubr.f32.gmra.mrb[0].mxu0 %v1001
        %v1798 = vpop.f32.mrb[0].mxu0
        %v1799 = vadd.f32 0.0, %v1798
        %v1800 = vpop.f32.mrb[0].mxu0
        %v1801 = vadd.f32 0.0, %v1800
        %1802 = vmatprep.mubr.f32.mxu0 0.0
        %1803 = vmatmul.mubr.f32.gmra.mrb[0].mxu0 %v1004
        %v1804 = vpop.f32.mrb[0].mxu0
        %v1805 = vadd.f32 0.0, %v1804
        %v1806 = vpop.f32.mrb[0].mxu0
        %v1807 = vadd.f32 0.0, %v1806
        %1808 = vmatprep.mubr.f32.mxu0 0.0
        %1809 = vmatmul.mubr.f32.gmra.mrb[0].mxu0 %v1007
        %v1810 = vpop.f32.mrb[0].mxu0
        %v1811 = vadd.f32 0.0, %v1810
        %v1812 = vpop.f32.mrb[0].mxu0
        %v1813 = vadd.f32 0.0, %v1812
        %1814 = vmatprep.mubr.f32.mxu0 0.0
        %1815 = vmatmul.mubr.f32.gmra.mrb[0].mxu0 %v1010
        %v1816 = vpop.f32.mrb[0].mxu0
        %v1817 = vadd.f32 0.0, %v1816
        %v1818 = vpop.f32.mrb[0].mxu0
        %v1819 = vadd.f32 0.0, %v1818
        %1820 = vmatprep.mubr.f32.mxu0 0.0
        %1821 = vmatmul.mubr.f32.gmra.mrb[0].mxu0 %v1013
        %v1822 = vpop.f32.mrb[0].mxu0
        %v1823 = vadd.f32 0.0, %v1822
        %v1824 = vpop.f32.mrb[0].mxu0
        %v1825 = vadd.f32 0.0, %v1824
        %1826 = vmatprep.mubr.f32.mxu0 0.0
        %1827 = vmatmul.mubr.f32.gmra.mrb[0].mxu0 %v1016
        %v1828 = vpop.f32.mrb[0].mxu0
        %v1829 = vadd.f32 0.0, %v1828
        %v1830 = vpop.f32.mrb[0].mxu0
        %v1831 = vadd.f32 0.0, %v1830
        %1832 = vmatprep.mubr.f32.mxu0 0.0
        %1833 = vmatmul.mubr.f32.gmra.mrb[0].mxu0 %v1019
        %v1834 = vpop.f32.mrb[0].mxu0
        %v1835 = vadd.f32 0.0, %v1834
        %v1836 = vpop.f32.mrb[0].mxu0
        %v1837 = vadd.f32 0.0, %v1836
        %1838 = vmatprep.mubr.f32.mxu0 0.0
        %1839 = vmatmul.mubr.f32.gmra.mrb[0].mxu0 %v1022
        %v1840 = vpop.f32.mrb[0].mxu0
        %v1841 = vadd.f32 0.0, %v1840
        %v1842 = vpop.f32.mrb[0].mxu0
        %v1843 = vadd.f32 0.0, %v1842
        %1844 = vmatprep.mubr.f32.mxu0 0.0
        %1845 = vmatmul.mubr.f32.gmra.mrb[0].mxu0 %v1025
        %v1846 = vpop.f32.mrb[0].mxu0
        %v1847 = vadd.f32 0.0, %v1846
        %v1848 = vpop.f32.mrb[0].mxu0
        %v1849 = vadd.f32 0.0, %v1848
        %1850 = vmatprep.mubr.f32.mxu0 0.0
        %1851 = vmatmul.mubr.f32.gmra.mrb[0].mxu0 %v1028
        %v1852 = vpop.f32.mrb[0].mxu0
        %v1853 = vadd.f32 0.0, %v1852
        %v1854 = vpop.f32.mrb[0].mxu0
        %v1855 = vadd.f32 0.0, %v1854
        %1856 = vmatprep.mubr.f32.mxu0 0.0
        %1857 = vmatmul.mubr.f32.gmra.mrb[0].mxu0 %v1031
        %v1858 = vpop.f32.mrb[0].mxu0
        %v1859 = vadd.f32 0.0, %v1858
        %v1860 = vpop.f32.mrb[0].mxu0
        %v1861 = vadd.f32 0.0, %v1860
        %1862 = vmatprep.mubr.f32.mxu0 0.0
        %1863 = vmatmul.mubr.f32.gmra.mrb[0].mxu0 %v1034
        %v1864 = vpop.f32.mrb[0].mxu0
        %v1865 = vadd.f32 0.0, %v1864
        %v1866 = vpop.f32.mrb[0].mxu0
        %v1867 = vadd.f32 0.0, %v1866
        %1868 = vmatprep.mubr.f32.mxu0 0.0
        %1869 = vmatmul.mubr.f32.gmra.mrb[0].mxu0 %v1037
        %v1870 = vpop.f32.mrb[0].mxu0
        %v1871 = vadd.f32 0.0, %v1870
        %v1872 = vpop.f32.mrb[0].mxu0
        %v1873 = vadd.f32 0.0, %v1872
        %1874 = vmatprep.mubr.f32.mxu0 0.0
        %1875 = vmatmul.mubr.f32.gmra.mrb[0].mxu0 %v1040
        %v1876 = vpop.f32.mrb[0].mxu0
        %v1877 = vadd.f32 0.0, %v1876
        %v1878 = vpop.f32.mrb[0].mxu0
        %v1879 = vadd.f32 0.0, %v1878
        %1880 = vmatprep.mubr.f32.mxu0 0.0
        %1881 = vmatmul.mubr.f32.gmra.mrb[0].mxu0 %v1043
        %v1882 = vpop.f32.mrb[0].mxu0
        %v1883 = vadd.f32 0.0, %v1882
        %v1884 = vpop.f32.mrb[0].mxu0
        %v1885 = vadd.f32 0.0, %v1884
        %1886 = vmatprep.mubr.f32.mxu0 0.0
        %1887 = vmatmul.mubr.f32.gmra.mrb[0].mxu0 %v1046
        %v1888 = vpop.f32.mrb[0].mxu0
        %v1889 = vadd.f32 0.0, %v1888
        %v1890 = vpop.f32.mrb[0].mxu0
        %v1891 = vadd.f32 0.0, %v1890
        %1892 = vmatprep.mubr.f32.mxu0 0.0
        %1893 = vmatmul.mubr.f32.gmra.mrb[0].mxu0 %v1049
        %v1894 = vpop.f32.mrb[0].mxu0
        %v1895 = vadd.f32 0.0, %v1894
        %v1896 = vpop.f32.mrb[0].mxu0
        %v1897 = vadd.f32 0.0, %v1896
        %1898 = vmatprep.mubr.f32.mxu0 0.0
        %1899 = vmatmul.mubr.f32.gmra.mrb[0].mxu0 %v1052
        %v1900 = vpop.f32.mrb[0].mxu0
        %v1901 = vadd.f32 0.0, %v1900
        %v1902 = vpop.f32.mrb[0].mxu0
        %v1903 = vadd.f32 0.0, %v1902
        %1904 = vmatprep.mubr.f32.mxu0 0.0
        %1905 = vmatmul.mubr.f32.gmra.mrb[0].mxu0 %v1270
        %v1906 = vpop.f32.mrb[0].mxu0
        %v1907 = vadd.f32 0.0, %v1906
        %v1908 = vpop.f32.mrb[0].mxu0
        %v1909 = vadd.f32 0.0, %v1908
        %1910 = vmatprep.mubr.f32.mxu0 0.0
        %1911 = vmatmul.mubr.f32.gmra.mrb[0].mxu0 %v1273
        %v1912 = vpop.f32.mrb[0].mxu0
        %v1913 = vadd.f32 0.0, %v1912
        %v1914 = vpop.f32.mrb[0].mxu0
        %v1915 = vadd.f32 0.0, %v1914
        %1916 = vdwg.mxu0
        %v1917 = vadd.f32 %v1127, %v1775
        %v1918 = vadd.f32 %v1129, %v1777
        %v1919 = vadd.f32 %v1133, %v1781
        %v1920 = vadd.f32 %v1135, %v1783
        %v1921 = vadd.f32 %v1139, %v1787
        %v1922 = vadd.f32 %v1141, %v1789
        %v1923 = vadd.f32 %v1145, %v1793
        %v1924 = vadd.f32 %v1147, %v1795
        %v1925 = vadd.f32 %v1151, %v1799
        %v1926 = vadd.f32 %v1153, %v1801
        %v1927 = vadd.f32 %v1157, %v1805
        %v1928 = vadd.f32 %v1159, %v1807
        %v1929 = vadd.f32 %v1163, %v1811
        %v1930 = vadd.f32 %v1165, %v1813
        %v1931 = vadd.f32 %v1169, %v1817
        %v1932 = vadd.f32 %v1171, %v1819
        %v1933 = vadd.f32 %v1175, %v1823
        %v1934 = vadd.f32 %v1177, %v1825
        %v1935 = vadd.f32 %v1181, %v1829
        %v1936 = vadd.f32 %v1183, %v1831
        %v1937 = vadd.f32 %v1187, %v1835
        %v1938 = vadd.f32 %v1189, %v1837
        %v1939 = vadd.f32 %v1193, %v1841
        %v1940 = vadd.f32 %v1195, %v1843
        %v1941 = vadd.f32 %v1199, %v1847
        %v1942 = vadd.f32 %v1201, %v1849
        %v1943 = vadd.f32 %v1205, %v1853
        %v1944 = vadd.f32 %v1207, %v1855
        %v1945 = vadd.f32 %v1211, %v1859
        %v1946 = vadd.f32 %v1213, %v1861
        %v1947 = vadd.f32 %v1217, %v1865
        %v1948 = vadd.f32 %v1219, %v1867
        %v1949 = vadd.f32 %v1223, %v1871
        %v1950 = vadd.f32 %v1225, %v1873
        %v1951 = vadd.f32 %v1229, %v1877
        %v1952 = vadd.f32 %v1231, %v1879
        %v1953 = vadd.f32 %v1235, %v1883
        %v1954 = vadd.f32 %v1237, %v1885
        %v1955 = vadd.f32 %v1241, %v1889
        %v1956 = vadd.f32 %v1243, %v1891
        %v1957 = vadd.f32 %v1247, %v1895
        %v1958 = vadd.f32 %v1249, %v1897
        %v1959 = vadd.f32 %v1253, %v1901
        %v1960 = vadd.f32 %v1255, %v1903
        %v1961 = vadd.f32 %v1259, %v1907
        %v1962 = vadd.f32 %v1261, %v1909
        %v1963 = vadd.f32 %v1265, %v1913
        %v1964 = vadd.f32 %v1267, %v1915
        %v1966 = vsel %vm693, %v670, 0
        %v1969 = vsel %vm693, %v671, 0
        %1971 = vmatprep.subr.mxu0 %v1695
        %1972 = vmatpush1.msra.mxu0 %v1694
        %1973 = vmatprep.subr.mxu0 %v1697
        %1974 = vmatpush1.msra.mxu0 %v1696
        %1975 = vmatprep.subr.mxu0 %v1699
        %1976 = vmatpush1.msra.mxu0 %v1698
        %1977 = vmatprep.subr.mxu0 %v1706
        %1978 = vmatpush1.msra.mxu0 %v1703
        %1979 = vmatprep.subr.mxu0 0.0
        %1980 = vmatpush1.msra.mxu0 0.0
        %1981 = vmatprep.subr.mxu0 0.0
        %1982 = vmatpush1.msra.mxu0 0.0
        %1983 = vmatprep.subr.mxu0 0.0
        %1984 = vmatpush1.msra.mxu0 0.0
        %1985 = vmatprep.subr.mxu0 0.0
        %1986 = vmatpush1.msra.mxu0 0.0
        %1987 = vmatprep.subr.mxu0 0.0
        %1988 = vmatpush1.msra.mxu0 0.0
        %1989 = vmatprep.subr.mxu0 0.0
        %1990 = vmatpush1.msra.mxu0 0.0
        %1991 = vmatprep.subr.mxu0 0.0
        %1992 = vmatpush1.msra.mxu0 0.0
        %1993 = vmatprep.subr.mxu0 0.0
        %1994 = vmatpush1.msra.mxu0 0.0
        %1995 = vmatprep.subr.mxu0 0.0
        %1996 = vmatpush1.msra.mxu0 0.0
        %1997 = vmatprep.subr.mxu0 0.0
        %1998 = vmatpush1.msra.mxu0 0.0
        %1999 = vmatprep.subr.mxu0 0.0
        %2000 = vmatpush1.msra.mxu0 0.0
        %2001 = vmatprep.subr.mxu0 0.0
        %2002 = vmatpush1.msra.mxu0 0.0
        %2003 = vmatprep.subr.mxu0 0.0
        %2004 = vmatpush1.msra.mxu0 0.0
        %2005 = vmatprep.subr.mxu0 0.0
        %2006 = vmatpush1.msra.mxu0 0.0
        %2007 = vmatprep.subr.mxu0 0.0
        %2008 = vmatpush1.msra.mxu0 0.0
        %2009 = vmatprep.subr.mxu0 0.0
        %2010 = vmatpush1.msra.mxu0 0.0
        %2011 = vmatprep.subr.mxu0 0.0
        %2012 = vmatpush1.msra.mxu0 0.0
        %2013 = vmatprep.subr.mxu0 0.0
        %2014 = vmatpush1.msra.mxu0 0.0
        %2015 = vmatprep.subr.mxu0 0.0
        %2016 = vmatpush1.msra.mxu0 0.0
        %2017 = vmatprep.subr.mxu0 0.0
        %2018 = vmatpush1.msra.mxu0 0.0
        %2019 = vmatprep.subr.mxu0 0.0
        %2020 = vmatpush1.msra.mxu0 0.0
        %2021 = vmatprep.subr.mxu0 0.0
        %2022 = vmatpush1.msra.mxu0 0.0
        %2023 = vmatprep.subr.mxu0 0.0
        %2024 = vmatpush1.msra.mxu0 0.0
        %2025 = vmatprep.subr.mxu0 0.0
        %2026 = vmatpush1.msra.mxu0 0.0
        %2027 = vmatprep.subr.mxu0 0.0
        %2028 = vmatpush1.msra.mxu0 0.0
        %2029 = vmatprep.subr.mxu0 0.0
        %2030 = vmatpush1.msra.mxu0 0.0
        %2031 = vmatprep.subr.mxu0 0.0
        %2032 = vmatpush1.msra.mxu0 0.0
        %2033 = vmatprep.subr.mxu0 0.0
        %2034 = vmatpush1.msra.mxu0 0.0
        %2035 = vmatprep.mubr.f32.mxu0 0.0
        %2036 = vmatmul.mubr.f32.gmra.mrb[0].mxu0 %v701
        %v2037 = vpop.f32.mrb[0].mxu0
        %v2038 = vadd.f32 0.0, %v2037
        %v2039 = vpop.f32.mrb[0].mxu0
        %v2040 = vadd.f32 0.0, %v2039
        %2041 = vmatprep.mubr.f32.mxu0 0.0
        %2042 = vmatmul.mubr.f32.gmra.mrb[0].mxu0 %v704
        %v2043 = vpop.f32.mrb[0].mxu0
        %v2044 = vadd.f32 0.0, %v2043
        %v2045 = vpop.f32.mrb[0].mxu0
        %v2046 = vadd.f32 0.0, %v2045
        %2047 = vmatprep.mubr.f32.mxu0 0.0
        %2048 = vmatmul.mubr.f32.gmra.mrb[0].mxu0 %v707
        %v2049 = vpop.f32.mrb[0].mxu0
        %v2050 = vadd.f32 0.0, %v2049
        %v2051 = vpop.f32.mrb[0].mxu0
        %v2052 = vadd.f32 0.0, %v2051
        %2053 = vmatprep.mubr.f32.mxu0 0.0
        %2054 = vmatmul.mubr.f32.gmra.mrb[0].mxu0 %v710
        %v2055 = vpop.f32.mrb[0].mxu0
        %v2056 = vadd.f32 0.0, %v2055
        %v2057 = vpop.f32.mrb[0].mxu0
        %v2058 = vadd.f32 0.0, %v2057
        %2059 = vmatprep.mubr.f32.mxu0 0.0
        %2060 = vmatmul.mubr.f32.gmra.mrb[0].mxu0 %v713
        %v2061 = vpop.f32.mrb[0].mxu0
        %v2062 = vadd.f32 0.0, %v2061
        %v2063 = vpop.f32.mrb[0].mxu0
        %v2064 = vadd.f32 0.0, %v2063
        %2065 = vmatprep.mubr.f32.mxu0 0.0
        %2066 = vmatmul.mubr.f32.gmra.mrb[0].mxu0 %v716
        %v2067 = vpop.f32.mrb[0].mxu0
        %v2068 = vadd.f32 0.0, %v2067
        %v2069 = vpop.f32.mrb[0].mxu0
        %v2070 = vadd.f32 0.0, %v2069
        %2071 = vmatprep.mubr.f32.mxu0 0.0
        %2072 = vmatmul.mubr.f32.gmra.mrb[0].mxu0 %v719
        %v2073 = vpop.f32.mrb[0].mxu0
        %v2074 = vadd.f32 0.0, %v2073
        %v2075 = vpop.f32.mrb[0].mxu0
        %v2076 = vadd.f32 0.0, %v2075
        %2077 = vmatprep.mubr.f32.mxu0 0.0
        %2078 = vmatmul.mubr.f32.gmra.mrb[0].mxu0 %v722
        %v2079 = vpop.f32.mrb[0].mxu0
        %v2080 = vadd.f32 0.0, %v2079
        %v2081 = vpop.f32.mrb[0].mxu0
        %v2082 = vadd.f32 0.0, %v2081
        %2083 = vmatprep.mubr.f32.mxu0 0.0
        %2084 = vmatmul.mubr.f32.gmra.mrb[0].mxu0 %v725
        %v2085 = vpop.f32.mrb[0].mxu0
        %v2086 = vadd.f32 0.0, %v2085
        %v2087 = vpop.f32.mrb[0].mxu0
        %v2088 = vadd.f32 0.0, %v2087
        %2089 = vmatprep.mubr.f32.mxu0 0.0
        %2090 = vmatmul.mubr.f32.gmra.mrb[0].mxu0 %v728
        %v2091 = vpop.f32.mrb[0].mxu0
        %v2092 = vadd.f32 0.0, %v2091
        %v2093 = vpop.f32.mrb[0].mxu0
        %v2094 = vadd.f32 0.0, %v2093
        %2095 = vmatprep.mubr.f32.mxu0 0.0
        %2096 = vmatmul.mubr.f32.gmra.mrb[0].mxu0 %v731
        %v2097 = vpop.f32.mrb[0].mxu0
        %v2098 = vadd.f32 0.0, %v2097
        %v2099 = vpop.f32.mrb[0].mxu0
        %v2100 = vadd.f32 0.0, %v2099
        %2101 = vmatprep.mubr.f32.mxu0 0.0
        %2102 = vmatmul.mubr.f32.gmra.mrb[0].mxu0 %v734
        %v2103 = vpop.f32.mrb[0].mxu0
        %v2104 = vadd.f32 0.0, %v2103
        %v2105 = vpop.f32.mrb[0].mxu0
        %v2106 = vadd.f32 0.0, %v2105
        %2107 = vmatprep.mubr.f32.mxu0 0.0
        %2108 = vmatmul.mubr.f32.gmra.mrb[0].mxu0 %v737
        %v2109 = vpop.f32.mrb[0].mxu0
        %v2110 = vadd.f32 0.0, %v2109
        %v2111 = vpop.f32.mrb[0].mxu0
        %v2112 = vadd.f32 0.0, %v2111
        %2113 = vmatprep.mubr.f32.mxu0 0.0
        %2114 = vmatmul.mubr.f32.gmra.mrb[0].mxu0 %v740
        %v2115 = vpop.f32.mrb[0].mxu0
        %v2116 = vadd.f32 0.0, %v2115
        %v2117 = vpop.f32.mrb[0].mxu0
        %v2118 = vadd.f32 0.0, %v2117
        %2119 = vmatprep.mubr.f32.mxu0 0.0
        %2120 = vmatmul.mubr.f32.gmra.mrb[0].mxu0 %v743
        %v2121 = vpop.f32.mrb[0].mxu0
        %v2122 = vadd.f32 0.0, %v2121
        %v2123 = vpop.f32.mrb[0].mxu0
        %v2124 = vadd.f32 0.0, %v2123
        %2125 = vmatprep.mubr.f32.mxu0 0.0
        %2126 = vmatmul.mubr.f32.gmra.mrb[0].mxu0 %v746
        %v2127 = vpop.f32.mrb[0].mxu0
        %v2128 = vadd.f32 0.0, %v2127
        %v2129 = vpop.f32.mrb[0].mxu0
        %v2130 = vadd.f32 0.0, %v2129
        %2131 = vmatprep.mubr.f32.mxu0 0.0
        %2132 = vmatmul.mubr.f32.gmra.mrb[0].mxu0 %v749
        %v2133 = vpop.f32.mrb[0].mxu0
        %v2134 = vadd.f32 0.0, %v2133
        %v2135 = vpop.f32.mrb[0].mxu0
        %v2136 = vadd.f32 0.0, %v2135
        %2137 = vmatprep.mubr.f32.mxu0 0.0
        %2138 = vmatmul.mubr.f32.gmra.mrb[0].mxu0 %v752
        %v2139 = vpop.f32.mrb[0].mxu0
        %v2140 = vadd.f32 0.0, %v2139
        %v2141 = vpop.f32.mrb[0].mxu0
        %v2142 = vadd.f32 0.0, %v2141
        %2143 = vmatprep.mubr.f32.mxu0 0.0
        %2144 = vmatmul.mubr.f32.gmra.mrb[0].mxu0 %v755
        %v2145 = vpop.f32.mrb[0].mxu0
        %v2146 = vadd.f32 0.0, %v2145
        %v2147 = vpop.f32.mrb[0].mxu0
        %v2148 = vadd.f32 0.0, %v2147
        %2149 = vmatprep.mubr.f32.mxu0 0.0
        %2150 = vmatmul.mubr.f32.gmra.mrb[0].mxu0 %v758
        %v2151 = vpop.f32.mrb[0].mxu0
        %v2152 = vadd.f32 0.0, %v2151
        %v2153 = vpop.f32.mrb[0].mxu0
        %v2154 = vadd.f32 0.0, %v2153
        %2155 = vmatprep.mubr.f32.mxu0 0.0
        %2156 = vmatmul.mubr.f32.gmra.mrb[0].mxu0 %v761
        %v2157 = vpop.f32.mrb[0].mxu0
        %v2158 = vadd.f32 0.0, %v2157
        %v2159 = vpop.f32.mrb[0].mxu0
        %v2160 = vadd.f32 0.0, %v2159
        %2161 = vmatprep.mubr.f32.mxu0 0.0
        %2162 = vmatmul.mubr.f32.gmra.mrb[0].mxu0 %v764
        %v2163 = vpop.f32.mrb[0].mxu0
        %v2164 = vadd.f32 0.0, %v2163
        %v2165 = vpop.f32.mrb[0].mxu0
        %v2166 = vadd.f32 0.0, %v2165
        %2167 = vmatprep.mubr.f32.mxu0 0.0
        %2168 = vmatmul.mubr.f32.gmra.mrb[0].mxu0 %v1966
        %v2169 = vpop.f32.mrb[0].mxu0
        %v2170 = vadd.f32 0.0, %v2169
        %v2171 = vpop.f32.mrb[0].mxu0
        %v2172 = vadd.f32 0.0, %v2171
        %2173 = vmatprep.mubr.f32.mxu0 0.0
        %2174 = vmatmul.mubr.f32.gmra.mrb[0].mxu0 %v1969
        %v2175 = vpop.f32.mrb[0].mxu0
        %v2176 = vadd.f32 0.0, %v2175
        %v2177 = vpop.f32.mrb[0].mxu0
        %v2178 = vadd.f32 0.0, %v2177
        %2179 = vdwg.mxu0
        %v2180 = vadd.f32 %v1551, %v2038
        %v2181 = vadd.f32 %v1553, %v2040
        %v2182 = vadd.f32 %v1557, %v2044
        %v2183 = vadd.f32 %v1559, %v2046
        %v2184 = vadd.f32 %v1563, %v2050
        %v2185 = vadd.f32 %v1565, %v2052
        %v2186 = vadd.f32 %v1569, %v2056
        %v2187 = vadd.f32 %v1571, %v2058
        %v2188 = vadd.f32 %v1575, %v2062
        %v2189 = vadd.f32 %v1577, %v2064
        %v2190 = vadd.f32 %v1581, %v2068
        %v2191 = vadd.f32 %v1583, %v2070
        %v2192 = vadd.f32 %v1587, %v2074
        %v2193 = vadd.f32 %v1589, %v2076
        %v2194 = vadd.f32 %v1593, %v2080
        %v2195 = vadd.f32 %v1595, %v2082
        %v2196 = vadd.f32 %v1599, %v2086
        %v2197 = vadd.f32 %v1601, %v2088
        %v2198 = vadd.f32 %v1605, %v2092
        %v2199 = vadd.f32 %v1607, %v2094
        %v2200 = vadd.f32 %v1611, %v2098
        %v2201 = vadd.f32 %v1613, %v2100
        %v2202 = vadd.f32 %v1617, %v2104
        %v2203 = vadd.f32 %v1619, %v2106
        %v2204 = vadd.f32 %v1623, %v2110
        %v2205 = vadd.f32 %v1625, %v2112
        %v2206 = vadd.f32 %v1629, %v2116
        %v2207 = vadd.f32 %v1631, %v2118
        %v2208 = vadd.f32 %v1635, %v2122
        %v2209 = vadd.f32 %v1637, %v2124
        %v2210 = vadd.f32 %v1641, %v2128
        %v2211 = vadd.f32 %v1643, %v2130
        %v2212 = vadd.f32 %v1647, %v2134
        %v2213 = vadd.f32 %v1649, %v2136
        %v2214 = vadd.f32 %v1653, %v2140
        %v2215 = vadd.f32 %v1655, %v2142
        %v2216 = vadd.f32 %v1659, %v2146
        %v2217 = vadd.f32 %v1661, %v2148
        %v2218 = vadd.f32 %v1665, %v2152
        %v2219 = vadd.f32 %v1667, %v2154
        %v2220 = vadd.f32 %v1671, %v2158
        %v2221 = vadd.f32 %v1673, %v2160
        %v2222 = vadd.f32 %v1677, %v2164
        %v2223 = vadd.f32 %v1679, %v2166
        %v2224 = vadd.f32 %v1683, %v2170
        %v2225 = vadd.f32 %v1685, %v2172
        %v2226 = vadd.f32 %v1689, %v2176
        %v2227 = vadd.f32 %v1691, %v2178
        %s2228 = scalar_lea.vmem %s1, 192
        %v2229 = vld [vmem:[%s2228] sm:$0xff]
        %v2230 = vld [vmem:[%s2228 + $0x8] sm:$0xff]
        %v2231 = vld [vmem:[%s2228 + $0x10] sm:$0xff]
        %v2232 = vld [vmem:[%s2228 + $0x18] sm:$0xff]
        %v2233 = vld [vmem:[%s2228 + $0x20] sm:$0xff]
        %v2234 = vld [vmem:[%s2228 + $0x28] sm:$0xff]
        %v2235 = vld [vmem:[%s2228 + $0x30] sm:$0xf]
        %v2236 = vld [vmem:[%s2228 + $0x38] sm:$0xf]
        %v2238 = vsel %vm766, %v2235, 0
        %v2241 = vsel %vm766, %v2236, 0
        %2243 = vmatprep.subr.mxu0 %v2230
        %2244 = vmatpush1.msra.mxu0 %v2229
        %2245 = vmatprep.subr.mxu0 %v2232
        %2246 = vmatpush1.msra.mxu0 %v2231
        %2247 = vmatprep.subr.mxu0 %v2234
        %2248 = vmatpush1.msra.mxu0 %v2233
        %2249 = vmatprep.subr.mxu0 %v2241
        %2250 = vmatpush1.msra.mxu0 %v2238
        %2251 = vmatprep.subr.mxu0 0.0
        %2252 = vmatpush1.msra.mxu0 0.0
        %2253 = vmatprep.subr.mxu0 0.0
        %2254 = vmatpush1.msra.mxu0 0.0
        %2255 = vmatprep.subr.mxu0 0.0
        %2256 = vmatpush1.msra.mxu0 0.0
        %2257 = vmatprep.subr.mxu0 0.0
        %2258 = vmatpush1.msra.mxu0 0.0
        %2259 = vmatprep.subr.mxu0 0.0
        %2260 = vmatpush1.msra.mxu0 0.0
        %2261 = vmatprep.subr.mxu0 0.0
        %2262 = vmatpush1.msra.mxu0 0.0
        %2263 = vmatprep.subr.mxu0 0.0
        %2264 = vmatpush1.msra.mxu0 0.0
        %2265 = vmatprep.subr.mxu0 0.0
        %2266 = vmatpush1.msra.mxu0 0.0
        %2267 = vmatprep.subr.mxu0 0.0
        %2268 = vmatpush1.msra.mxu0 0.0
        %2269 = vmatprep.subr.mxu0 0.0
        %2270 = vmatpush1.msra.mxu0 0.0
        %2271 = vmatprep.subr.mxu0 0.0
        %2272 = vmatpush1.msra.mxu0 0.0
        %2273 = vmatprep.subr.mxu0 0.0
        %2274 = vmatpush1.msra.mxu0 0.0
        %2275 = vmatprep.subr.mxu0 0.0
        %2276 = vmatpush1.msra.mxu0 0.0
        %2277 = vmatprep.subr.mxu0 0.0
        %2278 = vmatpush1.msra.mxu0 0.0
        %2279 = vmatprep.subr.mxu0 0.0
        %2280 = vmatpush1.msra.mxu0 0.0
        %2281 = vmatprep.subr.mxu0 0.0
        %2282 = vmatpush1.msra.mxu0 0.0
        %2283 = vmatprep.subr.mxu0 0.0
        %2284 = vmatpush1.msra.mxu0 0.0
        %2285 = vmatprep.subr.mxu0 0.0
        %2286 = vmatpush1.msra.mxu0 0.0
        %2287 = vmatprep.subr.mxu0 0.0
        %2288 = vmatpush1.msra.mxu0 0.0
        %2289 = vmatprep.subr.mxu0 0.0
        %2290 = vmatpush1.msra.mxu0 0.0
        %2291 = vmatprep.subr.mxu0 0.0
        %2292 = vmatpush1.msra.mxu0 0.0
        %2293 = vmatprep.subr.mxu0 0.0
        %2294 = vmatpush1.msra.mxu0 0.0
        %2295 = vmatprep.subr.mxu0 0.0
        %2296 = vmatpush1.msra.mxu0 0.0
        %2297 = vmatprep.subr.mxu0 0.0
        %2298 = vmatpush1.msra.mxu0 0.0
        %2299 = vmatprep.subr.mxu0 0.0
        %2300 = vmatpush1.msra.mxu0 0.0
        %2301 = vmatprep.subr.mxu0 0.0
        %2302 = vmatpush1.msra.mxu0 0.0
        %2303 = vmatprep.subr.mxu0 0.0
        %2304 = vmatpush1.msra.mxu0 0.0
        %2305 = vmatprep.subr.mxu0 0.0
        %2306 = vmatpush1.msra.mxu0 0.0
        %2307 = vmatprep.mubr.f32.mxu0 0.0
        %2308 = vmatmul.mubr.f32.gmra.mrb[0].mxu0 %v701
        %v2309 = vpop.f32.mrb[0].mxu0
        %v2310 = vadd.f32 0.0, %v2309
        %v2311 = vpop.f32.mrb[0].mxu0
        %v2312 = vadd.f32 0.0, %v2311
        %2313 = vmatprep.mubr.f32.mxu0 0.0
        %2314 = vmatmul.mubr.f32.gmra.mrb[0].mxu0 %v704
        %v2315 = vpop.f32.mrb[0].mxu0
        %v2316 = vadd.f32 0.0, %v2315
        %v2317 = vpop.f32.mrb[0].mxu0
        %v2318 = vadd.f32 0.0, %v2317
        %2319 = vmatprep.mubr.f32.mxu0 0.0
        %2320 = vmatmul.mubr.f32.gmra.mrb[0].mxu0 %v707
        %v2321 = vpop.f32.mrb[0].mxu0
        %v2322 = vadd.f32 0.0, %v2321
        %v2323 = vpop.f32.mrb[0].mxu0
        %v2324 = vadd.f32 0.0, %v2323
        %2325 = vmatprep.mubr.f32.mxu0 0.0
        %2326 = vmatmul.mubr.f32.gmra.mrb[0].mxu0 %v710
        %v2327 = vpop.f32.mrb[0].mxu0
        %v2328 = vadd.f32 0.0, %v2327
        %v2329 = vpop.f32.mrb[0].mxu0
        %v2330 = vadd.f32 0.0, %v2329
        %2331 = vmatprep.mubr.f32.mxu0 0.0
        %2332 = vmatmul.mubr.f32.gmra.mrb[0].mxu0 %v713
        %v2333 = vpop.f32.mrb[0].mxu0
        %v2334 = vadd.f32 0.0, %v2333
        %v2335 = vpop.f32.mrb[0].mxu0
        %v2336 = vadd.f32 0.0, %v2335
        %2337 = vmatprep.mubr.f32.mxu0 0.0
        %2338 = vmatmul.mubr.f32.gmra.mrb[0].mxu0 %v716
        %v2339 = vpop.f32.mrb[0].mxu0
        %v2340 = vadd.f32 0.0, %v2339
        %v2341 = vpop.f32.mrb[0].mxu0
        %v2342 = vadd.f32 0.0, %v2341
        %2343 = vmatprep.mubr.f32.mxu0 0.0
        %2344 = vmatmul.mubr.f32.gmra.mrb[0].mxu0 %v719
        %v2345 = vpop.f32.mrb[0].mxu0
        %v2346 = vadd.f32 0.0, %v2345
        %v2347 = vpop.f32.mrb[0].mxu0
        %v2348 = vadd.f32 0.0, %v2347
        %2349 = vmatprep.mubr.f32.mxu0 0.0
        %2350 = vmatmul.mubr.f32.gmra.mrb[0].mxu0 %v722
        %v2351 = vpop.f32.mrb[0].mxu0
        %v2352 = vadd.f32 0.0, %v2351
        %v2353 = vpop.f32.mrb[0].mxu0
        %v2354 = vadd.f32 0.0, %v2353
        %2355 = vmatprep.mubr.f32.mxu0 0.0
        %2356 = vmatmul.mubr.f32.gmra.mrb[0].mxu0 %v725
        %v2357 = vpop.f32.mrb[0].mxu0
        %v2358 = vadd.f32 0.0, %v2357
        %v2359 = vpop.f32.mrb[0].mxu0
        %v2360 = vadd.f32 0.0, %v2359
        %2361 = vmatprep.mubr.f32.mxu0 0.0
        %2362 = vmatmul.mubr.f32.gmra.mrb[0].mxu0 %v728
        %v2363 = vpop.f32.mrb[0].mxu0
        %v2364 = vadd.f32 0.0, %v2363
        %v2365 = vpop.f32.mrb[0].mxu0
        %v2366 = vadd.f32 0.0, %v2365
        %2367 = vmatprep.mubr.f32.mxu0 0.0
        %2368 = vmatmul.mubr.f32.gmra.mrb[0].mxu0 %v731
        %v2369 = vpop.f32.mrb[0].mxu0
        %v2370 = vadd.f32 0.0, %v2369
        %v2371 = vpop.f32.mrb[0].mxu0
        %v2372 = vadd.f32 0.0, %v2371
        %2373 = vmatprep.mubr.f32.mxu0 0.0
        %2374 = vmatmul.mubr.f32.gmra.mrb[0].mxu0 %v734
        %v2375 = vpop.f32.mrb[0].mxu0
        %v2376 = vadd.f32 0.0, %v2375
        %v2377 = vpop.f32.mrb[0].mxu0
        %v2378 = vadd.f32 0.0, %v2377
        %2379 = vmatprep.mubr.f32.mxu0 0.0
        %2380 = vmatmul.mubr.f32.gmra.mrb[0].mxu0 %v737
        %v2381 = vpop.f32.mrb[0].mxu0
        %v2382 = vadd.f32 0.0, %v2381
        %v2383 = vpop.f32.mrb[0].mxu0
        %v2384 = vadd.f32 0.0, %v2383
        %2385 = vmatprep.mubr.f32.mxu0 0.0
        %2386 = vmatmul.mubr.f32.gmra.mrb[0].mxu0 %v740
        %v2387 = vpop.f32.mrb[0].mxu0
        %v2388 = vadd.f32 0.0, %v2387
        %v2389 = vpop.f32.mrb[0].mxu0
        %v2390 = vadd.f32 0.0, %v2389
        %2391 = vmatprep.mubr.f32.mxu0 0.0
        %2392 = vmatmul.mubr.f32.gmra.mrb[0].mxu0 %v743
        %v2393 = vpop.f32.mrb[0].mxu0
        %v2394 = vadd.f32 0.0, %v2393
        %v2395 = vpop.f32.mrb[0].mxu0
        %v2396 = vadd.f32 0.0, %v2395
        %2397 = vmatprep.mubr.f32.mxu0 0.0
        %2398 = vmatmul.mubr.f32.gmra.mrb[0].mxu0 %v746
        %v2399 = vpop.f32.mrb[0].mxu0
        %v2400 = vadd.f32 0.0, %v2399
        %v2401 = vpop.f32.mrb[0].mxu0
        %v2402 = vadd.f32 0.0, %v2401
        %2403 = vmatprep.mubr.f32.mxu0 0.0
        %2404 = vmatmul.mubr.f32.gmra.mrb[0].mxu0 %v749
        %v2405 = vpop.f32.mrb[0].mxu0
        %v2406 = vadd.f32 0.0, %v2405
        %v2407 = vpop.f32.mrb[0].mxu0
        %v2408 = vadd.f32 0.0, %v2407
        %2409 = vmatprep.mubr.f32.mxu0 0.0
        %2410 = vmatmul.mubr.f32.gmra.mrb[0].mxu0 %v752
        %v2411 = vpop.f32.mrb[0].mxu0
        %v2412 = vadd.f32 0.0, %v2411
        %v2413 = vpop.f32.mrb[0].mxu0
        %v2414 = vadd.f32 0.0, %v2413
        %2415 = vmatprep.mubr.f32.mxu0 0.0
        %2416 = vmatmul.mubr.f32.gmra.mrb[0].mxu0 %v755
        %v2417 = vpop.f32.mrb[0].mxu0
        %v2418 = vadd.f32 0.0, %v2417
        %v2419 = vpop.f32.mrb[0].mxu0
        %v2420 = vadd.f32 0.0, %v2419
        %2421 = vmatprep.mubr.f32.mxu0 0.0
        %2422 = vmatmul.mubr.f32.gmra.mrb[0].mxu0 %v758
        %v2423 = vpop.f32.mrb[0].mxu0
        %v2424 = vadd.f32 0.0, %v2423
        %v2425 = vpop.f32.mrb[0].mxu0
        %v2426 = vadd.f32 0.0, %v2425
        %2427 = vmatprep.mubr.f32.mxu0 0.0
        %2428 = vmatmul.mubr.f32.gmra.mrb[0].mxu0 %v761
        %v2429 = vpop.f32.mrb[0].mxu0
        %v2430 = vadd.f32 0.0, %v2429
        %v2431 = vpop.f32.mrb[0].mxu0
        %v2432 = vadd.f32 0.0, %v2431
        %2433 = vmatprep.mubr.f32.mxu0 0.0
        %2434 = vmatmul.mubr.f32.gmra.mrb[0].mxu0 %v764
        %v2435 = vpop.f32.mrb[0].mxu0
        %v2436 = vadd.f32 0.0, %v2435
        %v2437 = vpop.f32.mrb[0].mxu0
        %v2438 = vadd.f32 0.0, %v2437
        %2439 = vmatprep.mubr.f32.mxu0 0.0
        %2440 = vmatmul.mubr.f32.gmra.mrb[0].mxu0 %v1966
        %v2441 = vpop.f32.mrb[0].mxu0
        %v2442 = vadd.f32 0.0, %v2441
        %v2443 = vpop.f32.mrb[0].mxu0
        %v2444 = vadd.f32 0.0, %v2443
        %2445 = vmatprep.mubr.f32.mxu0 0.0
        %2446 = vmatmul.mubr.f32.gmra.mrb[0].mxu0 %v1969
        %v2447 = vpop.f32.mrb[0].mxu0
        %v2448 = vadd.f32 0.0, %v2447
        %v2449 = vpop.f32.mrb[0].mxu0
        %v2450 = vadd.f32 0.0, %v2449
        %2451 = vdwg.mxu0
        %v2452 = vadd.f32 %v1917, %v2310
        %v2453 = vadd.f32 %v1918, %v2312
        %v2454 = vadd.f32 %v1919, %v2316
        %v2455 = vadd.f32 %v1920, %v2318
        %v2456 = vadd.f32 %v1921, %v2322
        %v2457 = vadd.f32 %v1922, %v2324
        %v2458 = vadd.f32 %v1923, %v2328
        %v2459 = vadd.f32 %v1924, %v2330
        %v2460 = vadd.f32 %v1925, %v2334
        %v2461 = vadd.f32 %v1926, %v2336
        %v2462 = vadd.f32 %v1927, %v2340
        %v2463 = vadd.f32 %v1928, %v2342
        %v2464 = vadd.f32 %v1929, %v2346
        %v2465 = vadd.f32 %v1930, %v2348
        %v2466 = vadd.f32 %v1931, %v2352
        %v2467 = vadd.f32 %v1932, %v2354
        %v2468 = vadd.f32 %v1933, %v2358
        %v2469 = vadd.f32 %v1934, %v2360
        %v2470 = vadd.f32 %v1935, %v2364
        %v2471 = vadd.f32 %v1936, %v2366
        %v2472 = vadd.f32 %v1937, %v2370
        %v2473 = vadd.f32 %v1938, %v2372
        %v2474 = vadd.f32 %v1939, %v2376
        %v2475 = vadd.f32 %v1940, %v2378
        %v2476 = vadd.f32 %v1941, %v2382
        %v2477 = vadd.f32 %v1942, %v2384
        %v2478 = vadd.f32 %v1943, %v2388
        %v2479 = vadd.f32 %v1944, %v2390
        %v2480 = vadd.f32 %v1945, %v2394
        %v2481 = vadd.f32 %v1946, %v2396
        %v2482 = vadd.f32 %v1947, %v2400
        %v2483 = vadd.f32 %v1948, %v2402
        %v2484 = vadd.f32 %v1949, %v2406
        %v2485 = vadd.f32 %v1950, %v2408
        %v2486 = vadd.f32 %v1951, %v2412
        %v2487 = vadd.f32 %v1952, %v2414
        %v2488 = vadd.f32 %v1953, %v2418
        %v2489 = vadd.f32 %v1954, %v2420
        %v2490 = vadd.f32 %v1955, %v2424
        %v2491 = vadd.f32 %v1956, %v2426
        %v2492 = vadd.f32 %v1957, %v2430
        %v2493 = vadd.f32 %v1958, %v2432
        %v2494 = vadd.f32 %v1959, %v2436
        %v2495 = vadd.f32 %v1960, %v2438
        %v2496 = vadd.f32 %v1961, %v2442
        %v2497 = vadd.f32 %v1962, %v2444
        %v2498 = vadd.f32 %v1963, %v2448
        %v2499 = vadd.f32 %v1964, %v2450
        %v2501 = vsel %vm693, %v672, 0
        %v2504 = vsel %vm693, %v673, 0
        %2506 = vmatprep.subr.mxu0 %v2230
        %2507 = vmatpush1.msra.mxu0 %v2229
        %2508 = vmatprep.subr.mxu0 %v2232
        %2509 = vmatpush1.msra.mxu0 %v2231
        %2510 = vmatprep.subr.mxu0 %v2234
        %2511 = vmatpush1.msra.mxu0 %v2233
        %2512 = vmatprep.subr.mxu0 %v2241
        %2513 = vmatpush1.msra.mxu0 %v2238
        %2514 = vmatprep.subr.mxu0 0.0
        %2515 = vmatpush1.msra.mxu0 0.0
        %2516 = vmatprep.subr.mxu0 0.0
        %2517 = vmatpush1.msra.mxu0 0.0
        %2518 = vmatprep.subr.mxu0 0.0
        %2519 = vmatpush1.msra.mxu0 0.0
        %2520 = vmatprep.subr.mxu0 0.0
        %2521 = vmatpush1.msra.mxu0 0.0
        %2522 = vmatprep.subr.mxu0 0.0
        %2523 = vmatpush1.msra.mxu0 0.0
        %2524 = vmatprep.subr.mxu0 0.0
        %2525 = vmatpush1.msra.mxu0 0.0
        %2526 = vmatprep.subr.mxu0 0.0
        %2527 = vmatpush1.msra.mxu0 0.0
        %2528 = vmatprep.subr.mxu0 0.0
        %2529 = vmatpush1.msra.mxu0 0.0
        %2530 = vmatprep.subr.mxu0 0.0
        %2531 = vmatpush1.msra.mxu0 0.0
        %2532 = vmatprep.subr.mxu0 0.0
        %2533 = vmatpush1.msra.mxu0 0.0
        %2534 = vmatprep.subr.mxu0 0.0
        %2535 = vmatpush1.msra.mxu0 0.0
        %2536 = vmatprep.subr.mxu0 0.0
        %2537 = vmatpush1.msra.mxu0 0.0
        %2538 = vmatprep.subr.mxu0 0.0
        %2539 = vmatpush1.msra.mxu0 0.0
        %2540 = vmatprep.subr.mxu0 0.0
        %2541 = vmatpush1.msra.mxu0 0.0
        %2542 = vmatprep.subr.mxu0 0.0
        %2543 = vmatpush1.msra.mxu0 0.0
        %2544 = vmatprep.subr.mxu0 0.0
        %2545 = vmatpush1.msra.mxu0 0.0
        %2546 = vmatprep.subr.mxu0 0.0
        %2547 = vmatpush1.msra.mxu0 0.0
        %2548 = vmatprep.subr.mxu0 0.0
        %2549 = vmatpush1.msra.mxu0 0.0
        %2550 = vmatprep.subr.mxu0 0.0
        %2551 = vmatpush1.msra.mxu0 0.0
        %2552 = vmatprep.subr.mxu0 0.0
        %2553 = vmatpush1.msra.mxu0 0.0
        %2554 = vmatprep.subr.mxu0 0.0
        %2555 = vmatpush1.msra.mxu0 0.0
        %2556 = vmatprep.subr.mxu0 0.0
        %2557 = vmatpush1.msra.mxu0 0.0
        %2558 = vmatprep.subr.mxu0 0.0
        %2559 = vmatpush1.msra.mxu0 0.0
        %2560 = vmatprep.subr.mxu0 0.0
        %2561 = vmatpush1.msra.mxu0 0.0
        %2562 = vmatprep.subr.mxu0 0.0
        %2563 = vmatpush1.msra.mxu0 0.0
        %2564 = vmatprep.subr.mxu0 0.0
        %2565 = vmatpush1.msra.mxu0 0.0
        %2566 = vmatprep.subr.mxu0 0.0
        %2567 = vmatpush1.msra.mxu0 0.0
        %2568 = vmatprep.subr.mxu0 0.0
        %2569 = vmatpush1.msra.mxu0 0.0
        %2570 = vmatprep.mubr.f32.mxu0 0.0
        %2571 = vmatmul.mubr.f32.gmra.mrb[0].mxu0 %v995
        %v2572 = vpop.f32.mrb[0].mxu0
        %v2573 = vadd.f32 0.0, %v2572
        %v2574 = vpop.f32.mrb[0].mxu0
        %v2575 = vadd.f32 0.0, %v2574
        %2576 = vmatprep.mubr.f32.mxu0 0.0
        %2577 = vmatmul.mubr.f32.gmra.mrb[0].mxu0 %v998
        %v2578 = vpop.f32.mrb[0].mxu0
        %v2579 = vadd.f32 0.0, %v2578
        %v2580 = vpop.f32.mrb[0].mxu0
        %v2581 = vadd.f32 0.0, %v2580
        %2582 = vmatprep.mubr.f32.mxu0 0.0
        %2583 = vmatmul.mubr.f32.gmra.mrb[0].mxu0 %v1001
        %v2584 = vpop.f32.mrb[0].mxu0
        %v2585 = vadd.f32 0.0, %v2584
        %v2586 = vpop.f32.mrb[0].mxu0
        %v2587 = vadd.f32 0.0, %v2586
        %2588 = vmatprep.mubr.f32.mxu0 0.0
        %2589 = vmatmul.mubr.f32.gmra.mrb[0].mxu0 %v1004
        %v2590 = vpop.f32.mrb[0].mxu0
        %v2591 = vadd.f32 0.0, %v2590
        %v2592 = vpop.f32.mrb[0].mxu0
        %v2593 = vadd.f32 0.0, %v2592
        %2594 = vmatprep.mubr.f32.mxu0 0.0
        %2595 = vmatmul.mubr.f32.gmra.mrb[0].mxu0 %v1007
        %v2596 = vpop.f32.mrb[0].mxu0
        %v2597 = vadd.f32 0.0, %v2596
        %v2598 = vpop.f32.mrb[0].mxu0
        %v2599 = vadd.f32 0.0, %v2598
        %2600 = vmatprep.mubr.f32.mxu0 0.0
        %2601 = vmatmul.mubr.f32.gmra.mrb[0].mxu0 %v1010
        %v2602 = vpop.f32.mrb[0].mxu0
        %v2603 = vadd.f32 0.0, %v2602
        %v2604 = vpop.f32.mrb[0].mxu0
        %v2605 = vadd.f32 0.0, %v2604
        %2606 = vmatprep.mubr.f32.mxu0 0.0
        %2607 = vmatmul.mubr.f32.gmra.mrb[0].mxu0 %v1013
        %v2608 = vpop.f32.mrb[0].mxu0
        %v2609 = vadd.f32 0.0, %v2608
        %v2610 = vpop.f32.mrb[0].mxu0
        %v2611 = vadd.f32 0.0, %v2610
        %2612 = vmatprep.mubr.f32.mxu0 0.0
        %2613 = vmatmul.mubr.f32.gmra.mrb[0].mxu0 %v1016
        %v2614 = vpop.f32.mrb[0].mxu0
        %v2615 = vadd.f32 0.0, %v2614
        %v2616 = vpop.f32.mrb[0].mxu0
        %v2617 = vadd.f32 0.0, %v2616
        %2618 = vmatprep.mubr.f32.mxu0 0.0
        %2619 = vmatmul.mubr.f32.gmra.mrb[0].mxu0 %v1019
        %v2620 = vpop.f32.mrb[0].mxu0
        %v2621 = vadd.f32 0.0, %v2620
        %v2622 = vpop.f32.mrb[0].mxu0
        %v2623 = vadd.f32 0.0, %v2622
        %2624 = vmatprep.mubr.f32.mxu0 0.0
        %2625 = vmatmul.mubr.f32.gmra.mrb[0].mxu0 %v1022
        %v2626 = vpop.f32.mrb[0].mxu0
        %v2627 = vadd.f32 0.0, %v2626
        %v2628 = vpop.f32.mrb[0].mxu0
        %v2629 = vadd.f32 0.0, %v2628
        %2630 = vmatprep.mubr.f32.mxu0 0.0
        %2631 = vmatmul.mubr.f32.gmra.mrb[0].mxu0 %v1025
        %v2632 = vpop.f32.mrb[0].mxu0
        %v2633 = vadd.f32 0.0, %v2632
        %v2634 = vpop.f32.mrb[0].mxu0
        %v2635 = vadd.f32 0.0, %v2634
        %2636 = vmatprep.mubr.f32.mxu0 0.0
        %2637 = vmatmul.mubr.f32.gmra.mrb[0].mxu0 %v1028
        %v2638 = vpop.f32.mrb[0].mxu0
        %v2639 = vadd.f32 0.0, %v2638
        %v2640 = vpop.f32.mrb[0].mxu0
        %v2641 = vadd.f32 0.0, %v2640
        %2642 = vmatprep.mubr.f32.mxu0 0.0
        %2643 = vmatmul.mubr.f32.gmra.mrb[0].mxu0 %v1031
        %v2644 = vpop.f32.mrb[0].mxu0
        %v2645 = vadd.f32 0.0, %v2644
        %v2646 = vpop.f32.mrb[0].mxu0
        %v2647 = vadd.f32 0.0, %v2646
        %2648 = vmatprep.mubr.f32.mxu0 0.0
        %2649 = vmatmul.mubr.f32.gmra.mrb[0].mxu0 %v1034
        %v2650 = vpop.f32.mrb[0].mxu0
        %v2651 = vadd.f32 0.0, %v2650
        %v2652 = vpop.f32.mrb[0].mxu0
        %v2653 = vadd.f32 0.0, %v2652
        %2654 = vmatprep.mubr.f32.mxu0 0.0
        %2655 = vmatmul.mubr.f32.gmra.mrb[0].mxu0 %v1037
        %v2656 = vpop.f32.mrb[0].mxu0
        %v2657 = vadd.f32 0.0, %v2656
        %v2658 = vpop.f32.mrb[0].mxu0
        %v2659 = vadd.f32 0.0, %v2658
        %2660 = vmatprep.mubr.f32.mxu0 0.0
        %2661 = vmatmul.mubr.f32.gmra.mrb[0].mxu0 %v1040
        %v2662 = vpop.f32.mrb[0].mxu0
        %v2663 = vadd.f32 0.0, %v2662
        %v2664 = vpop.f32.mrb[0].mxu0
        %v2665 = vadd.f32 0.0, %v2664
        %2666 = vmatprep.mubr.f32.mxu0 0.0
        %2667 = vmatmul.mubr.f32.gmra.mrb[0].mxu0 %v1043
        %v2668 = vpop.f32.mrb[0].mxu0
        %v2669 = vadd.f32 0.0, %v2668
        %v2670 = vpop.f32.mrb[0].mxu0
        %v2671 = vadd.f32 0.0, %v2670
        %2672 = vmatprep.mubr.f32.mxu0 0.0
        %2673 = vmatmul.mubr.f32.gmra.mrb[0].mxu0 %v1046
        %v2674 = vpop.f32.mrb[0].mxu0
        %v2675 = vadd.f32 0.0, %v2674
        %v2676 = vpop.f32.mrb[0].mxu0
        %v2677 = vadd.f32 0.0, %v2676
        %2678 = vmatprep.mubr.f32.mxu0 0.0
        %2679 = vmatmul.mubr.f32.gmra.mrb[0].mxu0 %v1049
        %v2680 = vpop.f32.mrb[0].mxu0
        %v2681 = vadd.f32 0.0, %v2680
        %v2682 = vpop.f32.mrb[0].mxu0
        %v2683 = vadd.f32 0.0, %v2682
        %2684 = vmatprep.mubr.f32.mxu0 0.0
        %2685 = vmatmul.mubr.f32.gmra.mrb[0].mxu0 %v1052
        %v2686 = vpop.f32.mrb[0].mxu0
        %v2687 = vadd.f32 0.0, %v2686
        %v2688 = vpop.f32.mrb[0].mxu0
        %v2689 = vadd.f32 0.0, %v2688
        %2690 = vmatprep.mubr.f32.mxu0 0.0
        %2691 = vmatmul.mubr.f32.gmra.mrb[0].mxu0 %v1270
        %v2692 = vpop.f32.mrb[0].mxu0
        %v2693 = vadd.f32 0.0, %v2692
        %v2694 = vpop.f32.mrb[0].mxu0
        %v2695 = vadd.f32 0.0, %v2694
        %2696 = vmatprep.mubr.f32.mxu0 0.0
        %2697 = vmatmul.mubr.f32.gmra.mrb[0].mxu0 %v1273
        %v2698 = vpop.f32.mrb[0].mxu0
        %v2699 = vadd.f32 0.0, %v2698
        %v2700 = vpop.f32.mrb[0].mxu0
        %v2701 = vadd.f32 0.0, %v2700
        %2702 = vmatprep.mubr.f32.mxu0 0.0
        %2703 = vmatmul.mubr.f32.gmra.mrb[0].mxu0 %v2501
        %v2704 = vpop.f32.mrb[0].mxu0
        %v2705 = vadd.f32 0.0, %v2704
        %v2706 = vpop.f32.mrb[0].mxu0
        %v2707 = vadd.f32 0.0, %v2706
        %2708 = vmatprep.mubr.f32.mxu0 0.0
        %2709 = vmatmul.mubr.f32.gmra.mrb[0].mxu0 %v2504
        %v2710 = vpop.f32.mrb[0].mxu0
        %v2711 = vadd.f32 0.0, %v2710
        %v2712 = vpop.f32.mrb[0].mxu0
        %v2713 = vadd.f32 0.0, %v2712
        %2714 = vdwg.mxu0
        %v2715 = vadd.f32 %v2180, %v2573
        %v2716 = vadd.f32 %v2181, %v2575
        %v2717 = vadd.f32 %v2182, %v2579
        %v2718 = vadd.f32 %v2183, %v2581
        %v2719 = vadd.f32 %v2184, %v2585
        %v2720 = vadd.f32 %v2185, %v2587
        %v2721 = vadd.f32 %v2186, %v2591
        %v2722 = vadd.f32 %v2187, %v2593
        %v2723 = vadd.f32 %v2188, %v2597
        %v2724 = vadd.f32 %v2189, %v2599
        %v2725 = vadd.f32 %v2190, %v2603
        %v2726 = vadd.f32 %v2191, %v2605
        %v2727 = vadd.f32 %v2192, %v2609
        %v2728 = vadd.f32 %v2193, %v2611
        %v2729 = vadd.f32 %v2194, %v2615
        %v2730 = vadd.f32 %v2195, %v2617
        %v2731 = vadd.f32 %v2196, %v2621
        %v2732 = vadd.f32 %v2197, %v2623
        %v2733 = vadd.f32 %v2198, %v2627
        %v2734 = vadd.f32 %v2199, %v2629
        %v2735 = vadd.f32 %v2200, %v2633
        %v2736 = vadd.f32 %v2201, %v2635
        %v2737 = vadd.f32 %v2202, %v2639
        %v2738 = vadd.f32 %v2203, %v2641
        %v2739 = vadd.f32 %v2204, %v2645
        %v2740 = vadd.f32 %v2205, %v2647
        %v2741 = vadd.f32 %v2206, %v2651
        %v2742 = vadd.f32 %v2207, %v2653
        %v2743 = vadd.f32 %v2208, %v2657
        %v2744 = vadd.f32 %v2209, %v2659
        %v2745 = vadd.f32 %v2210, %v2663
        %v2746 = vadd.f32 %v2211, %v2665
        %v2747 = vadd.f32 %v2212, %v2669
        %v2748 = vadd.f32 %v2213, %v2671
        %v2749 = vadd.f32 %v2214, %v2675
        %v2750 = vadd.f32 %v2215, %v2677
        %v2751 = vadd.f32 %v2216, %v2681
        %v2752 = vadd.f32 %v2217, %v2683
        %v2753 = vadd.f32 %v2218, %v2687
        %v2754 = vadd.f32 %v2219, %v2689
        %v2755 = vadd.f32 %v2220, %v2693
        %v2756 = vadd.f32 %v2221, %v2695
        %v2757 = vadd.f32 %v2222, %v2699
        %v2758 = vadd.f32 %v2223, %v2701
        %v2759 = vadd.f32 %v2224, %v2705
        %v2760 = vadd.f32 %v2225, %v2707
        %v2761 = vadd.f32 %v2226, %v2711
        %v2762 = vadd.f32 %v2227, %v2713
        %s2763 = scalar_lea.vmem %s1, 256
        %v2764 = vld [vmem:[%s2763] sm:$0xff]
        %v2765 = vld [vmem:[%s2763 + $0x8] sm:$0xff]
        %v2766 = vld [vmem:[%s2763 + $0x10] sm:$0xff]
        %v2767 = vld [vmem:[%s2763 + $0x18] sm:$0xff]
        %v2768 = vld [vmem:[%s2763 + $0x20] sm:$0xff]
        %v2769 = vld [vmem:[%s2763 + $0x28] sm:$0xff]
        %v2770 = vld [vmem:[%s2763 + $0x30] sm:$0xf]
        %v2771 = vld [vmem:[%s2763 + $0x38] sm:$0xf]
        %v2773 = vsel %vm766, %v2770, 0
        %v2776 = vsel %vm766, %v2771, 0
        %2778 = vmatprep.subr.mxu0 %v2765
        %2779 = vmatpush1.msra.mxu0 %v2764
        %2780 = vmatprep.subr.mxu0 %v2767
        %2781 = vmatpush1.msra.mxu0 %v2766
        %2782 = vmatprep.subr.mxu0 %v2769
        %2783 = vmatpush1.msra.mxu0 %v2768
        %2784 = vmatprep.subr.mxu0 %v2776
        %2785 = vmatpush1.msra.mxu0 %v2773
        %2786 = vmatprep.subr.mxu0 0.0
        %2787 = vmatpush1.msra.mxu0 0.0
        %2788 = vmatprep.subr.mxu0 0.0
        %2789 = vmatpush1.msra.mxu0 0.0
        %2790 = vmatprep.subr.mxu0 0.0
        %2791 = vmatpush1.msra.mxu0 0.0
        %2792 = vmatprep.subr.mxu0 0.0
        %2793 = vmatpush1.msra.mxu0 0.0
        %2794 = vmatprep.subr.mxu0 0.0
        %2795 = vmatpush1.msra.mxu0 0.0
        %2796 = vmatprep.subr.mxu0 0.0
        %2797 = vmatpush1.msra.mxu0 0.0
        %2798 = vmatprep.subr.mxu0 0.0
        %2799 = vmatpush1.msra.mxu0 0.0
        %2800 = vmatprep.subr.mxu0 0.0
        %2801 = vmatpush1.msra.mxu0 0.0
        %2802 = vmatprep.subr.mxu0 0.0
        %2803 = vmatpush1.msra.mxu0 0.0
        %2804 = vmatprep.subr.mxu0 0.0
        %2805 = vmatpush1.msra.mxu0 0.0
        %2806 = vmatprep.subr.mxu0 0.0
        %2807 = vmatpush1.msra.mxu0 0.0
        %2808 = vmatprep.subr.mxu0 0.0
        %2809 = vmatpush1.msra.mxu0 0.0
        %2810 = vmatprep.subr.mxu0 0.0
        %2811 = vmatpush1.msra.mxu0 0.0
        %2812 = vmatprep.subr.mxu0 0.0
        %2813 = vmatpush1.msra.mxu0 0.0
        %2814 = vmatprep.subr.mxu0 0.0
        %2815 = vmatpush1.msra.mxu0 0.0
        %2816 = vmatprep.subr.mxu0 0.0
        %2817 = vmatpush1.msra.mxu0 0.0
        %2818 = vmatprep.subr.mxu0 0.0
        %2819 = vmatpush1.msra.mxu0 0.0
        %2820 = vmatprep.subr.mxu0 0.0
        %2821 = vmatpush1.msra.mxu0 0.0
        %2822 = vmatprep.subr.mxu0 0.0
        %2823 = vmatpush1.msra.mxu0 0.0
        %2824 = vmatprep.subr.mxu0 0.0
        %2825 = vmatpush1.msra.mxu0 0.0
        %2826 = vmatprep.subr.mxu0 0.0
        %2827 = vmatpush1.msra.mxu0 0.0
        %2828 = vmatprep.subr.mxu0 0.0
        %2829 = vmatpush1.msra.mxu0 0.0
        %2830 = vmatprep.subr.mxu0 0.0
        %2831 = vmatpush1.msra.mxu0 0.0
        %2832 = vmatprep.subr.mxu0 0.0
        %2833 = vmatpush1.msra.mxu0 0.0
        %2834 = vmatprep.subr.mxu0 0.0
        %2835 = vmatpush1.msra.mxu0 0.0
        %2836 = vmatprep.subr.mxu0 0.0
        %2837 = vmatpush1.msra.mxu0 0.0
        %2838 = vmatprep.subr.mxu0 0.0
        %2839 = vmatpush1.msra.mxu0 0.0
        %2840 = vmatprep.subr.mxu0 0.0
        %2841 = vmatpush1.msra.mxu0 0.0
        %2842 = vmatprep.mubr.f32.mxu0 0.0
        %2843 = vmatmul.mubr.f32.gmra.mrb[0].mxu0 %v995
        %v2844 = vpop.f32.mrb[0].mxu0
        %v2845 = vadd.f32 0.0, %v2844
        %v2846 = vpop.f32.mrb[0].mxu0
        %v2847 = vadd.f32 0.0, %v2846
        %2848 = vmatprep.mubr.f32.mxu0 0.0
        %2849 = vmatmul.mubr.f32.gmra.mrb[0].mxu0 %v998
        %v2850 = vpop.f32.mrb[0].mxu0
        %v2851 = vadd.f32 0.0, %v2850
        %v2852 = vpop.f32.mrb[0].mxu0
        %v2853 = vadd.f32 0.0, %v2852
        %2854 = vmatprep.mubr.f32.mxu0 0.0
        %2855 = vmatmul.mubr.f32.gmra.mrb[0].mxu0 %v1001
        %v2856 = vpop.f32.mrb[0].mxu0
        %v2857 = vadd.f32 0.0, %v2856
        %v2858 = vpop.f32.mrb[0].mxu0
        %v2859 = vadd.f32 0.0, %v2858
        %2860 = vmatprep.mubr.f32.mxu0 0.0
        %2861 = vmatmul.mubr.f32.gmra.mrb[0].mxu0 %v1004
        %v2862 = vpop.f32.mrb[0].mxu0
        %v2863 = vadd.f32 0.0, %v2862
        %v2864 = vpop.f32.mrb[0].mxu0
        %v2865 = vadd.f32 0.0, %v2864
        %2866 = vmatprep.mubr.f32.mxu0 0.0
        %2867 = vmatmul.mubr.f32.gmra.mrb[0].mxu0 %v1007
        %v2868 = vpop.f32.mrb[0].mxu0
        %v2869 = vadd.f32 0.0, %v2868
        %v2870 = vpop.f32.mrb[0].mxu0
        %v2871 = vadd.f32 0.0, %v2870
        %2872 = vmatprep.mubr.f32.mxu0 0.0
        %2873 = vmatmul.mubr.f32.gmra.mrb[0].mxu0 %v1010
        %v2874 = vpop.f32.mrb[0].mxu0
        %v2875 = vadd.f32 0.0, %v2874
        %v2876 = vpop.f32.mrb[0].mxu0
        %v2877 = vadd.f32 0.0, %v2876
        %2878 = vmatprep.mubr.f32.mxu0 0.0
        %2879 = vmatmul.mubr.f32.gmra.mrb[0].mxu0 %v1013
        %v2880 = vpop.f32.mrb[0].mxu0
        %v2881 = vadd.f32 0.0, %v2880
        %v2882 = vpop.f32.mrb[0].mxu0
        %v2883 = vadd.f32 0.0, %v2882
        %2884 = vmatprep.mubr.f32.mxu0 0.0
        %2885 = vmatmul.mubr.f32.gmra.mrb[0].mxu0 %v1016
        %v2886 = vpop.f32.mrb[0].mxu0
        %v2887 = vadd.f32 0.0, %v2886
        %v2888 = vpop.f32.mrb[0].mxu0
        %v2889 = vadd.f32 0.0, %v2888
        %2890 = vmatprep.mubr.f32.mxu0 0.0
        %2891 = vmatmul.mubr.f32.gmra.mrb[0].mxu0 %v1019
        %v2892 = vpop.f32.mrb[0].mxu0
        %v2893 = vadd.f32 0.0, %v2892
        %v2894 = vpop.f32.mrb[0].mxu0
        %v2895 = vadd.f32 0.0, %v2894
        %2896 = vmatprep.mubr.f32.mxu0 0.0
        %2897 = vmatmul.mubr.f32.gmra.mrb[0].mxu0 %v1022
        %v2898 = vpop.f32.mrb[0].mxu0
        %v2899 = vadd.f32 0.0, %v2898
        %v2900 = vpop.f32.mrb[0].mxu0
        %v2901 = vadd.f32 0.0, %v2900
        %2902 = vmatprep.mubr.f32.mxu0 0.0
        %2903 = vmatmul.mubr.f32.gmra.mrb[0].mxu0 %v1025
        %v2904 = vpop.f32.mrb[0].mxu0
        %v2905 = vadd.f32 0.0, %v2904
        %v2906 = vpop.f32.mrb[0].mxu0
        %v2907 = vadd.f32 0.0, %v2906
        %2908 = vmatprep.mubr.f32.mxu0 0.0
        %2909 = vmatmul.mubr.f32.gmra.mrb[0].mxu0 %v1028
        %v2910 = vpop.f32.mrb[0].mxu0
        %v2911 = vadd.f32 0.0, %v2910
        %v2912 = vpop.f32.mrb[0].mxu0
        %v2913 = vadd.f32 0.0, %v2912
        %2914 = vmatprep.mubr.f32.mxu0 0.0
        %2915 = vmatmul.mubr.f32.gmra.mrb[0].mxu0 %v1031
        %v2916 = vpop.f32.mrb[0].mxu0
        %v2917 = vadd.f32 0.0, %v2916
        %v2918 = vpop.f32.mrb[0].mxu0
        %v2919 = vadd.f32 0.0, %v2918
        %2920 = vmatprep.mubr.f32.mxu0 0.0
        %2921 = vmatmul.mubr.f32.gmra.mrb[0].mxu0 %v1034
        %v2922 = vpop.f32.mrb[0].mxu0
        %v2923 = vadd.f32 0.0, %v2922
        %v2924 = vpop.f32.mrb[0].mxu0
        %v2925 = vadd.f32 0.0, %v2924
        %2926 = vmatprep.mubr.f32.mxu0 0.0
        %2927 = vmatmul.mubr.f32.gmra.mrb[0].mxu0 %v1037
        %v2928 = vpop.f32.mrb[0].mxu0
        %v2929 = vadd.f32 0.0, %v2928
        %v2930 = vpop.f32.mrb[0].mxu0
        %v2931 = vadd.f32 0.0, %v2930
        %2932 = vmatprep.mubr.f32.mxu0 0.0
        %2933 = vmatmul.mubr.f32.gmra.mrb[0].mxu0 %v1040
        %v2934 = vpop.f32.mrb[0].mxu0
        %v2935 = vadd.f32 0.0, %v2934
        %v2936 = vpop.f32.mrb[0].mxu0
        %v2937 = vadd.f32 0.0, %v2936
        %2938 = vmatprep.mubr.f32.mxu0 0.0
        %2939 = vmatmul.mubr.f32.gmra.mrb[0].mxu0 %v1043
        %v2940 = vpop.f32.mrb[0].mxu0
        %v2941 = vadd.f32 0.0, %v2940
        %v2942 = vpop.f32.mrb[0].mxu0
        %v2943 = vadd.f32 0.0, %v2942
        %2944 = vmatprep.mubr.f32.mxu0 0.0
        %2945 = vmatmul.mubr.f32.gmra.mrb[0].mxu0 %v1046
        %v2946 = vpop.f32.mrb[0].mxu0
        %v2947 = vadd.f32 0.0, %v2946
        %v2948 = vpop.f32.mrb[0].mxu0
        %v2949 = vadd.f32 0.0, %v2948
        %2950 = vmatprep.mubr.f32.mxu0 0.0
        %2951 = vmatmul.mubr.f32.gmra.mrb[0].mxu0 %v1049
        %v2952 = vpop.f32.mrb[0].mxu0
        %v2953 = vadd.f32 0.0, %v2952
        %v2954 = vpop.f32.mrb[0].mxu0
        %v2955 = vadd.f32 0.0, %v2954
        %2956 = vmatprep.mubr.f32.mxu0 0.0
        %2957 = vmatmul.mubr.f32.gmra.mrb[0].mxu0 %v1052
        %v2958 = vpop.f32.mrb[0].mxu0
        %v2959 = vadd.f32 0.0, %v2958
        %v2960 = vpop.f32.mrb[0].mxu0
        %v2961 = vadd.f32 0.0, %v2960
        %2962 = vmatprep.mubr.f32.mxu0 0.0
        %2963 = vmatmul.mubr.f32.gmra.mrb[0].mxu0 %v1270
        %v2964 = vpop.f32.mrb[0].mxu0
        %v2965 = vadd.f32 0.0, %v2964
        %v2966 = vpop.f32.mrb[0].mxu0
        %v2967 = vadd.f32 0.0, %v2966
        %2968 = vmatprep.mubr.f32.mxu0 0.0
        %2969 = vmatmul.mubr.f32.gmra.mrb[0].mxu0 %v1273
        %v2970 = vpop.f32.mrb[0].mxu0
        %v2971 = vadd.f32 0.0, %v2970
        %v2972 = vpop.f32.mrb[0].mxu0
        %v2973 = vadd.f32 0.0, %v2972
        %2974 = vmatprep.mubr.f32.mxu0 0.0
        %2975 = vmatmul.mubr.f32.gmra.mrb[0].mxu0 %v2501
        %v2976 = vpop.f32.mrb[0].mxu0
        %v2977 = vadd.f32 0.0, %v2976
        %v2978 = vpop.f32.mrb[0].mxu0
        %v2979 = vadd.f32 0.0, %v2978
        %2980 = vmatprep.mubr.f32.mxu0 0.0
        %2981 = vmatmul.mubr.f32.gmra.mrb[0].mxu0 %v2504
        %v2982 = vpop.f32.mrb[0].mxu0
        %v2983 = vadd.f32 0.0, %v2982
        %v2984 = vpop.f32.mrb[0].mxu0
        %v2985 = vadd.f32 0.0, %v2984
        %2986 = vdwg.mxu0
        %v2987 = vadd.f32 %v2452, %v2845
        %v2988 = vadd.f32 %v2453, %v2847
        %v2989 = vadd.f32 %v2454, %v2851
        %v2990 = vadd.f32 %v2455, %v2853
        %v2991 = vadd.f32 %v2456, %v2857
        %v2992 = vadd.f32 %v2457, %v2859
        %v2993 = vadd.f32 %v2458, %v2863
        %v2994 = vadd.f32 %v2459, %v2865
        %v2995 = vadd.f32 %v2460, %v2869
        %v2996 = vadd.f32 %v2461, %v2871
        %v2997 = vadd.f32 %v2462, %v2875
        %v2998 = vadd.f32 %v2463, %v2877
        %v2999 = vadd.f32 %v2464, %v2881
        %v3000 = vadd.f32 %v2465, %v2883
        %v3001 = vadd.f32 %v2466, %v2887
        %v3002 = vadd.f32 %v2467, %v2889
        %v3003 = vadd.f32 %v2468, %v2893
        %v3004 = vadd.f32 %v2469, %v2895
        %v3005 = vadd.f32 %v2470, %v2899
        %v3006 = vadd.f32 %v2471, %v2901
        %v3007 = vadd.f32 %v2472, %v2905
        %v3008 = vadd.f32 %v2473, %v2907
        %v3009 = vadd.f32 %v2474, %v2911
        %v3010 = vadd.f32 %v2475, %v2913
        %v3011 = vadd.f32 %v2476, %v2917
        %v3012 = vadd.f32 %v2477, %v2919
        %v3013 = vadd.f32 %v2478, %v2923
        %v3014 = vadd.f32 %v2479, %v2925
        %v3015 = vadd.f32 %v2480, %v2929
        %v3016 = vadd.f32 %v2481, %v2931
        %v3017 = vadd.f32 %v2482, %v2935
        %v3018 = vadd.f32 %v2483, %v2937
        %v3019 = vadd.f32 %v2484, %v2941
        %v3020 = vadd.f32 %v2485, %v2943
        %v3021 = vadd.f32 %v2486, %v2947
        %v3022 = vadd.f32 %v2487, %v2949
        %v3023 = vadd.f32 %v2488, %v2953
        %v3024 = vadd.f32 %v2489, %v2955
        %v3025 = vadd.f32 %v2490, %v2959
        %v3026 = vadd.f32 %v2491, %v2961
        %v3027 = vadd.f32 %v2492, %v2965
        %v3028 = vadd.f32 %v2493, %v2967
        %v3029 = vadd.f32 %v2494, %v2971
        %v3030 = vadd.f32 %v2495, %v2973
        %v3031 = vadd.f32 %v2496, %v2977
        %v3032 = vadd.f32 %v2497, %v2979
        %v3033 = vadd.f32 %v2498, %v2983
        %v3034 = vadd.f32 %v2499, %v2985
        %v3036 = vsel %vm693, %v674, 0
        %v3039 = vsel %vm693, %v675, 0
        %3041 = vmatprep.subr.mxu0 %v2765
        %3042 = vmatpush1.msra.mxu0 %v2764
        %3043 = vmatprep.subr.mxu0 %v2767
        %3044 = vmatpush1.msra.mxu0 %v2766
        %3045 = vmatprep.subr.mxu0 %v2769
        %3046 = vmatpush1.msra.mxu0 %v2768
        %3047 = vmatprep.subr.mxu0 %v2776
        %3048 = vmatpush1.msra.mxu0 %v2773
        %3049 = vmatprep.subr.mxu0 0.0
        %3050 = vmatpush1.msra.mxu0 0.0
        %3051 = vmatprep.subr.mxu0 0.0
        %3052 = vmatpush1.msra.mxu0 0.0
        %3053 = vmatprep.subr.mxu0 0.0
        %3054 = vmatpush1.msra.mxu0 0.0
        %3055 = vmatprep.subr.mxu0 0.0
        %3056 = vmatpush1.msra.mxu0 0.0
        %3057 = vmatprep.subr.mxu0 0.0
        %3058 = vmatpush1.msra.mxu0 0.0
        %3059 = vmatprep.subr.mxu0 0.0
        %3060 = vmatpush1.msra.mxu0 0.0
        %3061 = vmatprep.subr.mxu0 0.0
        %3062 = vmatpush1.msra.mxu0 0.0
        %3063 = vmatprep.subr.mxu0 0.0
        %3064 = vmatpush1.msra.mxu0 0.0
        %3065 = vmatprep.subr.mxu0 0.0
        %3066 = vmatpush1.msra.mxu0 0.0
        %3067 = vmatprep.subr.mxu0 0.0
        %3068 = vmatpush1.msra.mxu0 0.0
        %3069 = vmatprep.subr.mxu0 0.0
        %3070 = vmatpush1.msra.mxu0 0.0
        %3071 = vmatprep.subr.mxu0 0.0
        %3072 = vmatpush1.msra.mxu0 0.0
        %3073 = vmatprep.subr.mxu0 0.0
        %3074 = vmatpush1.msra.mxu0 0.0
        %3075 = vmatprep.subr.mxu0 0.0
        %3076 = vmatpush1.msra.mxu0 0.0
        %3077 = vmatprep.subr.mxu0 0.0
        %3078 = vmatpush1.msra.mxu0 0.0
        %3079 = vmatprep.subr.mxu0 0.0
        %3080 = vmatpush1.msra.mxu0 0.0
        %3081 = vmatprep.subr.mxu0 0.0
        %3082 = vmatpush1.msra.mxu0 0.0
        %3083 = vmatprep.subr.mxu0 0.0
        %3084 = vmatpush1.msra.mxu0 0.0
        %3085 = vmatprep.subr.mxu0 0.0
        %3086 = vmatpush1.msra.mxu0 0.0
        %3087 = vmatprep.subr.mxu0 0.0
        %3088 = vmatpush1.msra.mxu0 0.0
        %3089 = vmatprep.subr.mxu0 0.0
        %3090 = vmatpush1.msra.mxu0 0.0
        %3091 = vmatprep.subr.mxu0 0.0
        %3092 = vmatpush1.msra.mxu0 0.0
        %3093 = vmatprep.subr.mxu0 0.0
        %3094 = vmatpush1.msra.mxu0 0.0
        %3095 = vmatprep.subr.mxu0 0.0
        %3096 = vmatpush1.msra.mxu0 0.0
        %3097 = vmatprep.subr.mxu0 0.0
        %3098 = vmatpush1.msra.mxu0 0.0
        %3099 = vmatprep.subr.mxu0 0.0
        %3100 = vmatpush1.msra.mxu0 0.0
        %3101 = vmatprep.subr.mxu0 0.0
        %3102 = vmatpush1.msra.mxu0 0.0
        %3103 = vmatprep.subr.mxu0 0.0
        %3104 = vmatpush1.msra.mxu0 0.0
        %3105 = vmatprep.mubr.f32.mxu0 0.0
        %3106 = vmatmul.mubr.f32.gmra.mrb[0].mxu0 %v707
        %v3107 = vpop.f32.mrb[0].mxu0
        %v3108 = vadd.f32 0.0, %v3107
        %v3109 = vpop.f32.mrb[0].mxu0
        %v3110 = vadd.f32 0.0, %v3109
        %3111 = vmatprep.mubr.f32.mxu0 0.0
        %3112 = vmatmul.mubr.f32.gmra.mrb[0].mxu0 %v710
        %v3113 = vpop.f32.mrb[0].mxu0
        %v3114 = vadd.f32 0.0, %v3113
        %v3115 = vpop.f32.mrb[0].mxu0
        %v3116 = vadd.f32 0.0, %v3115
        %3117 = vmatprep.mubr.f32.mxu0 0.0
        %3118 = vmatmul.mubr.f32.gmra.mrb[0].mxu0 %v713
        %v3119 = vpop.f32.mrb[0].mxu0
        %v3120 = vadd.f32 0.0, %v3119
        %v3121 = vpop.f32.mrb[0].mxu0
        %v3122 = vadd.f32 0.0, %v3121
        %3123 = vmatprep.mubr.f32.mxu0 0.0
        %3124 = vmatmul.mubr.f32.gmra.mrb[0].mxu0 %v716
        %v3125 = vpop.f32.mrb[0].mxu0
        %v3126 = vadd.f32 0.0, %v3125
        %v3127 = vpop.f32.mrb[0].mxu0
        %v3128 = vadd.f32 0.0, %v3127
        %3129 = vmatprep.mubr.f32.mxu0 0.0
        %3130 = vmatmul.mubr.f32.gmra.mrb[0].mxu0 %v719
        %v3131 = vpop.f32.mrb[0].mxu0
        %v3132 = vadd.f32 0.0, %v3131
        %v3133 = vpop.f32.mrb[0].mxu0
        %v3134 = vadd.f32 0.0, %v3133
        %3135 = vmatprep.mubr.f32.mxu0 0.0
        %3136 = vmatmul.mubr.f32.gmra.mrb[0].mxu0 %v722
        %v3137 = vpop.f32.mrb[0].mxu0
        %v3138 = vadd.f32 0.0, %v3137
        %v3139 = vpop.f32.mrb[0].mxu0
        %v3140 = vadd.f32 0.0, %v3139
        %3141 = vmatprep.mubr.f32.mxu0 0.0
        %3142 = vmatmul.mubr.f32.gmra.mrb[0].mxu0 %v725
        %v3143 = vpop.f32.mrb[0].mxu0
        %v3144 = vadd.f32 0.0, %v3143
        %v3145 = vpop.f32.mrb[0].mxu0
        %v3146 = vadd.f32 0.0, %v3145
        %3147 = vmatprep.mubr.f32.mxu0 0.0
        %3148 = vmatmul.mubr.f32.gmra.mrb[0].mxu0 %v728
        %v3149 = vpop.f32.mrb[0].mxu0
        %v3150 = vadd.f32 0.0, %v3149
        %v3151 = vpop.f32.mrb[0].mxu0
        %v3152 = vadd.f32 0.0, %v3151
        %3153 = vmatprep.mubr.f32.mxu0 0.0
        %3154 = vmatmul.mubr.f32.gmra.mrb[0].mxu0 %v731
        %v3155 = vpop.f32.mrb[0].mxu0
        %v3156 = vadd.f32 0.0, %v3155
        %v3157 = vpop.f32.mrb[0].mxu0
        %v3158 = vadd.f32 0.0, %v3157
        %3159 = vmatprep.mubr.f32.mxu0 0.0
        %3160 = vmatmul.mubr.f32.gmra.mrb[0].mxu0 %v734
        %v3161 = vpop.f32.mrb[0].mxu0
        %v3162 = vadd.f32 0.0, %v3161
        %v3163 = vpop.f32.mrb[0].mxu0
        %v3164 = vadd.f32 0.0, %v3163
        %3165 = vmatprep.mubr.f32.mxu0 0.0
        %3166 = vmatmul.mubr.f32.gmra.mrb[0].mxu0 %v737
        %v3167 = vpop.f32.mrb[0].mxu0
        %v3168 = vadd.f32 0.0, %v3167
        %v3169 = vpop.f32.mrb[0].mxu0
        %v3170 = vadd.f32 0.0, %v3169
        %3171 = vmatprep.mubr.f32.mxu0 0.0
        %3172 = vmatmul.mubr.f32.gmra.mrb[0].mxu0 %v740
        %v3173 = vpop.f32.mrb[0].mxu0
        %v3174 = vadd.f32 0.0, %v3173
        %v3175 = vpop.f32.mrb[0].mxu0
        %v3176 = vadd.f32 0.0, %v3175
        %3177 = vmatprep.mubr.f32.mxu0 0.0
        %3178 = vmatmul.mubr.f32.gmra.mrb[0].mxu0 %v743
        %v3179 = vpop.f32.mrb[0].mxu0
        %v3180 = vadd.f32 0.0, %v3179
        %v3181 = vpop.f32.mrb[0].mxu0
        %v3182 = vadd.f32 0.0, %v3181
        %3183 = vmatprep.mubr.f32.mxu0 0.0
        %3184 = vmatmul.mubr.f32.gmra.mrb[0].mxu0 %v746
        %v3185 = vpop.f32.mrb[0].mxu0
        %v3186 = vadd.f32 0.0, %v3185
        %v3187 = vpop.f32.mrb[0].mxu0
        %v3188 = vadd.f32 0.0, %v3187
        %3189 = vmatprep.mubr.f32.mxu0 0.0
        %3190 = vmatmul.mubr.f32.gmra.mrb[0].mxu0 %v749
        %v3191 = vpop.f32.mrb[0].mxu0
        %v3192 = vadd.f32 0.0, %v3191
        %v3193 = vpop.f32.mrb[0].mxu0
        %v3194 = vadd.f32 0.0, %v3193
        %3195 = vmatprep.mubr.f32.mxu0 0.0
        %3196 = vmatmul.mubr.f32.gmra.mrb[0].mxu0 %v752
        %v3197 = vpop.f32.mrb[0].mxu0
        %v3198 = vadd.f32 0.0, %v3197
        %v3199 = vpop.f32.mrb[0].mxu0
        %v3200 = vadd.f32 0.0, %v3199
        %3201 = vmatprep.mubr.f32.mxu0 0.0
        %3202 = vmatmul.mubr.f32.gmra.mrb[0].mxu0 %v755
        %v3203 = vpop.f32.mrb[0].mxu0
        %v3204 = vadd.f32 0.0, %v3203
        %v3205 = vpop.f32.mrb[0].mxu0
        %v3206 = vadd.f32 0.0, %v3205
        %3207 = vmatprep.mubr.f32.mxu0 0.0
        %3208 = vmatmul.mubr.f32.gmra.mrb[0].mxu0 %v758
        %v3209 = vpop.f32.mrb[0].mxu0
        %v3210 = vadd.f32 0.0, %v3209
        %v3211 = vpop.f32.mrb[0].mxu0
        %v3212 = vadd.f32 0.0, %v3211
        %3213 = vmatprep.mubr.f32.mxu0 0.0
        %3214 = vmatmul.mubr.f32.gmra.mrb[0].mxu0 %v761
        %v3215 = vpop.f32.mrb[0].mxu0
        %v3216 = vadd.f32 0.0, %v3215
        %v3217 = vpop.f32.mrb[0].mxu0
        %v3218 = vadd.f32 0.0, %v3217
        %3219 = vmatprep.mubr.f32.mxu0 0.0
        %3220 = vmatmul.mubr.f32.gmra.mrb[0].mxu0 %v764
        %v3221 = vpop.f32.mrb[0].mxu0
        %v3222 = vadd.f32 0.0, %v3221
        %v3223 = vpop.f32.mrb[0].mxu0
        %v3224 = vadd.f32 0.0, %v3223
        %3225 = vmatprep.mubr.f32.mxu0 0.0
        %3226 = vmatmul.mubr.f32.gmra.mrb[0].mxu0 %v1966
        %v3227 = vpop.f32.mrb[0].mxu0
        %v3228 = vadd.f32 0.0, %v3227
        %v3229 = vpop.f32.mrb[0].mxu0
        %v3230 = vadd.f32 0.0, %v3229
        %3231 = vmatprep.mubr.f32.mxu0 0.0
        %3232 = vmatmul.mubr.f32.gmra.mrb[0].mxu0 %v1969
        %v3233 = vpop.f32.mrb[0].mxu0
        %v3234 = vadd.f32 0.0, %v3233
        %v3235 = vpop.f32.mrb[0].mxu0
        %v3236 = vadd.f32 0.0, %v3235
        %3237 = vmatprep.mubr.f32.mxu0 0.0
        %3238 = vmatmul.mubr.f32.gmra.mrb[0].mxu0 %v3036
        %v3239 = vpop.f32.mrb[0].mxu0
        %v3240 = vadd.f32 0.0, %v3239
        %v3241 = vpop.f32.mrb[0].mxu0
        %v3242 = vadd.f32 0.0, %v3241
        %3243 = vmatprep.mubr.f32.mxu0 0.0
        %3244 = vmatmul.mubr.f32.gmra.mrb[0].mxu0 %v3039
        %v3245 = vpop.f32.mrb[0].mxu0
        %v3246 = vadd.f32 0.0, %v3245
        %v3247 = vpop.f32.mrb[0].mxu0
        %v3248 = vadd.f32 0.0, %v3247
        %3249 = vdwg.mxu0
        %v3250 = vadd.f32 %v2715, %v3108
        %v3251 = vadd.f32 %v2716, %v3110
        %v3252 = vadd.f32 %v2717, %v3114
        %v3253 = vadd.f32 %v2718, %v3116
        %v3254 = vadd.f32 %v2719, %v3120
        %v3255 = vadd.f32 %v2720, %v3122
        %v3256 = vadd.f32 %v2721, %v3126
        %v3257 = vadd.f32 %v2722, %v3128
        %v3258 = vadd.f32 %v2723, %v3132
        %v3259 = vadd.f32 %v2724, %v3134
        %v3260 = vadd.f32 %v2725, %v3138
        %v3261 = vadd.f32 %v2726, %v3140
        %v3262 = vadd.f32 %v2727, %v3144
        %v3263 = vadd.f32 %v2728, %v3146
        %v3264 = vadd.f32 %v2729, %v3150
        %v3265 = vadd.f32 %v2730, %v3152
        %v3266 = vadd.f32 %v2731, %v3156
        %v3267 = vadd.f32 %v2732, %v3158
        %v3268 = vadd.f32 %v2733, %v3162
        %v3269 = vadd.f32 %v2734, %v3164
        %v3270 = vadd.f32 %v2735, %v3168
        %v3271 = vadd.f32 %v2736, %v3170
        %v3272 = vadd.f32 %v2737, %v3174
        %v3273 = vadd.f32 %v2738, %v3176
        %v3274 = vadd.f32 %v2739, %v3180
        %v3275 = vadd.f32 %v2740, %v3182
        %v3276 = vadd.f32 %v2741, %v3186
        %v3277 = vadd.f32 %v2742, %v3188
        %v3278 = vadd.f32 %v2743, %v3192
        %v3279 = vadd.f32 %v2744, %v3194
        %v3280 = vadd.f32 %v2745, %v3198
        %v3281 = vadd.f32 %v2746, %v3200
        %v3282 = vadd.f32 %v2747, %v3204
        %v3283 = vadd.f32 %v2748, %v3206
        %v3284 = vadd.f32 %v2749, %v3210
        %v3285 = vadd.f32 %v2750, %v3212
        %v3286 = vadd.f32 %v2751, %v3216
        %v3287 = vadd.f32 %v2752, %v3218
        %v3288 = vadd.f32 %v2753, %v3222
        %v3289 = vadd.f32 %v2754, %v3224
        %v3290 = vadd.f32 %v2755, %v3228
        %v3291 = vadd.f32 %v2756, %v3230
        %v3292 = vadd.f32 %v2757, %v3234
        %v3293 = vadd.f32 %v2758, %v3236
        %v3294 = vadd.f32 %v2759, %v3240
        %v3295 = vadd.f32 %v2760, %v3242
        %v3296 = vadd.f32 %v2761, %v3246
        %v3297 = vadd.f32 %v2762, %v3248
        %v3298 = vmax.f32 %v2987, %v3250
        %v3299 = vmax.f32 %v2988, %v3251
        %v3300 = vmax.f32 %v2989, %v3252
        %v3301 = vmax.f32 %v2990, %v3253
        %v3302 = vmax.f32 %v2991, %v3254
        %v3303 = vmax.f32 %v2992, %v3255
        %v3304 = vmax.f32 %v2993, %v3256
        %v3305 = vmax.f32 %v2994, %v3257
        %v3306 = vmax.f32 %v2995, %v3258
        %v3307 = vmax.f32 %v2996, %v3259
        %v3308 = vmax.f32 %v2997, %v3260
        %v3309 = vmax.f32 %v2998, %v3261
        %v3310 = vmax.f32 %v2999, %v3262
        %v3311 = vmax.f32 %v3000, %v3263
        %v3312 = vmax.f32 %v3001, %v3264
        %v3313 = vmax.f32 %v3002, %v3265
        %v3314 = vmax.f32 %v3003, %v3266
        %v3315 = vmax.f32 %v3004, %v3267
        %v3316 = vmax.f32 %v3005, %v3268
        %v3317 = vmax.f32 %v3006, %v3269
        %v3318 = vmax.f32 %v3007, %v3270
        %v3319 = vmax.f32 %v3008, %v3271
        %v3320 = vmax.f32 %v3009, %v3272
        %v3321 = vmax.f32 %v3010, %v3273
        %v3322 = vmax.f32 %v3011, %v3274
        %v3323 = vmax.f32 %v3012, %v3275
        %v3324 = vmax.f32 %v3013, %v3276
        %v3325 = vmax.f32 %v3014, %v3277
        %v3326 = vmax.f32 %v3015, %v3278
        %v3327 = vmax.f32 %v3016, %v3279
        %v3328 = vmax.f32 %v3017, %v3280
        %v3329 = vmax.f32 %v3018, %v3281
        %v3330 = vmax.f32 %v3019, %v3282
        %v3331 = vmax.f32 %v3020, %v3283
        %v3332 = vmax.f32 %v3021, %v3284
        %v3333 = vmax.f32 %v3022, %v3285
        %v3334 = vmax.f32 %v3023, %v3286
        %v3335 = vmax.f32 %v3024, %v3287
        %v3336 = vmax.f32 %v3025, %v3288
        %v3337 = vmax.f32 %v3026, %v3289
        %v3338 = vmax.f32 %v3027, %v3290
        %v3339 = vmax.f32 %v3028, %v3291
        %v3340 = vmax.f32 %v3029, %v3292
        %v3341 = vmax.f32 %v3030, %v3293
        %v3342 = vmax.f32 %v3031, %v3294
        %v3343 = vmax.f32 %v3032, %v3295
        %v3344 = vmax.f32 %v3033, %v3296
        %v3345 = vmax.f32 %v3034, %v3297
        %v3346 = vmax.f32 %v3298, %v3299
        %v3347 = vmax.f32 %v3300, %v3301
        %v3348 = vmax.f32 %v3302, %v3303
        %v3349 = vmax.f32 %v3304, %v3305
        %v3350 = vmax.f32 %v3306, %v3307
        %v3351 = vmax.f32 %v3308, %v3309
        %v3352 = vmax.f32 %v3310, %v3311
        %v3353 = vmax.f32 %v3312, %v3313
        %v3354 = vmax.f32 %v3314, %v3315
        %v3355 = vmax.f32 %v3316, %v3317
        %v3356 = vmax.f32 %v3318, %v3319
        %v3357 = vmax.f32 %v3320, %v3321
        %v3358 = vmax.f32 %v3322, %v3323
        %v3359 = vmax.f32 %v3324, %v3325
        %v3360 = vmax.f32 %v3326, %v3327
        %v3361 = vmax.f32 %v3328, %v3329
        %v3362 = vmax.f32 %v3330, %v3331
        %v3363 = vmax.f32 %v3332, %v3333
        %v3364 = vmax.f32 %v3334, %v3335
        %v3365 = vmax.f32 %v3336, %v3337
        %v3366 = vmax.f32 %v3338, %v3339
        %v3367 = vmax.f32 %v3340, %v3341
        %v3368 = vmax.f32 %v3342, %v3343
        %v3369 = vmax.f32 %v3344, %v3345
        %v3370 = vld [vmem:[%s2] sm:$0x1]
        %v3372 = vlaneseq
        %v3373 = vshrl.u32 %v3372, 7
        %v3374 = vsub.s32 0, %v3373
        %v3375 = vrot.slane %v3370, %v3374
        %v3377 = vadd.f32 %v3346, %v3375
        %v3378 = vadd.f32 %v3347, %v3375
        %v3379 = vadd.f32 %v3348, %v3375
        %v3380 = vadd.f32 %v3349, %v3375
        %v3381 = vadd.f32 %v3350, %v3375
        %v3382 = vadd.f32 %v3351, %v3375
        %v3383 = vadd.f32 %v3352, %v3375
        %v3384 = vadd.f32 %v3353, %v3375
        %v3385 = vadd.f32 %v3354, %v3375
        %v3386 = vadd.f32 %v3355, %v3375
        %v3387 = vadd.f32 %v3356, %v3375
        %v3388 = vadd.f32 %v3357, %v3375
        %v3389 = vadd.f32 %v3358, %v3375
        %v3390 = vadd.f32 %v3359, %v3375
        %v3391 = vadd.f32 %v3360, %v3375
        %v3392 = vadd.f32 %v3361, %v3375
        %v3393 = vadd.f32 %v3362, %v3375
        %v3394 = vadd.f32 %v3363, %v3375
        %v3395 = vadd.f32 %v3364, %v3375
        %v3396 = vadd.f32 %v3365, %v3375
        %v3397 = vadd.f32 %v3366, %v3375
        %v3398 = vadd.f32 %v3367, %v3375
        %v3399 = vadd.f32 %v3368, %v3375
        %v3400 = vadd.f32 %v3369, %v3375
        %v3401 = vmax.f32 %v3377, 0.0
        %v3402 = vmax.f32 %v3378, 0.0
        %v3403 = vmax.f32 %v3379, 0.0
        %v3404 = vmax.f32 %v3380, 0.0
        %v3405 = vmax.f32 %v3381, 0.0
        %v3406 = vmax.f32 %v3382, 0.0
        %v3407 = vmax.f32 %v3383, 0.0
        %v3408 = vmax.f32 %v3384, 0.0
        %v3409 = vmax.f32 %v3385, 0.0
        %v3410 = vmax.f32 %v3386, 0.0
        %v3411 = vmax.f32 %v3387, 0.0
        %v3412 = vmax.f32 %v3388, 0.0
        %v3413 = vmax.f32 %v3389, 0.0
        %v3414 = vmax.f32 %v3390, 0.0
        %v3415 = vmax.f32 %v3391, 0.0
        %v3416 = vmax.f32 %v3392, 0.0
        %v3417 = vmax.f32 %v3393, 0.0
        %v3418 = vmax.f32 %v3394, 0.0
        %v3419 = vmax.f32 %v3395, 0.0
        %v3420 = vmax.f32 %v3396, 0.0
        %v3421 = vmax.f32 %v3397, 0.0
        %v3422 = vmax.f32 %v3398, 0.0
        %v3423 = vmax.f32 %v3399, 0.0
        %v3424 = vmax.f32 %v3400, 0.0
        %v3425 = vld [vmem:[%s3] sm:$0xff]
        %v3426 = vld [vmem:[%s3 + $0x8] sm:$0xff]
        %v3427 = vld [vmem:[%s3 + $0x10] sm:$0xff]
        %v3428 = vld [vmem:[%s3 + $0x18] sm:$0xff]
        %v3429 = vld [vmem:[%s3 + $0x20] sm:$0xff]
        %v3430 = vld [vmem:[%s3 + $0x28] sm:$0xff]
        %v3431 = vld [vmem:[%s3 + $0x30] sm:$0xff]
        %v3432 = vld [vmem:[%s3 + $0x38] sm:$0xff]
        %v3433 = vld [vmem:[%s3 + $0x40] sm:$0xff]
        %v3434 = vld [vmem:[%s3 + $0x48] sm:$0xff]
        %v3435 = vld [vmem:[%s3 + $0x50] sm:$0xff]
        %v3436 = vld [vmem:[%s3 + $0x58] sm:$0xff]
        %v3437 = vld [vmem:[%s3 + $0x60] sm:$0xff]
        %v3438 = vld [vmem:[%s3 + $0x68] sm:$0xff]
        %v3439 = vld [vmem:[%s3 + $0x70] sm:$0xff]
        %v3440 = vld [vmem:[%s3 + $0x78] sm:$0xff]
        %v3441 = vld [vmem:[%s3 + $0x80] sm:$0xff]
        %v3442 = vld [vmem:[%s3 + $0x88] sm:$0xff]
        %v3443 = vld [vmem:[%s3 + $0x90] sm:$0xff]
        %v3444 = vld [vmem:[%s3 + $0x98] sm:$0xff]
        %v3445 = vld [vmem:[%s3 + $0xa0] sm:$0xff]
        %v3446 = vld [vmem:[%s3 + $0xa8] sm:$0xff]
        %v3447 = vld [vmem:[%s3 + $0xb0] sm:$0xff]
        %v3448 = vld [vmem:[%s3 + $0xb8] sm:$0xff]
        %v3449 = vld [vmem:[%s3 + $0xc0] sm:$0xff]
        %v3450 = vld [vmem:[%s3 + $0xc8] sm:$0xff]
        %v3451 = vld [vmem:[%s3 + $0xd0] sm:$0xff]
        %v3452 = vld [vmem:[%s3 + $0xd8] sm:$0xff]
        %v3453 = vld [vmem:[%s3 + $0xe0] sm:$0xff]
        %v3454 = vld [vmem:[%s3 + $0xe8] sm:$0xff]
        %v3455 = vld [vmem:[%s3 + $0xf0] sm:$0xff]
        %v3456 = vld [vmem:[%s3 + $0xf8] sm:$0xff]
        %s3457 = scalar_lea.vmem %s3, 256
        %v3458 = vld [vmem:[%s3457] sm:$0xff]
        %v3459 = vld [vmem:[%s3457 + $0x8] sm:$0xff]
        %v3460 = vld [vmem:[%s3457 + $0x10] sm:$0xff]
        %v3461 = vld [vmem:[%s3457 + $0x18] sm:$0xff]
        %v3462 = vld [vmem:[%s3457 + $0x20] sm:$0xff]
        %v3463 = vld [vmem:[%s3457 + $0x28] sm:$0xff]
        %v3464 = vld [vmem:[%s3457 + $0x30] sm:$0xff]
        %v3465 = vld [vmem:[%s3457 + $0x38] sm:$0xff]
        %v3466 = vld [vmem:[%s3457 + $0x40] sm:$0xff]
        %v3467 = vld [vmem:[%s3457 + $0x48] sm:$0xff]
        %v3468 = vld [vmem:[%s3457 + $0x50] sm:$0xff]
        %v3469 = vld [vmem:[%s3457 + $0x58] sm:$0xff]
        %v3470 = vld [vmem:[%s3457 + $0x60] sm:$0xff]
        %v3471 = vld [vmem:[%s3457 + $0x68] sm:$0xff]
        %v3472 = vld [vmem:[%s3457 + $0x70] sm:$0xff]
        %v3473 = vld [vmem:[%s3457 + $0x78] sm:$0xff]
        %v3474 = vld [vmem:[%s3457 + $0x80] sm:$0xff]
        %v3475 = vld [vmem:[%s3457 + $0x88] sm:$0xff]
        %v3476 = vld [vmem:[%s3457 + $0x90] sm:$0xff]
        %v3477 = vld [vmem:[%s3457 + $0x98] sm:$0xff]
        %v3478 = vld [vmem:[%s3457 + $0xa0] sm:$0xff]
        %v3479 = vld [vmem:[%s3457 + $0xa8] sm:$0xff]
        %v3480 = vld [vmem:[%s3457 + $0xb0] sm:$0xff]
        %v3481 = vld [vmem:[%s3457 + $0xb8] sm:$0xff]
        %v3482 = vld [vmem:[%s3457 + $0xc0] sm:$0xff]
        %v3483 = vld [vmem:[%s3457 + $0xc8] sm:$0xff]
        %v3484 = vld [vmem:[%s3457 + $0xd0] sm:$0xff]
        %v3485 = vld [vmem:[%s3457 + $0xd8] sm:$0xff]
        %v3486 = vld [vmem:[%s3457 + $0xe0] sm:$0xff]
        %v3487 = vld [vmem:[%s3457 + $0xe8] sm:$0xff]
        %v3488 = vld [vmem:[%s3457 + $0xf0] sm:$0xff]
        %v3489 = vld [vmem:[%s3457 + $0xf8] sm:$0xff]
        %3490 = vmatprep.subr.mxu0 %v3459
        %3491 = vmatpush1.msra.mxu0 %v3458
        %3492 = vmatprep.subr.mxu0 %v3461
        %3493 = vmatpush1.msra.mxu0 %v3460
        %3494 = vmatprep.subr.mxu0 %v3463
        %3495 = vmatpush1.msra.mxu0 %v3462
        %3496 = vmatprep.subr.mxu0 %v3465
        %3497 = vmatpush1.msra.mxu0 %v3464
        %3498 = vmatprep.subr.mxu0 %v3467
        %3499 = vmatpush1.msra.mxu0 %v3466
        %3500 = vmatprep.subr.mxu0 %v3469
        %3501 = vmatpush1.msra.mxu0 %v3468
        %3502 = vmatprep.subr.mxu0 %v3471
        %3503 = vmatpush1.msra.mxu0 %v3470
        %3504 = vmatprep.subr.mxu0 %v3473
        %3505 = vmatpush1.msra.mxu0 %v3472
        %3506 = vmatprep.subr.mxu0 %v3475
        %3507 = vmatpush1.msra.mxu0 %v3474
        %3508 = vmatprep.subr.mxu0 %v3477
        %3509 = vmatpush1.msra.mxu0 %v3476
        %3510 = vmatprep.subr.mxu0 %v3479
        %3511 = vmatpush1.msra.mxu0 %v3478
        %3512 = vmatprep.subr.mxu0 %v3481
        %3513 = vmatpush1.msra.mxu0 %v3480
        %3514 = vmatprep.subr.mxu0 %v3483
        %3515 = vmatpush1.msra.mxu0 %v3482
        %3516 = vmatprep.subr.mxu0 %v3485
        %3517 = vmatpush1.msra.mxu0 %v3484
        %3518 = vmatprep.subr.mxu0 %v3487
        %3519 = vmatpush1.msra.mxu0 %v3486
        %3520 = vmatprep.subr.mxu0 %v3489
        %3521 = vmatpush1.msra.mxu0 %v3488
        %3522 = vmatprep.subr.mxu0 0.0
        %3523 = vmatpush1.msra.mxu0 0.0
        %3524 = vmatprep.subr.mxu0 0.0
        %3525 = vmatpush1.msra.mxu0 0.0
        %3526 = vmatprep.subr.mxu0 0.0
        %3527 = vmatpush1.msra.mxu0 0.0
        %3528 = vmatprep.subr.mxu0 0.0
        %3529 = vmatpush1.msra.mxu0 0.0
        %3530 = vmatprep.subr.mxu0 0.0
        %3531 = vmatpush1.msra.mxu0 0.0
        %3532 = vmatprep.subr.mxu0 0.0
        %3533 = vmatpush1.msra.mxu0 0.0
        %3534 = vmatprep.subr.mxu0 0.0
        %3535 = vmatpush1.msra.mxu0 0.0
        %3536 = vmatprep.subr.mxu0 0.0
        %3537 = vmatpush1.msra.mxu0 0.0
        %3538 = vmatprep.subr.mxu0 0.0
        %3539 = vmatpush1.msra.mxu0 0.0
        %3540 = vmatprep.subr.mxu0 0.0
        %3541 = vmatpush1.msra.mxu0 0.0
        %3542 = vmatprep.subr.mxu0 0.0
        %3543 = vmatpush1.msra.mxu0 0.0
        %3544 = vmatprep.subr.mxu0 0.0
        %3545 = vmatpush1.msra.mxu0 0.0
        %3546 = vmatprep.subr.mxu0 0.0
        %3547 = vmatpush1.msra.mxu0 0.0
        %3548 = vmatprep.subr.mxu0 0.0
        %3549 = vmatpush1.msra.mxu0 0.0
        %3550 = vmatprep.subr.mxu0 0.0
        %3551 = vmatpush1.msra.mxu0 0.0
        %3552 = vmatprep.subr.mxu0 0.0
        %3553 = vmatpush1.msra.mxu0 0.0
        %3554 = vmatprep.mubr.f32.mxu0 0.0
        %3555 = vmatmul.mubr.f32.gmra.mrb[0].mxu0 %v3403
        %v3556 = vpop.f32.mrb[0].mxu0
        %v3557 = vadd.f32 0.0, %v3556
        %v3558 = vpop.f32.mrb[0].mxu0
        %v3559 = vadd.f32 0.0, %v3558
        %3560 = vmatprep.mubr.f32.mxu0 0.0
        %3561 = vmatmul.mubr.f32.gmra.mrb[0].mxu0 %v3404
        %v3562 = vpop.f32.mrb[0].mxu0
        %v3563 = vadd.f32 0.0, %v3562
        %v3564 = vpop.f32.mrb[0].mxu0
        %v3565 = vadd.f32 0.0, %v3564
        %3566 = vmatprep.mubr.f32.mxu0 0.0
        %3567 = vmatmul.mubr.f32.gmra.mrb[0].mxu0 %v3407
        %v3568 = vpop.f32.mrb[0].mxu0
        %v3569 = vadd.f32 0.0, %v3568
        %v3570 = vpop.f32.mrb[0].mxu0
        %v3571 = vadd.f32 0.0, %v3570
        %3572 = vmatprep.mubr.f32.mxu0 0.0
        %3573 = vmatmul.mubr.f32.gmra.mrb[0].mxu0 %v3408
        %v3574 = vpop.f32.mrb[0].mxu0
        %v3575 = vadd.f32 0.0, %v3574
        %v3576 = vpop.f32.mrb[0].mxu0
        %v3577 = vadd.f32 0.0, %v3576
        %3578 = vmatprep.mubr.f32.mxu0 0.0
        %3579 = vmatmul.mubr.f32.gmra.mrb[0].mxu0 %v3411
        %v3580 = vpop.f32.mrb[0].mxu0
        %v3581 = vadd.f32 0.0, %v3580
        %v3582 = vpop.f32.mrb[0].mxu0
        %v3583 = vadd.f32 0.0, %v3582
        %3584 = vmatprep.mubr.f32.mxu0 0.0
        %3585 = vmatmul.mubr.f32.gmra.mrb[0].mxu0 %v3412
        %v3586 = vpop.f32.mrb[0].mxu0
        %v3587 = vadd.f32 0.0, %v3586
        %v3588 = vpop.f32.mrb[0].mxu0
        %v3589 = vadd.f32 0.0, %v3588
        %3590 = vmatprep.mubr.f32.mxu0 0.0
        %3591 = vmatmul.mubr.f32.gmra.mrb[0].mxu0 %v3415
        %v3592 = vpop.f32.mrb[0].mxu0
        %v3593 = vadd.f32 0.0, %v3592
        %v3594 = vpop.f32.mrb[0].mxu0
        %v3595 = vadd.f32 0.0, %v3594
        %3596 = vmatprep.mubr.f32.mxu0 0.0
        %3597 = vmatmul.mubr.f32.gmra.mrb[0].mxu0 %v3416
        %v3598 = vpop.f32.mrb[0].mxu0
        %v3599 = vadd.f32 0.0, %v3598
        %v3600 = vpop.f32.mrb[0].mxu0
        %v3601 = vadd.f32 0.0, %v3600
        %3602 = vdwg.mxu0
        %3603 = vmatprep.subr.mxu0 %v3426
        %3604 = vmatpush1.msra.mxu0 %v3425
        %3605 = vmatprep.subr.mxu0 %v3428
        %3606 = vmatpush1.msra.mxu0 %v3427
        %3607 = vmatprep.subr.mxu0 %v3430
        %3608 = vmatpush1.msra.mxu0 %v3429
        %3609 = vmatprep.subr.mxu0 %v3432
        %3610 = vmatpush1.msra.mxu0 %v3431
        %3611 = vmatprep.subr.mxu0 %v3434
        %3612 = vmatpush1.msra.mxu0 %v3433
        %3613 = vmatprep.subr.mxu0 %v3436
        %3614 = vmatpush1.msra.mxu0 %v3435
        %3615 = vmatprep.subr.mxu0 %v3438
        %3616 = vmatpush1.msra.mxu0 %v3437
        %3617 = vmatprep.subr.mxu0 %v3440
        %3618 = vmatpush1.msra.mxu0 %v3439
        %3619 = vmatprep.subr.mxu0 %v3442
        %3620 = vmatpush1.msra.mxu0 %v3441
        %3621 = vmatprep.subr.mxu0 %v3444
        %3622 = vmatpush1.msra.mxu0 %v3443
        %3623 = vmatprep.subr.mxu0 %v3446
        %3624 = vmatpush1.msra.mxu0 %v3445
        %3625 = vmatprep.subr.mxu0 %v3448
        %3626 = vmatpush1.msra.mxu0 %v3447
        %3627 = vmatprep.subr.mxu0 %v3450
        %3628 = vmatpush1.msra.mxu0 %v3449
        %3629 = vmatprep.subr.mxu0 %v3452
        %3630 = vmatpush1.msra.mxu0 %v3451
        %3631 = vmatprep.subr.mxu0 %v3454
        %3632 = vmatpush1.msra.mxu0 %v3453
        %3633 = vmatprep.subr.mxu0 %v3456
        %3634 = vmatpush1.msra.mxu0 %v3455
        %3635 = vmatprep.subr.mxu0 0.0
        %3636 = vmatpush1.msra.mxu0 0.0
        %3637 = vmatprep.subr.mxu0 0.0
        %3638 = vmatpush1.msra.mxu0 0.0
        %3639 = vmatprep.subr.mxu0 0.0
        %3640 = vmatpush1.msra.mxu0 0.0
        %3641 = vmatprep.subr.mxu0 0.0
        %3642 = vmatpush1.msra.mxu0 0.0
        %3643 = vmatprep.subr.mxu0 0.0
        %3644 = vmatpush1.msra.mxu0 0.0
        %3645 = vmatprep.subr.mxu0 0.0
        %3646 = vmatpush1.msra.mxu0 0.0
        %3647 = vmatprep.subr.mxu0 0.0
        %3648 = vmatpush1.msra.mxu0 0.0
        %3649 = vmatprep.subr.mxu0 0.0
        %3650 = vmatpush1.msra.mxu0 0.0
        %3651 = vmatprep.subr.mxu0 0.0
        %3652 = vmatpush1.msra.mxu0 0.0
        %3653 = vmatprep.subr.mxu0 0.0
        %3654 = vmatpush1.msra.mxu0 0.0
        %3655 = vmatprep.subr.mxu0 0.0
        %3656 = vmatpush1.msra.mxu0 0.0
        %3657 = vmatprep.subr.mxu0 0.0
        %3658 = vmatpush1.msra.mxu0 0.0
        %3659 = vmatprep.subr.mxu0 0.0
        %3660 = vmatpush1.msra.mxu0 0.0
        %3661 = vmatprep.subr.mxu0 0.0
        %3662 = vmatpush1.msra.mxu0 0.0
        %3663 = vmatprep.subr.mxu0 0.0
        %3664 = vmatpush1.msra.mxu0 0.0
        %3665 = vmatprep.subr.mxu0 0.0
        %3666 = vmatpush1.msra.mxu0 0.0
        %3667 = vmatprep.mubr.f32.mxu0 0.0
        %3668 = vmatmul.mubr.f32.gmra.mrb[0].mxu0 %v3401
        %v3669 = vpop.f32.mrb[0].mxu0
        %v3670 = vadd.f32 %v3557, %v3669
        %v3671 = vpop.f32.mrb[0].mxu0
        %v3672 = vadd.f32 %v3559, %v3671
        %3673 = vmatprep.mubr.f32.mxu0 0.0
        %3674 = vmatmul.mubr.f32.gmra.mrb[0].mxu0 %v3402
        %v3675 = vpop.f32.mrb[0].mxu0
        %v3676 = vadd.f32 %v3563, %v3675
        %v3677 = vpop.f32.mrb[0].mxu0
        %v3678 = vadd.f32 %v3565, %v3677
        %3679 = vmatprep.mubr.f32.mxu0 0.0
        %3680 = vmatmul.mubr.f32.gmra.mrb[0].mxu0 %v3405
        %v3681 = vpop.f32.mrb[0].mxu0
        %v3682 = vadd.f32 %v3569, %v3681
        %v3683 = vpop.f32.mrb[0].mxu0
        %v3684 = vadd.f32 %v3571, %v3683
        %3685 = vmatprep.mubr.f32.mxu0 0.0
        %3686 = vmatmul.mubr.f32.gmra.mrb[0].mxu0 %v3406
        %v3687 = vpop.f32.mrb[0].mxu0
        %v3688 = vadd.f32 %v3575, %v3687
        %v3689 = vpop.f32.mrb[0].mxu0
        %v3690 = vadd.f32 %v3577, %v3689
        %3691 = vmatprep.mubr.f32.mxu0 0.0
        %3692 = vmatmul.mubr.f32.gmra.mrb[0].mxu0 %v3409
        %v3693 = vpop.f32.mrb[0].mxu0
        %v3694 = vadd.f32 %v3581, %v3693
        %v3695 = vpop.f32.mrb[0].mxu0
        %v3696 = vadd.f32 %v3583, %v3695
        %3697 = vmatprep.mubr.f32.mxu0 0.0
        %3698 = vmatmul.mubr.f32.gmra.mrb[0].mxu0 %v3410
        %v3699 = vpop.f32.mrb[0].mxu0
        %v3700 = vadd.f32 %v3587, %v3699
        %v3701 = vpop.f32.mrb[0].mxu0
        %v3702 = vadd.f32 %v3589, %v3701
        %3703 = vmatprep.mubr.f32.mxu0 0.0
        %3704 = vmatmul.mubr.f32.gmra.mrb[0].mxu0 %v3413
        %v3705 = vpop.f32.mrb[0].mxu0
        %v3706 = vadd.f32 %v3593, %v3705
        %v3707 = vpop.f32.mrb[0].mxu0
        %v3708 = vadd.f32 %v3595, %v3707
        %3709 = vmatprep.mubr.f32.mxu0 0.0
        %3710 = vmatmul.mubr.f32.gmra.mrb[0].mxu0 %v3414
        %v3711 = vpop.f32.mrb[0].mxu0
        %v3712 = vadd.f32 %v3599, %v3711
        %v3713 = vpop.f32.mrb[0].mxu0
        %v3714 = vadd.f32 %v3601, %v3713
        %3715 = vdwg.mxu0
        %3716 = vmatprep.subr.mxu0 %v3459
        %3717 = vmatpush1.msra.mxu0 %v3458
        %3718 = vmatprep.subr.mxu0 %v3461
        %3719 = vmatpush1.msra.mxu0 %v3460
        %3720 = vmatprep.subr.mxu0 %v3463
        %3721 = vmatpush1.msra.mxu0 %v3462
        %3722 = vmatprep.subr.mxu0 %v3465
        %3723 = vmatpush1.msra.mxu0 %v3464
        %3724 = vmatprep.subr.mxu0 %v3467
        %3725 = vmatpush1.msra.mxu0 %v3466
        %3726 = vmatprep.subr.mxu0 %v3469
        %3727 = vmatpush1.msra.mxu0 %v3468
        %3728 = vmatprep.subr.mxu0 %v3471
        %3729 = vmatpush1.msra.mxu0 %v3470
        %3730 = vmatprep.subr.mxu0 %v3473
        %3731 = vmatpush1.msra.mxu0 %v3472
        %3732 = vmatprep.subr.mxu0 %v3475
        %3733 = vmatpush1.msra.mxu0 %v3474
        %3734 = vmatprep.subr.mxu0 %v3477
        %3735 = vmatpush1.msra.mxu0 %v3476
        %3736 = vmatprep.subr.mxu0 %v3479
        %3737 = vmatpush1.msra.mxu0 %v3478
        %3738 = vmatprep.subr.mxu0 %v3481
        %3739 = vmatpush1.msra.mxu0 %v3480
        %3740 = vmatprep.subr.mxu0 %v3483
        %3741 = vmatpush1.msra.mxu0 %v3482
        %3742 = vmatprep.subr.mxu0 %v3485
        %3743 = vmatpush1.msra.mxu0 %v3484
        %3744 = vmatprep.subr.mxu0 %v3487
        %3745 = vmatpush1.msra.mxu0 %v3486
        %3746 = vmatprep.subr.mxu0 %v3489
        %3747 = vmatpush1.msra.mxu0 %v3488
        %3748 = vmatprep.subr.mxu0 0.0
        %3749 = vmatpush1.msra.mxu0 0.0
        %3750 = vmatprep.subr.mxu0 0.0
        %3751 = vmatpush1.msra.mxu0 0.0
        %3752 = vmatprep.subr.mxu0 0.0
        %3753 = vmatpush1.msra.mxu0 0.0
        %3754 = vmatprep.subr.mxu0 0.0
        %3755 = vmatpush1.msra.mxu0 0.0
        %3756 = vmatprep.subr.mxu0 0.0
        %3757 = vmatpush1.msra.mxu0 0.0
        %3758 = vmatprep.subr.mxu0 0.0
        %3759 = vmatpush1.msra.mxu0 0.0
        %3760 = vmatprep.subr.mxu0 0.0
        %3761 = vmatpush1.msra.mxu0 0.0
        %3762 = vmatprep.subr.mxu0 0.0
        %3763 = vmatpush1.msra.mxu0 0.0
        %3764 = vmatprep.subr.mxu0 0.0
        %3765 = vmatpush1.msra.mxu0 0.0
        %3766 = vmatprep.subr.mxu0 0.0
        %3767 = vmatpush1.msra.mxu0 0.0
        %3768 = vmatprep.subr.mxu0 0.0
        %3769 = vmatpush1.msra.mxu0 0.0
        %3770 = vmatprep.subr.mxu0 0.0
        %3771 = vmatpush1.msra.mxu0 0.0
        %3772 = vmatprep.subr.mxu0 0.0
        %3773 = vmatpush1.msra.mxu0 0.0
        %3774 = vmatprep.subr.mxu0 0.0
        %3775 = vmatpush1.msra.mxu0 0.0
        %3776 = vmatprep.subr.mxu0 0.0
        %3777 = vmatpush1.msra.mxu0 0.0
        %3778 = vmatprep.subr.mxu0 0.0
        %3779 = vmatpush1.msra.mxu0 0.0
        %3780 = vmatprep.mubr.f32.mxu0 0.0
        %3781 = vmatmul.mubr.f32.gmra.mrb[0].mxu0 %v3405
        %v3782 = vpop.f32.mrb[0].mxu0
        %v3783 = vadd.f32 0.0, %v3782
        %v3784 = vpop.f32.mrb[0].mxu0
        %v3785 = vadd.f32 0.0, %v3784
        %3786 = vmatprep.mubr.f32.mxu0 0.0
        %3787 = vmatmul.mubr.f32.gmra.mrb[0].mxu0 %v3406
        %v3788 = vpop.f32.mrb[0].mxu0
        %v3789 = vadd.f32 0.0, %v3788
        %v3790 = vpop.f32.mrb[0].mxu0
        %v3791 = vadd.f32 0.0, %v3790
        %3792 = vmatprep.mubr.f32.mxu0 0.0
        %3793 = vmatmul.mubr.f32.gmra.mrb[0].mxu0 %v3409
        %v3794 = vpop.f32.mrb[0].mxu0
        %v3795 = vadd.f32 0.0, %v3794
        %v3796 = vpop.f32.mrb[0].mxu0
        %v3797 = vadd.f32 0.0, %v3796
        %3798 = vmatprep.mubr.f32.mxu0 0.0
        %3799 = vmatmul.mubr.f32.gmra.mrb[0].mxu0 %v3410
        %v3800 = vpop.f32.mrb[0].mxu0
        %v3801 = vadd.f32 0.0, %v3800
        %v3802 = vpop.f32.mrb[0].mxu0
        %v3803 = vadd.f32 0.0, %v3802
        %3804 = vmatprep.mubr.f32.mxu0 0.0
        %3805 = vmatmul.mubr.f32.gmra.mrb[0].mxu0 %v3413
        %v3806 = vpop.f32.mrb[0].mxu0
        %v3807 = vadd.f32 0.0, %v3806
        %v3808 = vpop.f32.mrb[0].mxu0
        %v3809 = vadd.f32 0.0, %v3808
        %3810 = vmatprep.mubr.f32.mxu0 0.0
        %3811 = vmatmul.mubr.f32.gmra.mrb[0].mxu0 %v3414
        %v3812 = vpop.f32.mrb[0].mxu0
        %v3813 = vadd.f32 0.0, %v3812
        %v3814 = vpop.f32.mrb[0].mxu0
        %v3815 = vadd.f32 0.0, %v3814
        %3816 = vmatprep.mubr.f32.mxu0 0.0
        %3817 = vmatmul.mubr.f32.gmra.mrb[0].mxu0 %v3417
        %v3818 = vpop.f32.mrb[0].mxu0
        %v3819 = vadd.f32 0.0, %v3818
        %v3820 = vpop.f32.mrb[0].mxu0
        %v3821 = vadd.f32 0.0, %v3820
        %3822 = vmatprep.mubr.f32.mxu0 0.0
        %3823 = vmatmul.mubr.f32.gmra.mrb[0].mxu0 %v3418
        %v3824 = vpop.f32.mrb[0].mxu0
        %v3825 = vadd.f32 0.0, %v3824
        %v3826 = vpop.f32.mrb[0].mxu0
        %v3827 = vadd.f32 0.0, %v3826
        %3828 = vdwg.mxu0
        %3829 = vmatprep.subr.mxu0 %v3426
        %3830 = vmatpush1.msra.mxu0 %v3425
        %3831 = vmatprep.subr.mxu0 %v3428
        %3832 = vmatpush1.msra.mxu0 %v3427
        %3833 = vmatprep.subr.mxu0 %v3430
        %3834 = vmatpush1.msra.mxu0 %v3429
        %3835 = vmatprep.subr.mxu0 %v3432
        %3836 = vmatpush1.msra.mxu0 %v3431
        %3837 = vmatprep.subr.mxu0 %v3434
        %3838 = vmatpush1.msra.mxu0 %v3433
        %3839 = vmatprep.subr.mxu0 %v3436
        %3840 = vmatpush1.msra.mxu0 %v3435
        %3841 = vmatprep.subr.mxu0 %v3438
        %3842 = vmatpush1.msra.mxu0 %v3437
        %3843 = vmatprep.subr.mxu0 %v3440
        %3844 = vmatpush1.msra.mxu0 %v3439
        %3845 = vmatprep.subr.mxu0 %v3442
        %3846 = vmatpush1.msra.mxu0 %v3441
        %3847 = vmatprep.subr.mxu0 %v3444
        %3848 = vmatpush1.msra.mxu0 %v3443
        %3849 = vmatprep.subr.mxu0 %v3446
        %3850 = vmatpush1.msra.mxu0 %v3445
        %3851 = vmatprep.subr.mxu0 %v3448
        %3852 = vmatpush1.msra.mxu0 %v3447
        %3853 = vmatprep.subr.mxu0 %v3450
        %3854 = vmatpush1.msra.mxu0 %v3449
        %3855 = vmatprep.subr.mxu0 %v3452
        %3856 = vmatpush1.msra.mxu0 %v3451
        %3857 = vmatprep.subr.mxu0 %v3454
        %3858 = vmatpush1.msra.mxu0 %v3453
        %3859 = vmatprep.subr.mxu0 %v3456
        %3860 = vmatpush1.msra.mxu0 %v3455
        %3861 = vmatprep.subr.mxu0 0.0
        %3862 = vmatpush1.msra.mxu0 0.0
        %3863 = vmatprep.subr.mxu0 0.0
        %3864 = vmatpush1.msra.mxu0 0.0
        %3865 = vmatprep.subr.mxu0 0.0
        %3866 = vmatpush1.msra.mxu0 0.0
        %3867 = vmatprep.subr.mxu0 0.0
        %3868 = vmatpush1.msra.mxu0 0.0
        %3869 = vmatprep.subr.mxu0 0.0
        %3870 = vmatpush1.msra.mxu0 0.0
        %3871 = vmatprep.subr.mxu0 0.0
        %3872 = vmatpush1.msra.mxu0 0.0
        %3873 = vmatprep.subr.mxu0 0.0
        %3874 = vmatpush1.msra.mxu0 0.0
        %3875 = vmatprep.subr.mxu0 0.0
        %3876 = vmatpush1.msra.mxu0 0.0
        %3877 = vmatprep.subr.mxu0 0.0
        %3878 = vmatpush1.msra.mxu0 0.0
        %3879 = vmatprep.subr.mxu0 0.0
        %3880 = vmatpush1.msra.mxu0 0.0
        %3881 = vmatprep.subr.mxu0 0.0
        %3882 = vmatpush1.msra.mxu0 0.0
        %3883 = vmatprep.subr.mxu0 0.0
        %3884 = vmatpush1.msra.mxu0 0.0
        %3885 = vmatprep.subr.mxu0 0.0
        %3886 = vmatpush1.msra.mxu0 0.0
        %3887 = vmatprep.subr.mxu0 0.0
        %3888 = vmatpush1.msra.mxu0 0.0
        %3889 = vmatprep.subr.mxu0 0.0
        %3890 = vmatpush1.msra.mxu0 0.0
        %3891 = vmatprep.subr.mxu0 0.0
        %3892 = vmatpush1.msra.mxu0 0.0
        %3893 = vmatprep.mubr.f32.mxu0 0.0
        %3894 = vmatmul.mubr.f32.gmra.mrb[0].mxu0 %v3403
        %v3895 = vpop.f32.mrb[0].mxu0
        %v3896 = vadd.f32 %v3783, %v3895
        %v3897 = vpop.f32.mrb[0].mxu0
        %v3898 = vadd.f32 %v3785, %v3897
        %3899 = vmatprep.mubr.f32.mxu0 0.0
        %3900 = vmatmul.mubr.f32.gmra.mrb[0].mxu0 %v3404
        %v3901 = vpop.f32.mrb[0].mxu0
        %v3902 = vadd.f32 %v3789, %v3901
        %v3903 = vpop.f32.mrb[0].mxu0
        %v3904 = vadd.f32 %v3791, %v3903
        %3905 = vmatprep.mubr.f32.mxu0 0.0
        %3906 = vmatmul.mubr.f32.gmra.mrb[0].mxu0 %v3407
        %v3907 = vpop.f32.mrb[0].mxu0
        %v3908 = vadd.f32 %v3795, %v3907
        %v3909 = vpop.f32.mrb[0].mxu0
        %v3910 = vadd.f32 %v3797, %v3909
        %3911 = vmatprep.mubr.f32.mxu0 0.0
        %3912 = vmatmul.mubr.f32.gmra.mrb[0].mxu0 %v3408
        %v3913 = vpop.f32.mrb[0].mxu0
        %v3914 = vadd.f32 %v3801, %v3913
        %v3915 = vpop.f32.mrb[0].mxu0
        %v3916 = vadd.f32 %v3803, %v3915
        %3917 = vmatprep.mubr.f32.mxu0 0.0
        %3918 = vmatmul.mubr.f32.gmra.mrb[0].mxu0 %v3411
        %v3919 = vpop.f32.mrb[0].mxu0
        %v3920 = vadd.f32 %v3807, %v3919
        %v3921 = vpop.f32.mrb[0].mxu0
        %v3922 = vadd.f32 %v3809, %v3921
        %3923 = vmatprep.mubr.f32.mxu0 0.0
        %3924 = vmatmul.mubr.f32.gmra.mrb[0].mxu0 %v3412
        %v3925 = vpop.f32.mrb[0].mxu0
        %v3926 = vadd.f32 %v3813, %v3925
        %v3927 = vpop.f32.mrb[0].mxu0
        %v3928 = vadd.f32 %v3815, %v3927
        %3929 = vmatprep.mubr.f32.mxu0 0.0
        %3930 = vmatmul.mubr.f32.gmra.mrb[0].mxu0 %v3415
        %v3931 = vpop.f32.mrb[0].mxu0
        %v3932 = vadd.f32 %v3819, %v3931
        %v3933 = vpop.f32.mrb[0].mxu0
        %v3934 = vadd.f32 %v3821, %v3933
        %3935 = vmatprep.mubr.f32.mxu0 0.0
        %3936 = vmatmul.mubr.f32.gmra.mrb[0].mxu0 %v3416
        %v3937 = vpop.f32.mrb[0].mxu0
        %v3938 = vadd.f32 %v3825, %v3937
        %v3939 = vpop.f32.mrb[0].mxu0
        %v3940 = vadd.f32 %v3827, %v3939
        %3941 = vdwg.mxu0
        %s3942 = scalar_lea.vmem %s3, 512
        %v3943 = vld [vmem:[%s3942] sm:$0xff]
        %v3944 = vld [vmem:[%s3942 + $0x8] sm:$0xff]
        %v3945 = vld [vmem:[%s3942 + $0x10] sm:$0xff]
        %v3946 = vld [vmem:[%s3942 + $0x18] sm:$0xff]
        %v3947 = vld [vmem:[%s3942 + $0x20] sm:$0xff]
        %v3948 = vld [vmem:[%s3942 + $0x28] sm:$0xff]
        %v3949 = vld [vmem:[%s3942 + $0x30] sm:$0xff]
        %v3950 = vld [vmem:[%s3942 + $0x38] sm:$0xff]
        %v3951 = vld [vmem:[%s3942 + $0x40] sm:$0xff]
        %v3952 = vld [vmem:[%s3942 + $0x48] sm:$0xff]
        %v3953 = vld [vmem:[%s3942 + $0x50] sm:$0xff]
        %v3954 = vld [vmem:[%s3942 + $0x58] sm:$0xff]
        %v3955 = vld [vmem:[%s3942 + $0x60] sm:$0xff]
        %v3956 = vld [vmem:[%s3942 + $0x68] sm:$0xff]
        %v3957 = vld [vmem:[%s3942 + $0x70] sm:$0xff]
        %v3958 = vld [vmem:[%s3942 + $0x78] sm:$0xff]
        %v3959 = vld [vmem:[%s3942 + $0x80] sm:$0xff]
        %v3960 = vld [vmem:[%s3942 + $0x88] sm:$0xff]
        %v3961 = vld [vmem:[%s3942 + $0x90] sm:$0xff]
        %v3962 = vld [vmem:[%s3942 + $0x98] sm:$0xff]
        %v3963 = vld [vmem:[%s3942 + $0xa0] sm:$0xff]
        %v3964 = vld [vmem:[%s3942 + $0xa8] sm:$0xff]
        %v3965 = vld [vmem:[%s3942 + $0xb0] sm:$0xff]
        %v3966 = vld [vmem:[%s3942 + $0xb8] sm:$0xff]
        %v3967 = vld [vmem:[%s3942 + $0xc0] sm:$0xff]
        %v3968 = vld [vmem:[%s3942 + $0xc8] sm:$0xff]
        %v3969 = vld [vmem:[%s3942 + $0xd0] sm:$0xff]
        %v3970 = vld [vmem:[%s3942 + $0xd8] sm:$0xff]
        %v3971 = vld [vmem:[%s3942 + $0xe0] sm:$0xff]
        %v3972 = vld [vmem:[%s3942 + $0xe8] sm:$0xff]
        %v3973 = vld [vmem:[%s3942 + $0xf0] sm:$0xff]
        %v3974 = vld [vmem:[%s3942 + $0xf8] sm:$0xff]
        %3975 = vmatprep.subr.mxu0 %v3944
        %3976 = vmatpush1.msra.mxu0 %v3943
        %3977 = vmatprep.subr.mxu0 %v3946
        %3978 = vmatpush1.msra.mxu0 %v3945
        %3979 = vmatprep.subr.mxu0 %v3948
        %3980 = vmatpush1.msra.mxu0 %v3947
        %3981 = vmatprep.subr.mxu0 %v3950
        %3982 = vmatpush1.msra.mxu0 %v3949
        %3983 = vmatprep.subr.mxu0 %v3952
        %3984 = vmatpush1.msra.mxu0 %v3951
        %3985 = vmatprep.subr.mxu0 %v3954
        %3986 = vmatpush1.msra.mxu0 %v3953
        %3987 = vmatprep.subr.mxu0 %v3956
        %3988 = vmatpush1.msra.mxu0 %v3955
        %3989 = vmatprep.subr.mxu0 %v3958
        %3990 = vmatpush1.msra.mxu0 %v3957
        %3991 = vmatprep.subr.mxu0 %v3960
        %3992 = vmatpush1.msra.mxu0 %v3959
        %3993 = vmatprep.subr.mxu0 %v3962
        %3994 = vmatpush1.msra.mxu0 %v3961
        %3995 = vmatprep.subr.mxu0 %v3964
        %3996 = vmatpush1.msra.mxu0 %v3963
        %3997 = vmatprep.subr.mxu0 %v3966
        %3998 = vmatpush1.msra.mxu0 %v3965
        %3999 = vmatprep.subr.mxu0 %v3968
        %4000 = vmatpush1.msra.mxu0 %v3967
        %4001 = vmatprep.subr.mxu0 %v3970
        %4002 = vmatpush1.msra.mxu0 %v3969
        %4003 = vmatprep.subr.mxu0 %v3972
        %4004 = vmatpush1.msra.mxu0 %v3971
        %4005 = vmatprep.subr.mxu0 %v3974
        %4006 = vmatpush1.msra.mxu0 %v3973
        %4007 = vmatprep.subr.mxu0 0.0
        %4008 = vmatpush1.msra.mxu0 0.0
        %4009 = vmatprep.subr.mxu0 0.0
        %4010 = vmatpush1.msra.mxu0 0.0
        %4011 = vmatprep.subr.mxu0 0.0
        %4012 = vmatpush1.msra.mxu0 0.0
        %4013 = vmatprep.subr.mxu0 0.0
        %4014 = vmatpush1.msra.mxu0 0.0
        %4015 = vmatprep.subr.mxu0 0.0
        %4016 = vmatpush1.msra.mxu0 0.0
        %4017 = vmatprep.subr.mxu0 0.0
        %4018 = vmatpush1.msra.mxu0 0.0
        %4019 = vmatprep.subr.mxu0 0.0
        %4020 = vmatpush1.msra.mxu0 0.0
        %4021 = vmatprep.subr.mxu0 0.0
        %4022 = vmatpush1.msra.mxu0 0.0
        %4023 = vmatprep.subr.mxu0 0.0
        %4024 = vmatpush1.msra.mxu0 0.0
        %4025 = vmatprep.subr.mxu0 0.0
        %4026 = vmatpush1.msra.mxu0 0.0
        %4027 = vmatprep.subr.mxu0 0.0
        %4028 = vmatpush1.msra.mxu0 0.0
        %4029 = vmatprep.subr.mxu0 0.0
        %4030 = vmatpush1.msra.mxu0 0.0
        %4031 = vmatprep.subr.mxu0 0.0
        %4032 = vmatpush1.msra.mxu0 0.0
        %4033 = vmatprep.subr.mxu0 0.0
        %4034 = vmatpush1.msra.mxu0 0.0
        %4035 = vmatprep.subr.mxu0 0.0
        %4036 = vmatpush1.msra.mxu0 0.0
        %4037 = vmatprep.subr.mxu0 0.0
        %4038 = vmatpush1.msra.mxu0 0.0
        %4039 = vmatprep.mubr.f32.mxu0 0.0
        %4040 = vmatmul.mubr.f32.gmra.mrb[0].mxu0 %v3405
        %v4041 = vpop.f32.mrb[0].mxu0
        %v4042 = vadd.f32 0.0, %v4041
        %v4043 = vpop.f32.mrb[0].mxu0
        %v4044 = vadd.f32 0.0, %v4043
        %4045 = vmatprep.mubr.f32.mxu0 0.0
        %4046 = vmatmul.mubr.f32.gmra.mrb[0].mxu0 %v3406
        %v4047 = vpop.f32.mrb[0].mxu0
        %v4048 = vadd.f32 0.0, %v4047
        %v4049 = vpop.f32.mrb[0].mxu0
        %v4050 = vadd.f32 0.0, %v4049
        %4051 = vmatprep.mubr.f32.mxu0 0.0
        %4052 = vmatmul.mubr.f32.gmra.mrb[0].mxu0 %v3409
        %v4053 = vpop.f32.mrb[0].mxu0
        %v4054 = vadd.f32 0.0, %v4053
        %v4055 = vpop.f32.mrb[0].mxu0
        %v4056 = vadd.f32 0.0, %v4055
        %4057 = vmatprep.mubr.f32.mxu0 0.0
        %4058 = vmatmul.mubr.f32.gmra.mrb[0].mxu0 %v3410
        %v4059 = vpop.f32.mrb[0].mxu0
        %v4060 = vadd.f32 0.0, %v4059
        %v4061 = vpop.f32.mrb[0].mxu0
        %v4062 = vadd.f32 0.0, %v4061
        %4063 = vmatprep.mubr.f32.mxu0 0.0
        %4064 = vmatmul.mubr.f32.gmra.mrb[0].mxu0 %v3413
        %v4065 = vpop.f32.mrb[0].mxu0
        %v4066 = vadd.f32 0.0, %v4065
        %v4067 = vpop.f32.mrb[0].mxu0
        %v4068 = vadd.f32 0.0, %v4067
        %4069 = vmatprep.mubr.f32.mxu0 0.0
        %4070 = vmatmul.mubr.f32.gmra.mrb[0].mxu0 %v3414
        %v4071 = vpop.f32.mrb[0].mxu0
        %v4072 = vadd.f32 0.0, %v4071
        %v4073 = vpop.f32.mrb[0].mxu0
        %v4074 = vadd.f32 0.0, %v4073
        %4075 = vmatprep.mubr.f32.mxu0 0.0
        %4076 = vmatmul.mubr.f32.gmra.mrb[0].mxu0 %v3417
        %v4077 = vpop.f32.mrb[0].mxu0
        %v4078 = vadd.f32 0.0, %v4077
        %v4079 = vpop.f32.mrb[0].mxu0
        %v4080 = vadd.f32 0.0, %v4079
        %4081 = vmatprep.mubr.f32.mxu0 0.0
        %4082 = vmatmul.mubr.f32.gmra.mrb[0].mxu0 %v3418
        %v4083 = vpop.f32.mrb[0].mxu0
        %v4084 = vadd.f32 0.0, %v4083
        %v4085 = vpop.f32.mrb[0].mxu0
        %v4086 = vadd.f32 0.0, %v4085
        %4087 = vdwg.mxu0
        %v4088 = vadd.f32 %v3670, %v4042
        %v4089 = vadd.f32 %v3672, %v4044
        %v4090 = vadd.f32 %v3676, %v4048
        %v4091 = vadd.f32 %v3678, %v4050
        %v4092 = vadd.f32 %v3682, %v4054
        %v4093 = vadd.f32 %v3684, %v4056
        %v4094 = vadd.f32 %v3688, %v4060
        %v4095 = vadd.f32 %v3690, %v4062
        %v4096 = vadd.f32 %v3694, %v4066
        %v4097 = vadd.f32 %v3696, %v4068
        %v4098 = vadd.f32 %v3700, %v4072
        %v4099 = vadd.f32 %v3702, %v4074
        %v4100 = vadd.f32 %v3706, %v4078
        %v4101 = vadd.f32 %v3708, %v4080
        %v4102 = vadd.f32 %v3712, %v4084
        %v4103 = vadd.f32 %v3714, %v4086
        %4104 = vmatprep.subr.mxu0 %v3944
        %4105 = vmatpush1.msra.mxu0 %v3943
        %4106 = vmatprep.subr.mxu0 %v3946
        %4107 = vmatpush1.msra.mxu0 %v3945
        %4108 = vmatprep.subr.mxu0 %v3948
        %4109 = vmatpush1.msra.mxu0 %v3947
        %4110 = vmatprep.subr.mxu0 %v3950
        %4111 = vmatpush1.msra.mxu0 %v3949
        %4112 = vmatprep.subr.mxu0 %v3952
        %4113 = vmatpush1.msra.mxu0 %v3951
        %4114 = vmatprep.subr.mxu0 %v3954
        %4115 = vmatpush1.msra.mxu0 %v3953
        %4116 = vmatprep.subr.mxu0 %v3956
        %4117 = vmatpush1.msra.mxu0 %v3955
        %4118 = vmatprep.subr.mxu0 %v3958
        %4119 = vmatpush1.msra.mxu0 %v3957
        %4120 = vmatprep.subr.mxu0 %v3960
        %4121 = vmatpush1.msra.mxu0 %v3959
        %4122 = vmatprep.subr.mxu0 %v3962
        %4123 = vmatpush1.msra.mxu0 %v3961
        %4124 = vmatprep.subr.mxu0 %v3964
        %4125 = vmatpush1.msra.mxu0 %v3963
        %4126 = vmatprep.subr.mxu0 %v3966
        %4127 = vmatpush1.msra.mxu0 %v3965
        %4128 = vmatprep.subr.mxu0 %v3968
        %4129 = vmatpush1.msra.mxu0 %v3967
        %4130 = vmatprep.subr.mxu0 %v3970
        %4131 = vmatpush1.msra.mxu0 %v3969
        %4132 = vmatprep.subr.mxu0 %v3972
        %4133 = vmatpush1.msra.mxu0 %v3971
        %4134 = vmatprep.subr.mxu0 %v3974
        %4135 = vmatpush1.msra.mxu0 %v3973
        %4136 = vmatprep.subr.mxu0 0.0
        %4137 = vmatpush1.msra.mxu0 0.0
        %4138 = vmatprep.subr.mxu0 0.0
        %4139 = vmatpush1.msra.mxu0 0.0
        %4140 = vmatprep.subr.mxu0 0.0
        %4141 = vmatpush1.msra.mxu0 0.0
        %4142 = vmatprep.subr.mxu0 0.0
        %4143 = vmatpush1.msra.mxu0 0.0
        %4144 = vmatprep.subr.mxu0 0.0
        %4145 = vmatpush1.msra.mxu0 0.0
        %4146 = vmatprep.subr.mxu0 0.0
        %4147 = vmatpush1.msra.mxu0 0.0
        %4148 = vmatprep.subr.mxu0 0.0
        %4149 = vmatpush1.msra.mxu0 0.0
        %4150 = vmatprep.subr.mxu0 0.0
        %4151 = vmatpush1.msra.mxu0 0.0
        %4152 = vmatprep.subr.mxu0 0.0
        %4153 = vmatpush1.msra.mxu0 0.0
        %4154 = vmatprep.subr.mxu0 0.0
        %4155 = vmatpush1.msra.mxu0 0.0
        %4156 = vmatprep.subr.mxu0 0.0
        %4157 = vmatpush1.msra.mxu0 0.0
        %4158 = vmatprep.subr.mxu0 0.0
        %4159 = vmatpush1.msra.mxu0 0.0
        %4160 = vmatprep.subr.mxu0 0.0
        %4161 = vmatpush1.msra.mxu0 0.0
        %4162 = vmatprep.subr.mxu0 0.0
        %4163 = vmatpush1.msra.mxu0 0.0
        %4164 = vmatprep.subr.mxu0 0.0
        %4165 = vmatpush1.msra.mxu0 0.0
        %4166 = vmatprep.subr.mxu0 0.0
        %4167 = vmatpush1.msra.mxu0 0.0
        %4168 = vmatprep.mubr.f32.mxu0 0.0
        %4169 = vmatmul.mubr.f32.gmra.mrb[0].mxu0 %v3407
        %v4170 = vpop.f32.mrb[0].mxu0
        %v4171 = vadd.f32 0.0, %v4170
        %v4172 = vpop.f32.mrb[0].mxu0
        %v4173 = vadd.f32 0.0, %v4172
        %4174 = vmatprep.mubr.f32.mxu0 0.0
        %4175 = vmatmul.mubr.f32.gmra.mrb[0].mxu0 %v3408
        %v4176 = vpop.f32.mrb[0].mxu0
        %v4177 = vadd.f32 0.0, %v4176
        %v4178 = vpop.f32.mrb[0].mxu0
        %v4179 = vadd.f32 0.0, %v4178
        %4180 = vmatprep.mubr.f32.mxu0 0.0
        %4181 = vmatmul.mubr.f32.gmra.mrb[0].mxu0 %v3411
        %v4182 = vpop.f32.mrb[0].mxu0
        %v4183 = vadd.f32 0.0, %v4182
        %v4184 = vpop.f32.mrb[0].mxu0
        %v4185 = vadd.f32 0.0, %v4184
        %4186 = vmatprep.mubr.f32.mxu0 0.0
        %4187 = vmatmul.mubr.f32.gmra.mrb[0].mxu0 %v3412
        %v4188 = vpop.f32.mrb[0].mxu0
        %v4189 = vadd.f32 0.0, %v4188
        %v4190 = vpop.f32.mrb[0].mxu0
        %v4191 = vadd.f32 0.0, %v4190
        %4192 = vmatprep.mubr.f32.mxu0 0.0
        %4193 = vmatmul.mubr.f32.gmra.mrb[0].mxu0 %v3415
        %v4194 = vpop.f32.mrb[0].mxu0
        %v4195 = vadd.f32 0.0, %v4194
        %v4196 = vpop.f32.mrb[0].mxu0
        %v4197 = vadd.f32 0.0, %v4196
        %4198 = vmatprep.mubr.f32.mxu0 0.0
        %4199 = vmatmul.mubr.f32.gmra.mrb[0].mxu0 %v3416
        %v4200 = vpop.f32.mrb[0].mxu0
        %v4201 = vadd.f32 0.0, %v4200
        %v4202 = vpop.f32.mrb[0].mxu0
        %v4203 = vadd.f32 0.0, %v4202
        %4204 = vmatprep.mubr.f32.mxu0 0.0
        %4205 = vmatmul.mubr.f32.gmra.mrb[0].mxu0 %v3419
        %v4206 = vpop.f32.mrb[0].mxu0
        %v4207 = vadd.f32 0.0, %v4206
        %v4208 = vpop.f32.mrb[0].mxu0
        %v4209 = vadd.f32 0.0, %v4208
        %4210 = vmatprep.mubr.f32.mxu0 0.0
        %4211 = vmatmul.mubr.f32.gmra.mrb[0].mxu0 %v3420
        %v4212 = vpop.f32.mrb[0].mxu0
        %v4213 = vadd.f32 0.0, %v4212
        %v4214 = vpop.f32.mrb[0].mxu0
        %v4215 = vadd.f32 0.0, %v4214
        %4216 = vdwg.mxu0
        %v4217 = vadd.f32 %v3896, %v4171
        %v4218 = vadd.f32 %v3898, %v4173
        %v4219 = vadd.f32 %v3902, %v4177
        %v4220 = vadd.f32 %v3904, %v4179
        %v4221 = vadd.f32 %v3908, %v4183
        %v4222 = vadd.f32 %v3910, %v4185
        %v4223 = vadd.f32 %v3914, %v4189
        %v4224 = vadd.f32 %v3916, %v4191
        %v4225 = vadd.f32 %v3920, %v4195
        %v4226 = vadd.f32 %v3922, %v4197
        %v4227 = vadd.f32 %v3926, %v4201
        %v4228 = vadd.f32 %v3928, %v4203
        %v4229 = vadd.f32 %v3932, %v4207
        %v4230 = vadd.f32 %v3934, %v4209
        %v4231 = vadd.f32 %v3938, %v4213
        %v4232 = vadd.f32 %v3940, %v4215
        %s4233 = scalar_lea.vmem %s3, 768
        %v4234 = vld [vmem:[%s4233] sm:$0xff]
        %v4235 = vld [vmem:[%s4233 + $0x8] sm:$0xff]
        %v4236 = vld [vmem:[%s4233 + $0x10] sm:$0xff]
        %v4237 = vld [vmem:[%s4233 + $0x18] sm:$0xff]
        %v4238 = vld [vmem:[%s4233 + $0x20] sm:$0xff]
        %v4239 = vld [vmem:[%s4233 + $0x28] sm:$0xff]
        %v4240 = vld [vmem:[%s4233 + $0x30] sm:$0xff]
        %v4241 = vld [vmem:[%s4233 + $0x38] sm:$0xff]
        %v4242 = vld [vmem:[%s4233 + $0x40] sm:$0xff]
        %v4243 = vld [vmem:[%s4233 + $0x48] sm:$0xff]
        %v4244 = vld [vmem:[%s4233 + $0x50] sm:$0xff]
        %v4245 = vld [vmem:[%s4233 + $0x58] sm:$0xff]
        %v4246 = vld [vmem:[%s4233 + $0x60] sm:$0xff]
        %v4247 = vld [vmem:[%s4233 + $0x68] sm:$0xff]
        %v4248 = vld [vmem:[%s4233 + $0x70] sm:$0xff]
        %v4249 = vld [vmem:[%s4233 + $0x78] sm:$0xff]
        %v4250 = vld [vmem:[%s4233 + $0x80] sm:$0xff]
        %v4251 = vld [vmem:[%s4233 + $0x88] sm:$0xff]
        %v4252 = vld [vmem:[%s4233 + $0x90] sm:$0xff]
        %v4253 = vld [vmem:[%s4233 + $0x98] sm:$0xff]
        %v4254 = vld [vmem:[%s4233 + $0xa0] sm:$0xff]
        %v4255 = vld [vmem:[%s4233 + $0xa8] sm:$0xff]
        %v4256 = vld [vmem:[%s4233 + $0xb0] sm:$0xff]
        %v4257 = vld [vmem:[%s4233 + $0xb8] sm:$0xff]
        %v4258 = vld [vmem:[%s4233 + $0xc0] sm:$0xff]
        %v4259 = vld [vmem:[%s4233 + $0xc8] sm:$0xff]
        %v4260 = vld [vmem:[%s4233 + $0xd0] sm:$0xff]
        %v4261 = vld [vmem:[%s4233 + $0xd8] sm:$0xff]
        %v4262 = vld [vmem:[%s4233 + $0xe0] sm:$0xff]
        %v4263 = vld [vmem:[%s4233 + $0xe8] sm:$0xff]
        %v4264 = vld [vmem:[%s4233 + $0xf0] sm:$0xff]
        %v4265 = vld [vmem:[%s4233 + $0xf8] sm:$0xff]
        %4266 = vmatprep.subr.mxu0 %v4235
        %4267 = vmatpush1.msra.mxu0 %v4234
        %4268 = vmatprep.subr.mxu0 %v4237
        %4269 = vmatpush1.msra.mxu0 %v4236
        %4270 = vmatprep.subr.mxu0 %v4239
        %4271 = vmatpush1.msra.mxu0 %v4238
        %4272 = vmatprep.subr.mxu0 %v4241
        %4273 = vmatpush1.msra.mxu0 %v4240
        %4274 = vmatprep.subr.mxu0 %v4243
        %4275 = vmatpush1.msra.mxu0 %v4242
        %4276 = vmatprep.subr.mxu0 %v4245
        %4277 = vmatpush1.msra.mxu0 %v4244
        %4278 = vmatprep.subr.mxu0 %v4247
        %4279 = vmatpush1.msra.mxu0 %v4246
        %4280 = vmatprep.subr.mxu0 %v4249
        %4281 = vmatpush1.msra.mxu0 %v4248
        %4282 = vmatprep.subr.mxu0 %v4251
        %4283 = vmatpush1.msra.mxu0 %v4250
        %4284 = vmatprep.subr.mxu0 %v4253
        %4285 = vmatpush1.msra.mxu0 %v4252
        %4286 = vmatprep.subr.mxu0 %v4255
        %4287 = vmatpush1.msra.mxu0 %v4254
        %4288 = vmatprep.subr.mxu0 %v4257
        %4289 = vmatpush1.msra.mxu0 %v4256
        %4290 = vmatprep.subr.mxu0 %v4259
        %4291 = vmatpush1.msra.mxu0 %v4258
        %4292 = vmatprep.subr.mxu0 %v4261
        %4293 = vmatpush1.msra.mxu0 %v4260
        %4294 = vmatprep.subr.mxu0 %v4263
        %4295 = vmatpush1.msra.mxu0 %v4262
        %4296 = vmatprep.subr.mxu0 %v4265
        %4297 = vmatpush1.msra.mxu0 %v4264
        %4298 = vmatprep.subr.mxu0 0.0
        %4299 = vmatpush1.msra.mxu0 0.0
        %4300 = vmatprep.subr.mxu0 0.0
        %4301 = vmatpush1.msra.mxu0 0.0
        %4302 = vmatprep.subr.mxu0 0.0
        %4303 = vmatpush1.msra.mxu0 0.0
        %4304 = vmatprep.subr.mxu0 0.0
        %4305 = vmatpush1.msra.mxu0 0.0
        %4306 = vmatprep.subr.mxu0 0.0
        %4307 = vmatpush1.msra.mxu0 0.0
        %4308 = vmatprep.subr.mxu0 0.0
        %4309 = vmatpush1.msra.mxu0 0.0
        %4310 = vmatprep.subr.mxu0 0.0
        %4311 = vmatpush1.msra.mxu0 0.0
        %4312 = vmatprep.subr.mxu0 0.0
        %4313 = vmatpush1.msra.mxu0 0.0
        %4314 = vmatprep.subr.mxu0 0.0
        %4315 = vmatpush1.msra.mxu0 0.0
        %4316 = vmatprep.subr.mxu0 0.0
        %4317 = vmatpush1.msra.mxu0 0.0
        %4318 = vmatprep.subr.mxu0 0.0
        %4319 = vmatpush1.msra.mxu0 0.0
        %4320 = vmatprep.subr.mxu0 0.0
        %4321 = vmatpush1.msra.mxu0 0.0
        %4322 = vmatprep.subr.mxu0 0.0
        %4323 = vmatpush1.msra.mxu0 0.0
        %4324 = vmatprep.subr.mxu0 0.0
        %4325 = vmatpush1.msra.mxu0 0.0
        %4326 = vmatprep.subr.mxu0 0.0
        %4327 = vmatpush1.msra.mxu0 0.0
        %4328 = vmatprep.subr.mxu0 0.0
        %4329 = vmatpush1.msra.mxu0 0.0
        %4330 = vmatprep.mubr.f32.mxu0 0.0
        %4331 = vmatmul.mubr.f32.gmra.mrb[0].mxu0 %v3407
        %v4332 = vpop.f32.mrb[0].mxu0
        %v4333 = vadd.f32 0.0, %v4332
        %v4334 = vpop.f32.mrb[0].mxu0
        %v4335 = vadd.f32 0.0, %v4334
        %4336 = vmatprep.mubr.f32.mxu0 0.0
        %4337 = vmatmul.mubr.f32.gmra.mrb[0].mxu0 %v3408
        %v4338 = vpop.f32.mrb[0].mxu0
        %v4339 = vadd.f32 0.0, %v4338
        %v4340 = vpop.f32.mrb[0].mxu0
        %v4341 = vadd.f32 0.0, %v4340
        %4342 = vmatprep.mubr.f32.mxu0 0.0
        %4343 = vmatmul.mubr.f32.gmra.mrb[0].mxu0 %v3411
        %v4344 = vpop.f32.mrb[0].mxu0
        %v4345 = vadd.f32 0.0, %v4344
        %v4346 = vpop.f32.mrb[0].mxu0
        %v4347 = vadd.f32 0.0, %v4346
        %4348 = vmatprep.mubr.f32.mxu0 0.0
        %4349 = vmatmul.mubr.f32.gmra.mrb[0].mxu0 %v3412
        %v4350 = vpop.f32.mrb[0].mxu0
        %v4351 = vadd.f32 0.0, %v4350
        %v4352 = vpop.f32.mrb[0].mxu0
        %v4353 = vadd.f32 0.0, %v4352
        %4354 = vmatprep.mubr.f32.mxu0 0.0
        %4355 = vmatmul.mubr.f32.gmra.mrb[0].mxu0 %v3415
        %v4356 = vpop.f32.mrb[0].mxu0
        %v4357 = vadd.f32 0.0, %v4356
        %v4358 = vpop.f32.mrb[0].mxu0
        %v4359 = vadd.f32 0.0, %v4358
        %4360 = vmatprep.mubr.f32.mxu0 0.0
        %4361 = vmatmul.mubr.f32.gmra.mrb[0].mxu0 %v3416
        %v4362 = vpop.f32.mrb[0].mxu0
        %v4363 = vadd.f32 0.0, %v4362
        %v4364 = vpop.f32.mrb[0].mxu0
        %v4365 = vadd.f32 0.0, %v4364
        %4366 = vmatprep.mubr.f32.mxu0 0.0
        %4367 = vmatmul.mubr.f32.gmra.mrb[0].mxu0 %v3419
        %v4368 = vpop.f32.mrb[0].mxu0
        %v4369 = vadd.f32 0.0, %v4368
        %v4370 = vpop.f32.mrb[0].mxu0
        %v4371 = vadd.f32 0.0, %v4370
        %4372 = vmatprep.mubr.f32.mxu0 0.0
        %4373 = vmatmul.mubr.f32.gmra.mrb[0].mxu0 %v3420
        %v4374 = vpop.f32.mrb[0].mxu0
        %v4375 = vadd.f32 0.0, %v4374
        %v4376 = vpop.f32.mrb[0].mxu0
        %v4377 = vadd.f32 0.0, %v4376
        %4378 = vdwg.mxu0
        %v4379 = vadd.f32 %v4088, %v4333
        %v4380 = vadd.f32 %v4089, %v4335
        %v4381 = vadd.f32 %v4090, %v4339
        %v4382 = vadd.f32 %v4091, %v4341
        %v4383 = vadd.f32 %v4092, %v4345
        %v4384 = vadd.f32 %v4093, %v4347
        %v4385 = vadd.f32 %v4094, %v4351
        %v4386 = vadd.f32 %v4095, %v4353
        %v4387 = vadd.f32 %v4096, %v4357
        %v4388 = vadd.f32 %v4097, %v4359
        %v4389 = vadd.f32 %v4098, %v4363
        %v4390 = vadd.f32 %v4099, %v4365
        %v4391 = vadd.f32 %v4100, %v4369
        %v4392 = vadd.f32 %v4101, %v4371
        %v4393 = vadd.f32 %v4102, %v4375
        %v4394 = vadd.f32 %v4103, %v4377
        %4395 = vmatprep.subr.mxu0 %v4235
        %4396 = vmatpush1.msra.mxu0 %v4234
        %4397 = vmatprep.subr.mxu0 %v4237
        %4398 = vmatpush1.msra.mxu0 %v4236
        %4399 = vmatprep.subr.mxu0 %v4239
        %4400 = vmatpush1.msra.mxu0 %v4238
        %4401 = vmatprep.subr.mxu0 %v4241
        %4402 = vmatpush1.msra.mxu0 %v4240
        %4403 = vmatprep.subr.mxu0 %v4243
        %4404 = vmatpush1.msra.mxu0 %v4242
        %4405 = vmatprep.subr.mxu0 %v4245
        %4406 = vmatpush1.msra.mxu0 %v4244
        %4407 = vmatprep.subr.mxu0 %v4247
        %4408 = vmatpush1.msra.mxu0 %v4246
        %4409 = vmatprep.subr.mxu0 %v4249
        %4410 = vmatpush1.msra.mxu0 %v4248
        %4411 = vmatprep.subr.mxu0 %v4251
        %4412 = vmatpush1.msra.mxu0 %v4250
        %4413 = vmatprep.subr.mxu0 %v4253
        %4414 = vmatpush1.msra.mxu0 %v4252
        %4415 = vmatprep.subr.mxu0 %v4255
        %4416 = vmatpush1.msra.mxu0 %v4254
        %4417 = vmatprep.subr.mxu0 %v4257
        %4418 = vmatpush1.msra.mxu0 %v4256
        %4419 = vmatprep.subr.mxu0 %v4259
        %4420 = vmatpush1.msra.mxu0 %v4258
        %4421 = vmatprep.subr.mxu0 %v4261
        %4422 = vmatpush1.msra.mxu0 %v4260
        %4423 = vmatprep.subr.mxu0 %v4263
        %4424 = vmatpush1.msra.mxu0 %v4262
        %4425 = vmatprep.subr.mxu0 %v4265
        %4426 = vmatpush1.msra.mxu0 %v4264
        %4427 = vmatprep.subr.mxu0 0.0
        %4428 = vmatpush1.msra.mxu0 0.0
        %4429 = vmatprep.subr.mxu0 0.0
        %4430 = vmatpush1.msra.mxu0 0.0
        %4431 = vmatprep.subr.mxu0 0.0
        %4432 = vmatpush1.msra.mxu0 0.0
        %4433 = vmatprep.subr.mxu0 0.0
        %4434 = vmatpush1.msra.mxu0 0.0
        %4435 = vmatprep.subr.mxu0 0.0
        %4436 = vmatpush1.msra.mxu0 0.0
        %4437 = vmatprep.subr.mxu0 0.0
        %4438 = vmatpush1.msra.mxu0 0.0
        %4439 = vmatprep.subr.mxu0 0.0
        %4440 = vmatpush1.msra.mxu0 0.0
        %4441 = vmatprep.subr.mxu0 0.0
        %4442 = vmatpush1.msra.mxu0 0.0
        %4443 = vmatprep.subr.mxu0 0.0
        %4444 = vmatpush1.msra.mxu0 0.0
        %4445 = vmatprep.subr.mxu0 0.0
        %4446 = vmatpush1.msra.mxu0 0.0
        %4447 = vmatprep.subr.mxu0 0.0
        %4448 = vmatpush1.msra.mxu0 0.0
        %4449 = vmatprep.subr.mxu0 0.0
        %4450 = vmatpush1.msra.mxu0 0.0
        %4451 = vmatprep.subr.mxu0 0.0
        %4452 = vmatpush1.msra.mxu0 0.0
        %4453 = vmatprep.subr.mxu0 0.0
        %4454 = vmatpush1.msra.mxu0 0.0
        %4455 = vmatprep.subr.mxu0 0.0
        %4456 = vmatpush1.msra.mxu0 0.0
        %4457 = vmatprep.subr.mxu0 0.0
        %4458 = vmatpush1.msra.mxu0 0.0
        %4459 = vmatprep.mubr.f32.mxu0 0.0
        %4460 = vmatmul.mubr.f32.gmra.mrb[0].mxu0 %v3409
        %v4461 = vpop.f32.mrb[0].mxu0
        %v4462 = vadd.f32 0.0, %v4461
        %v4463 = vpop.f32.mrb[0].mxu0
        %v4464 = vadd.f32 0.0, %v4463
        %4465 = vmatprep.mubr.f32.mxu0 0.0
        %4466 = vmatmul.mubr.f32.gmra.mrb[0].mxu0 %v3410
        %v4467 = vpop.f32.mrb[0].mxu0
        %v4468 = vadd.f32 0.0, %v4467
        %v4469 = vpop.f32.mrb[0].mxu0
        %v4470 = vadd.f32 0.0, %v4469
        %4471 = vmatprep.mubr.f32.mxu0 0.0
        %4472 = vmatmul.mubr.f32.gmra.mrb[0].mxu0 %v3413
        %v4473 = vpop.f32.mrb[0].mxu0
        %v4474 = vadd.f32 0.0, %v4473
        %v4475 = vpop.f32.mrb[0].mxu0
        %v4476 = vadd.f32 0.0, %v4475
        %4477 = vmatprep.mubr.f32.mxu0 0.0
        %4478 = vmatmul.mubr.f32.gmra.mrb[0].mxu0 %v3414
        %v4479 = vpop.f32.mrb[0].mxu0
        %v4480 = vadd.f32 0.0, %v4479
        %v4481 = vpop.f32.mrb[0].mxu0
        %v4482 = vadd.f32 0.0, %v4481
        %4483 = vmatprep.mubr.f32.mxu0 0.0
        %4484 = vmatmul.mubr.f32.gmra.mrb[0].mxu0 %v3417
        %v4485 = vpop.f32.mrb[0].mxu0
        %v4486 = vadd.f32 0.0, %v4485
        %v4487 = vpop.f32.mrb[0].mxu0
        %v4488 = vadd.f32 0.0, %v4487
        %4489 = vmatprep.mubr.f32.mxu0 0.0
        %4490 = vmatmul.mubr.f32.gmra.mrb[0].mxu0 %v3418
        %v4491 = vpop.f32.mrb[0].mxu0
        %v4492 = vadd.f32 0.0, %v4491
        %v4493 = vpop.f32.mrb[0].mxu0
        %v4494 = vadd.f32 0.0, %v4493
        %4495 = vmatprep.mubr.f32.mxu0 0.0
        %4496 = vmatmul.mubr.f32.gmra.mrb[0].mxu0 %v3421
        %v4497 = vpop.f32.mrb[0].mxu0
        %v4498 = vadd.f32 0.0, %v4497
        %v4499 = vpop.f32.mrb[0].mxu0
        %v4500 = vadd.f32 0.0, %v4499
        %4501 = vmatprep.mubr.f32.mxu0 0.0
        %4502 = vmatmul.mubr.f32.gmra.mrb[0].mxu0 %v3422
        %v4503 = vpop.f32.mrb[0].mxu0
        %v4504 = vadd.f32 0.0, %v4503
        %v4505 = vpop.f32.mrb[0].mxu0
        %v4506 = vadd.f32 0.0, %v4505
        %4507 = vdwg.mxu0
        %v4508 = vadd.f32 %v4217, %v4462
        %v4509 = vadd.f32 %v4218, %v4464
        %v4510 = vadd.f32 %v4219, %v4468
        %v4511 = vadd.f32 %v4220, %v4470
        %v4512 = vadd.f32 %v4221, %v4474
        %v4513 = vadd.f32 %v4222, %v4476
        %v4514 = vadd.f32 %v4223, %v4480
        %v4515 = vadd.f32 %v4224, %v4482
        %v4516 = vadd.f32 %v4225, %v4486
        %v4517 = vadd.f32 %v4226, %v4488
        %v4518 = vadd.f32 %v4227, %v4492
        %v4519 = vadd.f32 %v4228, %v4494
        %v4520 = vadd.f32 %v4229, %v4498
        %v4521 = vadd.f32 %v4230, %v4500
        %v4522 = vadd.f32 %v4231, %v4504
        %v4523 = vadd.f32 %v4232, %v4506
        %s4524 = scalar_lea.vmem %s3, 1024
        %v4525 = vld [vmem:[%s4524] sm:$0xff]
        %v4526 = vld [vmem:[%s4524 + $0x8] sm:$0xff]
        %v4527 = vld [vmem:[%s4524 + $0x10] sm:$0xff]
        %v4528 = vld [vmem:[%s4524 + $0x18] sm:$0xff]
        %v4529 = vld [vmem:[%s4524 + $0x20] sm:$0xff]
        %v4530 = vld [vmem:[%s4524 + $0x28] sm:$0xff]
        %v4531 = vld [vmem:[%s4524 + $0x30] sm:$0xff]
        %v4532 = vld [vmem:[%s4524 + $0x38] sm:$0xff]
        %v4533 = vld [vmem:[%s4524 + $0x40] sm:$0xff]
        %v4534 = vld [vmem:[%s4524 + $0x48] sm:$0xff]
        %v4535 = vld [vmem:[%s4524 + $0x50] sm:$0xff]
        %v4536 = vld [vmem:[%s4524 + $0x58] sm:$0xff]
        %v4537 = vld [vmem:[%s4524 + $0x60] sm:$0xff]
        %v4538 = vld [vmem:[%s4524 + $0x68] sm:$0xff]
        %v4539 = vld [vmem:[%s4524 + $0x70] sm:$0xff]
        %v4540 = vld [vmem:[%s4524 + $0x78] sm:$0xff]
        %v4541 = vld [vmem:[%s4524 + $0x80] sm:$0xff]
        %v4542 = vld [vmem:[%s4524 + $0x88] sm:$0xff]
        %v4543 = vld [vmem:[%s4524 + $0x90] sm:$0xff]
        %v4544 = vld [vmem:[%s4524 + $0x98] sm:$0xff]
        %v4545 = vld [vmem:[%s4524 + $0xa0] sm:$0xff]
        %v4546 = vld [vmem:[%s4524 + $0xa8] sm:$0xff]
        %v4547 = vld [vmem:[%s4524 + $0xb0] sm:$0xff]
        %v4548 = vld [vmem:[%s4524 + $0xb8] sm:$0xff]
        %v4549 = vld [vmem:[%s4524 + $0xc0] sm:$0xff]
        %v4550 = vld [vmem:[%s4524 + $0xc8] sm:$0xff]
        %v4551 = vld [vmem:[%s4524 + $0xd0] sm:$0xff]
        %v4552 = vld [vmem:[%s4524 + $0xd8] sm:$0xff]
        %v4553 = vld [vmem:[%s4524 + $0xe0] sm:$0xff]
        %v4554 = vld [vmem:[%s4524 + $0xe8] sm:$0xff]
        %v4555 = vld [vmem:[%s4524 + $0xf0] sm:$0xff]
        %v4556 = vld [vmem:[%s4524 + $0xf8] sm:$0xff]
        %4557 = vmatprep.subr.mxu0 %v4526
        %4558 = vmatpush1.msra.mxu0 %v4525
        %4559 = vmatprep.subr.mxu0 %v4528
        %4560 = vmatpush1.msra.mxu0 %v4527
        %4561 = vmatprep.subr.mxu0 %v4530
        %4562 = vmatpush1.msra.mxu0 %v4529
        %4563 = vmatprep.subr.mxu0 %v4532
        %4564 = vmatpush1.msra.mxu0 %v4531
        %4565 = vmatprep.subr.mxu0 %v4534
        %4566 = vmatpush1.msra.mxu0 %v4533
        %4567 = vmatprep.subr.mxu0 %v4536
        %4568 = vmatpush1.msra.mxu0 %v4535
        %4569 = vmatprep.subr.mxu0 %v4538
        %4570 = vmatpush1.msra.mxu0 %v4537
        %4571 = vmatprep.subr.mxu0 %v4540
        %4572 = vmatpush1.msra.mxu0 %v4539
        %4573 = vmatprep.subr.mxu0 %v4542
        %4574 = vmatpush1.msra.mxu0 %v4541
        %4575 = vmatprep.subr.mxu0 %v4544
        %4576 = vmatpush1.msra.mxu0 %v4543
        %4577 = vmatprep.subr.mxu0 %v4546
        %4578 = vmatpush1.msra.mxu0 %v4545
        %4579 = vmatprep.subr.mxu0 %v4548
        %4580 = vmatpush1.msra.mxu0 %v4547
        %4581 = vmatprep.subr.mxu0 %v4550
        %4582 = vmatpush1.msra.mxu0 %v4549
        %4583 = vmatprep.subr.mxu0 %v4552
        %4584 = vmatpush1.msra.mxu0 %v4551
        %4585 = vmatprep.subr.mxu0 %v4554
        %4586 = vmatpush1.msra.mxu0 %v4553
        %4587 = vmatprep.subr.mxu0 %v4556
        %4588 = vmatpush1.msra.mxu0 %v4555
        %4589 = vmatprep.subr.mxu0 0.0
        %4590 = vmatpush1.msra.mxu0 0.0
        %4591 = vmatprep.subr.mxu0 0.0
        %4592 = vmatpush1.msra.mxu0 0.0
        %4593 = vmatprep.subr.mxu0 0.0
        %4594 = vmatpush1.msra.mxu0 0.0
        %4595 = vmatprep.subr.mxu0 0.0
        %4596 = vmatpush1.msra.mxu0 0.0
        %4597 = vmatprep.subr.mxu0 0.0
        %4598 = vmatpush1.msra.mxu0 0.0
        %4599 = vmatprep.subr.mxu0 0.0
        %4600 = vmatpush1.msra.mxu0 0.0
        %4601 = vmatprep.subr.mxu0 0.0
        %4602 = vmatpush1.msra.mxu0 0.0
        %4603 = vmatprep.subr.mxu0 0.0
        %4604 = vmatpush1.msra.mxu0 0.0
        %4605 = vmatprep.subr.mxu0 0.0
        %4606 = vmatpush1.msra.mxu0 0.0
        %4607 = vmatprep.subr.mxu0 0.0
        %4608 = vmatpush1.msra.mxu0 0.0
        %4609 = vmatprep.subr.mxu0 0.0
        %4610 = vmatpush1.msra.mxu0 0.0
        %4611 = vmatprep.subr.mxu0 0.0
        %4612 = vmatpush1.msra.mxu0 0.0
        %4613 = vmatprep.subr.mxu0 0.0
        %4614 = vmatpush1.msra.mxu0 0.0
        %4615 = vmatprep.subr.mxu0 0.0
        %4616 = vmatpush1.msra.mxu0 0.0
        %4617 = vmatprep.subr.mxu0 0.0
        %4618 = vmatpush1.msra.mxu0 0.0
        %4619 = vmatprep.subr.mxu0 0.0
        %4620 = vmatpush1.msra.mxu0 0.0
        %4621 = vmatprep.mubr.f32.mxu0 0.0
        %4622 = vmatmul.mubr.f32.gmra.mrb[0].mxu0 %v3409
        %v4623 = vpop.f32.mrb[0].mxu0
        %v4624 = vadd.f32 0.0, %v4623
        %v4625 = vpop.f32.mrb[0].mxu0
        %v4626 = vadd.f32 0.0, %v4625
        %4627 = vmatprep.mubr.f32.mxu0 0.0
        %4628 = vmatmul.mubr.f32.gmra.mrb[0].mxu0 %v3410
        %v4629 = vpop.f32.mrb[0].mxu0
        %v4630 = vadd.f32 0.0, %v4629
        %v4631 = vpop.f32.mrb[0].mxu0
        %v4632 = vadd.f32 0.0, %v4631
        %4633 = vmatprep.mubr.f32.mxu0 0.0
        %4634 = vmatmul.mubr.f32.gmra.mrb[0].mxu0 %v3413
        %v4635 = vpop.f32.mrb[0].mxu0
        %v4636 = vadd.f32 0.0, %v4635
        %v4637 = vpop.f32.mrb[0].mxu0
        %v4638 = vadd.f32 0.0, %v4637
        %4639 = vmatprep.mubr.f32.mxu0 0.0
        %4640 = vmatmul.mubr.f32.gmra.mrb[0].mxu0 %v3414
        %v4641 = vpop.f32.mrb[0].mxu0
        %v4642 = vadd.f32 0.0, %v4641
        %v4643 = vpop.f32.mrb[0].mxu0
        %v4644 = vadd.f32 0.0, %v4643
        %4645 = vmatprep.mubr.f32.mxu0 0.0
        %4646 = vmatmul.mubr.f32.gmra.mrb[0].mxu0 %v3417
        %v4647 = vpop.f32.mrb[0].mxu0
        %v4648 = vadd.f32 0.0, %v4647
        %v4649 = vpop.f32.mrb[0].mxu0
        %v4650 = vadd.f32 0.0, %v4649
        %4651 = vmatprep.mubr.f32.mxu0 0.0
        %4652 = vmatmul.mubr.f32.gmra.mrb[0].mxu0 %v3418
        %v4653 = vpop.f32.mrb[0].mxu0
        %v4654 = vadd.f32 0.0, %v4653
        %v4655 = vpop.f32.mrb[0].mxu0
        %v4656 = vadd.f32 0.0, %v4655
        %4657 = vmatprep.mubr.f32.mxu0 0.0
        %4658 = vmatmul.mubr.f32.gmra.mrb[0].mxu0 %v3421
        %v4659 = vpop.f32.mrb[0].mxu0
        %v4660 = vadd.f32 0.0, %v4659
        %v4661 = vpop.f32.mrb[0].mxu0
        %v4662 = vadd.f32 0.0, %v4661
        %4663 = vmatprep.mubr.f32.mxu0 0.0
        %4664 = vmatmul.mubr.f32.gmra.mrb[0].mxu0 %v3422
        %v4665 = vpop.f32.mrb[0].mxu0
        %v4666 = vadd.f32 0.0, %v4665
        %v4667 = vpop.f32.mrb[0].mxu0
        %v4668 = vadd.f32 0.0, %v4667
        %4669 = vdwg.mxu0
        %v4670 = vadd.f32 %v4379, %v4624
        %v4671 = vadd.f32 %v4380, %v4626
        %v4672 = vadd.f32 %v4381, %v4630
        %v4673 = vadd.f32 %v4382, %v4632
        %v4674 = vadd.f32 %v4383, %v4636
        %v4675 = vadd.f32 %v4384, %v4638
        %v4676 = vadd.f32 %v4385, %v4642
        %v4677 = vadd.f32 %v4386, %v4644
        %v4678 = vadd.f32 %v4387, %v4648
        %v4679 = vadd.f32 %v4388, %v4650
        %v4680 = vadd.f32 %v4389, %v4654
        %v4681 = vadd.f32 %v4390, %v4656
        %v4682 = vadd.f32 %v4391, %v4660
        %v4683 = vadd.f32 %v4392, %v4662
        %v4684 = vadd.f32 %v4393, %v4666
        %v4685 = vadd.f32 %v4394, %v4668
        %4686 = vmatprep.subr.mxu0 %v4526
        %4687 = vmatpush1.msra.mxu0 %v4525
        %4688 = vmatprep.subr.mxu0 %v4528
        %4689 = vmatpush1.msra.mxu0 %v4527
        %4690 = vmatprep.subr.mxu0 %v4530
        %4691 = vmatpush1.msra.mxu0 %v4529
        %4692 = vmatprep.subr.mxu0 %v4532
        %4693 = vmatpush1.msra.mxu0 %v4531
        %4694 = vmatprep.subr.mxu0 %v4534
        %4695 = vmatpush1.msra.mxu0 %v4533
        %4696 = vmatprep.subr.mxu0 %v4536
        %4697 = vmatpush1.msra.mxu0 %v4535
        %4698 = vmatprep.subr.mxu0 %v4538
        %4699 = vmatpush1.msra.mxu0 %v4537
        %4700 = vmatprep.subr.mxu0 %v4540
        %4701 = vmatpush1.msra.mxu0 %v4539
        %4702 = vmatprep.subr.mxu0 %v4542
        %4703 = vmatpush1.msra.mxu0 %v4541
        %4704 = vmatprep.subr.mxu0 %v4544
        %4705 = vmatpush1.msra.mxu0 %v4543
        %4706 = vmatprep.subr.mxu0 %v4546
        %4707 = vmatpush1.msra.mxu0 %v4545
        %4708 = vmatprep.subr.mxu0 %v4548
        %4709 = vmatpush1.msra.mxu0 %v4547
        %4710 = vmatprep.subr.mxu0 %v4550
        %4711 = vmatpush1.msra.mxu0 %v4549
        %4712 = vmatprep.subr.mxu0 %v4552
        %4713 = vmatpush1.msra.mxu0 %v4551
        %4714 = vmatprep.subr.mxu0 %v4554
        %4715 = vmatpush1.msra.mxu0 %v4553
        %4716 = vmatprep.subr.mxu0 %v4556
        %4717 = vmatpush1.msra.mxu0 %v4555
        %4718 = vmatprep.subr.mxu0 0.0
        %4719 = vmatpush1.msra.mxu0 0.0
        %4720 = vmatprep.subr.mxu0 0.0
        %4721 = vmatpush1.msra.mxu0 0.0
        %4722 = vmatprep.subr.mxu0 0.0
        %4723 = vmatpush1.msra.mxu0 0.0
        %4724 = vmatprep.subr.mxu0 0.0
        %4725 = vmatpush1.msra.mxu0 0.0
        %4726 = vmatprep.subr.mxu0 0.0
        %4727 = vmatpush1.msra.mxu0 0.0
        %4728 = vmatprep.subr.mxu0 0.0
        %4729 = vmatpush1.msra.mxu0 0.0
        %4730 = vmatprep.subr.mxu0 0.0
        %4731 = vmatpush1.msra.mxu0 0.0
        %4732 = vmatprep.subr.mxu0 0.0
        %4733 = vmatpush1.msra.mxu0 0.0
        %4734 = vmatprep.subr.mxu0 0.0
        %4735 = vmatpush1.msra.mxu0 0.0
        %4736 = vmatprep.subr.mxu0 0.0
        %4737 = vmatpush1.msra.mxu0 0.0
        %4738 = vmatprep.subr.mxu0 0.0
        %4739 = vmatpush1.msra.mxu0 0.0
        %4740 = vmatprep.subr.mxu0 0.0
        %4741 = vmatpush1.msra.mxu0 0.0
        %4742 = vmatprep.subr.mxu0 0.0
        %4743 = vmatpush1.msra.mxu0 0.0
        %4744 = vmatprep.subr.mxu0 0.0
        %4745 = vmatpush1.msra.mxu0 0.0
        %4746 = vmatprep.subr.mxu0 0.0
        %4747 = vmatpush1.msra.mxu0 0.0
        %4748 = vmatprep.subr.mxu0 0.0
        %4749 = vmatpush1.msra.mxu0 0.0
        %4750 = vmatprep.mubr.f32.mxu0 0.0
        %4751 = vmatmul.mubr.f32.gmra.mrb[0].mxu0 %v3411
        %v4752 = vpop.f32.mrb[0].mxu0
        %v4753 = vadd.f32 0.0, %v4752
        %v4754 = vpop.f32.mrb[0].mxu0
        %v4755 = vadd.f32 0.0, %v4754
        %4756 = vmatprep.mubr.f32.mxu0 0.0
        %4757 = vmatmul.mubr.f32.gmra.mrb[0].mxu0 %v3412
        %v4758 = vpop.f32.mrb[0].mxu0
        %v4759 = vadd.f32 0.0, %v4758
        %v4760 = vpop.f32.mrb[0].mxu0
        %v4761 = vadd.f32 0.0, %v4760
        %4762 = vmatprep.mubr.f32.mxu0 0.0
        %4763 = vmatmul.mubr.f32.gmra.mrb[0].mxu0 %v3415
        %v4764 = vpop.f32.mrb[0].mxu0
        %v4765 = vadd.f32 0.0, %v4764
        %v4766 = vpop.f32.mrb[0].mxu0
        %v4767 = vadd.f32 0.0, %v4766
        %4768 = vmatprep.mubr.f32.mxu0 0.0
        %4769 = vmatmul.mubr.f32.gmra.mrb[0].mxu0 %v3416
        %v4770 = vpop.f32.mrb[0].mxu0
        %v4771 = vadd.f32 0.0, %v4770
        %v4772 = vpop.f32.mrb[0].mxu0
        %v4773 = vadd.f32 0.0, %v4772
        %4774 = vmatprep.mubr.f32.mxu0 0.0
        %4775 = vmatmul.mubr.f32.gmra.mrb[0].mxu0 %v3419
        %v4776 = vpop.f32.mrb[0].mxu0
        %v4777 = vadd.f32 0.0, %v4776
        %v4778 = vpop.f32.mrb[0].mxu0
        %v4779 = vadd.f32 0.0, %v4778
        %4780 = vmatprep.mubr.f32.mxu0 0.0
        %4781 = vmatmul.mubr.f32.gmra.mrb[0].mxu0 %v3420
        %v4782 = vpop.f32.mrb[0].mxu0
        %v4783 = vadd.f32 0.0, %v4782
        %v4784 = vpop.f32.mrb[0].mxu0
        %v4785 = vadd.f32 0.0, %v4784
        %4786 = vmatprep.mubr.f32.mxu0 0.0
        %4787 = vmatmul.mubr.f32.gmra.mrb[0].mxu0 %v3423
        %v4788 = vpop.f32.mrb[0].mxu0
        %v4789 = vadd.f32 0.0, %v4788
        %v4790 = vpop.f32.mrb[0].mxu0
        %v4791 = vadd.f32 0.0, %v4790
        %4792 = vmatprep.mubr.f32.mxu0 0.0
        %4793 = vmatmul.mubr.f32.gmra.mrb[0].mxu0 %v3424
        %v4794 = vpop.f32.mrb[0].mxu0
        %v4795 = vadd.f32 0.0, %v4794
        %v4796 = vpop.f32.mrb[0].mxu0
        %v4797 = vadd.f32 0.0, %v4796
        %4798 = vdwg.mxu0
        %v4799 = vadd.f32 %v4508, %v4753
        %v4800 = vadd.f32 %v4509, %v4755
        %v4801 = vadd.f32 %v4510, %v4759
        %v4802 = vadd.f32 %v4511, %v4761
        %v4803 = vadd.f32 %v4512, %v4765
        %v4804 = vadd.f32 %v4513, %v4767
        %v4805 = vadd.f32 %v4514, %v4771
        %v4806 = vadd.f32 %v4515, %v4773
        %v4807 = vadd.f32 %v4516, %v4777
        %v4808 = vadd.f32 %v4517, %v4779
        %v4809 = vadd.f32 %v4518, %v4783
        %v4810 = vadd.f32 %v4519, %v4785
        %v4811 = vadd.f32 %v4520, %v4789
        %v4812 = vadd.f32 %v4521, %v4791
        %v4813 = vadd.f32 %v4522, %v4795
        %v4814 = vadd.f32 %v4523, %v4797
        %v4815 = vmax.f32 %v4670, %v4799
        %v4816 = vmax.f32 %v4671, %v4800
        %v4817 = vmax.f32 %v4672, %v4801
        %v4818 = vmax.f32 %v4673, %v4802
        %v4819 = vmax.f32 %v4674, %v4803
        %v4820 = vmax.f32 %v4675, %v4804
        %v4821 = vmax.f32 %v4676, %v4805
        %v4822 = vmax.f32 %v4677, %v4806
        %v4823 = vmax.f32 %v4678, %v4807
        %v4824 = vmax.f32 %v4679, %v4808
        %v4825 = vmax.f32 %v4680, %v4809
        %v4826 = vmax.f32 %v4681, %v4810
        %v4827 = vmax.f32 %v4682, %v4811
        %v4828 = vmax.f32 %v4683, %v4812
        %v4829 = vmax.f32 %v4684, %v4813
        %v4830 = vmax.f32 %v4685, %v4814
        %v4831 = vmax.f32 %v4815, %v4816
        %v4832 = vmax.f32 %v4817, %v4818
        %v4833 = vmax.f32 %v4819, %v4820
        %v4834 = vmax.f32 %v4821, %v4822
        %v4835 = vmax.f32 %v4823, %v4824
        %v4836 = vmax.f32 %v4825, %v4826
        %v4837 = vmax.f32 %v4827, %v4828
        %v4838 = vmax.f32 %v4829, %v4830
        %v4839 = vld [vmem:[%s4] sm:$0x1]
        %v4841 = vlaneseq
        %v4842 = vshrl.u32 %v4841, 7
        %v4843 = vsub.s32 0, %v4842
        %v4844 = vrot.slane %v4839, %v4843
        %v4846 = vadd.f32 %v4831, %v4844
        %v4847 = vadd.f32 %v4832, %v4844
        %v4848 = vadd.f32 %v4833, %v4844
        %v4849 = vadd.f32 %v4834, %v4844
        %v4850 = vadd.f32 %v4835, %v4844
        %v4851 = vadd.f32 %v4836, %v4844
        %v4852 = vadd.f32 %v4837, %v4844
        %v4853 = vadd.f32 %v4838, %v4844
        %v4854 = vmax.f32 %v4846, 0.0
        %v4855 = vmax.f32 %v4847, 0.0
        %v4856 = vmax.f32 %v4848, 0.0
        %v4857 = vmax.f32 %v4849, 0.0
        %v4858 = vmax.f32 %v4850, 0.0
        %v4859 = vmax.f32 %v4851, 0.0
        %v4860 = vmax.f32 %v4852, 0.0
        %v4861 = vmax.f32 %v4853, 0.0
        %v4862 = vld [vmem:[#allocation3] sm:$0xff]
        %v4863 = vld [vmem:[#allocation3 + $0x8] sm:$0xff]
        %v4864 = vld [vmem:[#allocation3 + $0x10] sm:$0xff]
        %v4865 = vld [vmem:[#allocation3 + $0x18] sm:$0xff]
        %v4866 = vld [vmem:[#allocation3 + $0x20] sm:$0xff]
        %v4867 = vld [vmem:[#allocation3 + $0x28] sm:$0xff]
        %v4868 = vld [vmem:[#allocation3 + $0x30] sm:$0xff]
        %v4869 = vld [vmem:[#allocation3 + $0x38] sm:$0xff]
        %v4870 = vld [vmem:[#allocation3 + $0x40] sm:$0xff]
        %v4871 = vld [vmem:[#allocation3 + $0x48] sm:$0xff]
        %v4872 = vld [vmem:[#allocation3 + $0x50] sm:$0xff]
        %v4873 = vld [vmem:[#allocation3 + $0x58] sm:$0xff]
        %v4874 = vld [vmem:[#allocation3 + $0x60] sm:$0xff]
        %v4875 = vld [vmem:[#allocation3 + $0x68] sm:$0xff]
        %v4876 = vld [vmem:[#allocation3 + $0x70] sm:$0xff]
        %v4877 = vld [vmem:[#allocation3 + $0x78] sm:$0xff]
        %s4878 = scalar_lea.vmem [#allocation3], 128
        %v4879 = vld [vmem:[%s4878] sm:$0xff]
        %v4880 = vld [vmem:[%s4878 + $0x8] sm:$0xff]
        %v4881 = vld [vmem:[%s4878 + $0x10] sm:$0xff]
        %v4882 = vld [vmem:[%s4878 + $0x18] sm:$0xff]
        %v4883 = vld [vmem:[%s4878 + $0x20] sm:$0xff]
        %v4884 = vld [vmem:[%s4878 + $0x28] sm:$0xff]
        %v4885 = vld [vmem:[%s4878 + $0x30] sm:$0xff]
        %v4886 = vld [vmem:[%s4878 + $0x38] sm:$0xff]
        %v4887 = vld [vmem:[%s4878 + $0x40] sm:$0xff]
        %v4888 = vld [vmem:[%s4878 + $0x48] sm:$0xff]
        %v4889 = vld [vmem:[%s4878 + $0x50] sm:$0xff]
        %v4890 = vld [vmem:[%s4878 + $0x58] sm:$0xff]
        %v4891 = vld [vmem:[%s4878 + $0x60] sm:$0xff]
        %v4892 = vld [vmem:[%s4878 + $0x68] sm:$0xff]
        %v4893 = vld [vmem:[%s4878 + $0x70] sm:$0xff]
        %v4894 = vld [vmem:[%s4878 + $0x78] sm:$0xff]
        %4895 = vmatprep.subr.mxu0 0.0
        %4896 = vmatpush1.msra.mxu0 %v4879
        %4897 = vmatprep.subr.mxu0 0.0
        %4898 = vmatpush1.msra.mxu0 %v4880
        %4899 = vmatprep.subr.mxu0 0.0
        %4900 = vmatpush1.msra.mxu0 %v4881
        %4901 = vmatprep.subr.mxu0 0.0
        %4902 = vmatpush1.msra.mxu0 %v4882
        %4903 = vmatprep.subr.mxu0 0.0
        %4904 = vmatpush1.msra.mxu0 %v4883
        %4905 = vmatprep.subr.mxu0 0.0
        %4906 = vmatpush1.msra.mxu0 %v4884
        %4907 = vmatprep.subr.mxu0 0.0
        %4908 = vmatpush1.msra.mxu0 %v4885
        %4909 = vmatprep.subr.mxu0 0.0
        %4910 = vmatpush1.msra.mxu0 %v4886
        %4911 = vmatprep.subr.mxu0 0.0
        %4912 = vmatpush1.msra.mxu0 %v4887
        %4913 = vmatprep.subr.mxu0 0.0
        %4914 = vmatpush1.msra.mxu0 %v4888
        %4915 = vmatprep.subr.mxu0 0.0
        %4916 = vmatpush1.msra.mxu0 %v4889
        %4917 = vmatprep.subr.mxu0 0.0
        %4918 = vmatpush1.msra.mxu0 %v4890
        %4919 = vmatprep.subr.mxu0 0.0
        %4920 = vmatpush1.msra.mxu0 %v4891
        %4921 = vmatprep.subr.mxu0 0.0
        %4922 = vmatpush1.msra.mxu0 %v4892
        %4923 = vmatprep.subr.mxu0 0.0
        %4924 = vmatpush1.msra.mxu0 %v4893
        %4925 = vmatprep.subr.mxu0 0.0
        %4926 = vmatpush1.msra.mxu0 %v4894
        %4927 = vmatprep.subr.mxu0 0.0
        %4928 = vmatpush1.msra.mxu0 0.0
        %4929 = vmatprep.subr.mxu0 0.0
        %4930 = vmatpush1.msra.mxu0 0.0
        %4931 = vmatprep.subr.mxu0 0.0
        %4932 = vmatpush1.msra.mxu0 0.0
        %4933 = vmatprep.subr.mxu0 0.0
        %4934 = vmatpush1.msra.mxu0 0.0
        %4935 = vmatprep.subr.mxu0 0.0
        %4936 = vmatpush1.msra.mxu0 0.0
        %4937 = vmatprep.subr.mxu0 0.0
        %4938 = vmatpush1.msra.mxu0 0.0
        %4939 = vmatprep.subr.mxu0 0.0
        %4940 = vmatpush1.msra.mxu0 0.0
        %4941 = vmatprep.subr.mxu0 0.0
        %4942 = vmatpush1.msra.mxu0 0.0
        %4943 = vmatprep.subr.mxu0 0.0
        %4944 = vmatpush1.msra.mxu0 0.0
        %4945 = vmatprep.subr.mxu0 0.0
        %4946 = vmatpush1.msra.mxu0 0.0
        %4947 = vmatprep.subr.mxu0 0.0
        %4948 = vmatpush1.msra.mxu0 0.0
        %4949 = vmatprep.subr.mxu0 0.0
        %4950 = vmatpush1.msra.mxu0 0.0
        %4951 = vmatprep.subr.mxu0 0.0
        %4952 = vmatpush1.msra.mxu0 0.0
        %4953 = vmatprep.subr.mxu0 0.0
        %4954 = vmatpush1.msra.mxu0 0.0
        %4955 = vmatprep.subr.mxu0 0.0
        %4956 = vmatpush1.msra.mxu0 0.0
        %4957 = vmatprep.subr.mxu0 0.0
        %4958 = vmatpush1.msra.mxu0 0.0
        %4959 = vmatprep.mubr.f32.mxu0 0.0
        %4960 = vmatmul.mubr.f32.gmra.mrb[0].mxu0 %v4856
        %v4961 = vpop.f32.mrb[0].mxu0
        %v4962 = vadd.f32 0.0, %v4961
        %v4963 = vpop.f32.mrb[0].mxu0
        %4964 = vmatprep.mubr.f32.mxu0 0.0
        %4965 = vmatmul.mubr.f32.gmra.mrb[0].mxu0 %v4857
        %v4966 = vpop.f32.mrb[0].mxu0
        %v4967 = vadd.f32 0.0, %v4966
        %v4968 = vpop.f32.mrb[0].mxu0
        %4969 = vdwg.mxu0
        %4970 = vmatprep.subr.mxu0 0.0
        %4971 = vmatpush1.msra.mxu0 %v4862
        %4972 = vmatprep.subr.mxu0 0.0
        %4973 = vmatpush1.msra.mxu0 %v4863
        %4974 = vmatprep.subr.mxu0 0.0
        %4975 = vmatpush1.msra.mxu0 %v4864
        %4976 = vmatprep.subr.mxu0 0.0
        %4977 = vmatpush1.msra.mxu0 %v4865
        %4978 = vmatprep.subr.mxu0 0.0
        %4979 = vmatpush1.msra.mxu0 %v4866
        %4980 = vmatprep.subr.mxu0 0.0
        %4981 = vmatpush1.msra.mxu0 %v4867
        %4982 = vmatprep.subr.mxu0 0.0
        %4983 = vmatpush1.msra.mxu0 %v4868
        %4984 = vmatprep.subr.mxu0 0.0
        %4985 = vmatpush1.msra.mxu0 %v4869
        %4986 = vmatprep.subr.mxu0 0.0
        %4987 = vmatpush1.msra.mxu0 %v4870
        %4988 = vmatprep.subr.mxu0 0.0
        %4989 = vmatpush1.msra.mxu0 %v4871
        %4990 = vmatprep.subr.mxu0 0.0
        %4991 = vmatpush1.msra.mxu0 %v4872
        %4992 = vmatprep.subr.mxu0 0.0
        %4993 = vmatpush1.msra.mxu0 %v4873
        %4994 = vmatprep.subr.mxu0 0.0
        %4995 = vmatpush1.msra.mxu0 %v4874
        %4996 = vmatprep.subr.mxu0 0.0
        %4997 = vmatpush1.msra.mxu0 %v4875
        %4998 = vmatprep.subr.mxu0 0.0
        %4999 = vmatpush1.msra.mxu0 %v4876
        %5000 = vmatprep.subr.mxu0 0.0
        %5001 = vmatpush1.msra.mxu0 %v4877
        %5002 = vmatprep.subr.mxu0 0.0
        %5003 = vmatpush1.msra.mxu0 0.0
        %5004 = vmatprep.subr.mxu0 0.0
        %5005 = vmatpush1.msra.mxu0 0.0
        %5006 = vmatprep.subr.mxu0 0.0
        %5007 = vmatpush1.msra.mxu0 0.0
        %5008 = vmatprep.subr.mxu0 0.0
        %5009 = vmatpush1.msra.mxu0 0.0
        %5010 = vmatprep.subr.mxu0 0.0
        %5011 = vmatpush1.msra.mxu0 0.0
        %5012 = vmatprep.subr.mxu0 0.0
        %5013 = vmatpush1.msra.mxu0 0.0
        %5014 = vmatprep.subr.mxu0 0.0
        %5015 = vmatpush1.msra.mxu0 0.0
        %5016 = vmatprep.subr.mxu0 0.0
        %5017 = vmatpush1.msra.mxu0 0.0
        %5018 = vmatprep.subr.mxu0 0.0
        %5019 = vmatpush1.msra.mxu0 0.0
        %5020 = vmatprep.subr.mxu0 0.0
        %5021 = vmatpush1.msra.mxu0 0.0
        %5022 = vmatprep.subr.mxu0 0.0
        %5023 = vmatpush1.msra.mxu0 0.0
        %5024 = vmatprep.subr.mxu0 0.0
        %5025 = vmatpush1.msra.mxu0 0.0
        %5026 = vmatprep.subr.mxu0 0.0
        %5027 = vmatpush1.msra.mxu0 0.0
        %5028 = vmatprep.subr.mxu0 0.0
        %5029 = vmatpush1.msra.mxu0 0.0
        %5030 = vmatprep.subr.mxu0 0.0
        %5031 = vmatpush1.msra.mxu0 0.0
        %5032 = vmatprep.subr.mxu0 0.0
        %5033 = vmatpush1.msra.mxu0 0.0
        %5034 = vmatprep.mubr.f32.mxu0 0.0
        %5035 = vmatmul.mubr.f32.gmra.mrb[0].mxu0 %v4854
        %v5036 = vpop.f32.mrb[0].mxu0
        %v5037 = vadd.f32 %v4962, %v5036
        %v5038 = vpop.f32.mrb[0].mxu0
        %5039 = vmatprep.mubr.f32.mxu0 0.0
        %5040 = vmatmul.mubr.f32.gmra.mrb[0].mxu0 %v4855
        %v5041 = vpop.f32.mrb[0].mxu0
        %v5042 = vadd.f32 %v4967, %v5041
        %v5043 = vpop.f32.mrb[0].mxu0
        %5044 = vdwg.mxu0
        %s5045 = scalar_lea.vmem [#allocation3], 256
        %v5046 = vld [vmem:[%s5045] sm:$0xff]
        %v5047 = vld [vmem:[%s5045 + $0x8] sm:$0xff]
        %v5048 = vld [vmem:[%s5045 + $0x10] sm:$0xff]
        %v5049 = vld [vmem:[%s5045 + $0x18] sm:$0xff]
        %v5050 = vld [vmem:[%s5045 + $0x20] sm:$0xff]
        %v5051 = vld [vmem:[%s5045 + $0x28] sm:$0xff]
        %v5052 = vld [vmem:[%s5045 + $0x30] sm:$0xff]
        %v5053 = vld [vmem:[%s5045 + $0x38] sm:$0xff]
        %v5054 = vld [vmem:[%s5045 + $0x40] sm:$0xff]
        %v5055 = vld [vmem:[%s5045 + $0x48] sm:$0xff]
        %v5056 = vld [vmem:[%s5045 + $0x50] sm:$0xff]
        %v5057 = vld [vmem:[%s5045 + $0x58] sm:$0xff]
        %v5058 = vld [vmem:[%s5045 + $0x60] sm:$0xff]
        %v5059 = vld [vmem:[%s5045 + $0x68] sm:$0xff]
        %v5060 = vld [vmem:[%s5045 + $0x70] sm:$0xff]
        %v5061 = vld [vmem:[%s5045 + $0x78] sm:$0xff]
        %5062 = vmatprep.subr.mxu0 0.0
        %5063 = vmatpush1.msra.mxu0 %v5046
        %5064 = vmatprep.subr.mxu0 0.0
        %5065 = vmatpush1.msra.mxu0 %v5047
        %5066 = vmatprep.subr.mxu0 0.0
        %5067 = vmatpush1.msra.mxu0 %v5048
        %5068 = vmatprep.subr.mxu0 0.0
        %5069 = vmatpush1.msra.mxu0 %v5049
        %5070 = vmatprep.subr.mxu0 0.0
        %5071 = vmatpush1.msra.mxu0 %v5050
        %5072 = vmatprep.subr.mxu0 0.0
        %5073 = vmatpush1.msra.mxu0 %v5051
        %5074 = vmatprep.subr.mxu0 0.0
        %5075 = vmatpush1.msra.mxu0 %v5052
        %5076 = vmatprep.subr.mxu0 0.0
        %5077 = vmatpush1.msra.mxu0 %v5053
        %5078 = vmatprep.subr.mxu0 0.0
        %5079 = vmatpush1.msra.mxu0 %v5054
        %5080 = vmatprep.subr.mxu0 0.0
        %5081 = vmatpush1.msra.mxu0 %v5055
        %5082 = vmatprep.subr.mxu0 0.0
        %5083 = vmatpush1.msra.mxu0 %v5056
        %5084 = vmatprep.subr.mxu0 0.0
        %5085 = vmatpush1.msra.mxu0 %v5057
        %5086 = vmatprep.subr.mxu0 0.0
        %5087 = vmatpush1.msra.mxu0 %v5058
        %5088 = vmatprep.subr.mxu0 0.0
        %5089 = vmatpush1.msra.mxu0 %v5059
        %5090 = vmatprep.subr.mxu0 0.0
        %5091 = vmatpush1.msra.mxu0 %v5060
        %5092 = vmatprep.subr.mxu0 0.0
        %5093 = vmatpush1.msra.mxu0 %v5061
        %5094 = vmatprep.subr.mxu0 0.0
        %5095 = vmatpush1.msra.mxu0 0.0
        %5096 = vmatprep.subr.mxu0 0.0
        %5097 = vmatpush1.msra.mxu0 0.0
        %5098 = vmatprep.subr.mxu0 0.0
        %5099 = vmatpush1.msra.mxu0 0.0
        %5100 = vmatprep.subr.mxu0 0.0
        %5101 = vmatpush1.msra.mxu0 0.0
        %5102 = vmatprep.subr.mxu0 0.0
        %5103 = vmatpush1.msra.mxu0 0.0
        %5104 = vmatprep.subr.mxu0 0.0
        %5105 = vmatpush1.msra.mxu0 0.0
        %5106 = vmatprep.subr.mxu0 0.0
        %5107 = vmatpush1.msra.mxu0 0.0
        %5108 = vmatprep.subr.mxu0 0.0
        %5109 = vmatpush1.msra.mxu0 0.0
        %5110 = vmatprep.subr.mxu0 0.0
        %5111 = vmatpush1.msra.mxu0 0.0
        %5112 = vmatprep.subr.mxu0 0.0
        %5113 = vmatpush1.msra.mxu0 0.0
        %5114 = vmatprep.subr.mxu0 0.0
        %5115 = vmatpush1.msra.mxu0 0.0
        %5116 = vmatprep.subr.mxu0 0.0
        %5117 = vmatpush1.msra.mxu0 0.0
        %5118 = vmatprep.subr.mxu0 0.0
        %5119 = vmatpush1.msra.mxu0 0.0
        %5120 = vmatprep.subr.mxu0 0.0
        %5121 = vmatpush1.msra.mxu0 0.0
        %5122 = vmatprep.subr.mxu0 0.0
        %5123 = vmatpush1.msra.mxu0 0.0
        %5124 = vmatprep.subr.mxu0 0.0
        %5125 = vmatpush1.msra.mxu0 0.0
        %5126 = vmatprep.mubr.f32.mxu0 0.0
        %5127 = vmatmul.mubr.f32.gmra.mrb[0].mxu0 %v4858
        %v5128 = vpop.f32.mrb[0].mxu0
        %v5129 = vadd.f32 0.0, %v5128
        %v5130 = vpop.f32.mrb[0].mxu0
        %5131 = vmatprep.mubr.f32.mxu0 0.0
        %5132 = vmatmul.mubr.f32.gmra.mrb[0].mxu0 %v4859
        %v5133 = vpop.f32.mrb[0].mxu0
        %v5134 = vadd.f32 0.0, %v5133
        %v5135 = vpop.f32.mrb[0].mxu0
        %5136 = vdwg.mxu0
        %v5137 = vadd.f32 %v5037, %v5129
        %v5138 = vadd.f32 %v5042, %v5134
        %s5139 = scalar_lea.vmem [#allocation3], 384
        %v5140 = vld [vmem:[%s5139] sm:$0xff]
        %v5141 = vld [vmem:[%s5139 + $0x8] sm:$0xff]
        %v5142 = vld [vmem:[%s5139 + $0x10] sm:$0xff]
        %v5143 = vld [vmem:[%s5139 + $0x18] sm:$0xff]
        %v5144 = vld [vmem:[%s5139 + $0x20] sm:$0xff]
        %v5145 = vld [vmem:[%s5139 + $0x28] sm:$0xff]
        %v5146 = vld [vmem:[%s5139 + $0x30] sm:$0xff]
        %v5147 = vld [vmem:[%s5139 + $0x38] sm:$0xff]
        %v5148 = vld [vmem:[%s5139 + $0x40] sm:$0xff]
        %v5149 = vld [vmem:[%s5139 + $0x48] sm:$0xff]
        %v5150 = vld [vmem:[%s5139 + $0x50] sm:$0xff]
        %v5151 = vld [vmem:[%s5139 + $0x58] sm:$0xff]
        %v5152 = vld [vmem:[%s5139 + $0x60] sm:$0xff]
        %v5153 = vld [vmem:[%s5139 + $0x68] sm:$0xff]
        %v5154 = vld [vmem:[%s5139 + $0x70] sm:$0xff]
        %v5155 = vld [vmem:[%s5139 + $0x78] sm:$0xff]
        %5156 = vmatprep.subr.mxu0 0.0
        %5157 = vmatpush1.msra.mxu0 %v5140
        %5158 = vmatprep.subr.mxu0 0.0
        %5159 = vmatpush1.msra.mxu0 %v5141
        %5160 = vmatprep.subr.mxu0 0.0
        %5161 = vmatpush1.msra.mxu0 %v5142
        %5162 = vmatprep.subr.mxu0 0.0
        %5163 = vmatpush1.msra.mxu0 %v5143
        %5164 = vmatprep.subr.mxu0 0.0
        %5165 = vmatpush1.msra.mxu0 %v5144
        %5166 = vmatprep.subr.mxu0 0.0
        %5167 = vmatpush1.msra.mxu0 %v5145
        %5168 = vmatprep.subr.mxu0 0.0
        %5169 = vmatpush1.msra.mxu0 %v5146
        %5170 = vmatprep.subr.mxu0 0.0
        %5171 = vmatpush1.msra.mxu0 %v5147
        %5172 = vmatprep.subr.mxu0 0.0
        %5173 = vmatpush1.msra.mxu0 %v5148
        %5174 = vmatprep.subr.mxu0 0.0
        %5175 = vmatpush1.msra.mxu0 %v5149
        %5176 = vmatprep.subr.mxu0 0.0
        %5177 = vmatpush1.msra.mxu0 %v5150
        %5178 = vmatprep.subr.mxu0 0.0
        %5179 = vmatpush1.msra.mxu0 %v5151
        %5180 = vmatprep.subr.mxu0 0.0
        %5181 = vmatpush1.msra.mxu0 %v5152
        %5182 = vmatprep.subr.mxu0 0.0
        %5183 = vmatpush1.msra.mxu0 %v5153
        %5184 = vmatprep.subr.mxu0 0.0
        %5185 = vmatpush1.msra.mxu0 %v5154
        %5186 = vmatprep.subr.mxu0 0.0
        %5187 = vmatpush1.msra.mxu0 %v5155
        %5188 = vmatprep.subr.mxu0 0.0
        %5189 = vmatpush1.msra.mxu0 0.0
        %5190 = vmatprep.subr.mxu0 0.0
        %5191 = vmatpush1.msra.mxu0 0.0
        %5192 = vmatprep.subr.mxu0 0.0
        %5193 = vmatpush1.msra.mxu0 0.0
        %5194 = vmatprep.subr.mxu0 0.0
        %5195 = vmatpush1.msra.mxu0 0.0
        %5196 = vmatprep.subr.mxu0 0.0
        %5197 = vmatpush1.msra.mxu0 0.0
        %5198 = vmatprep.subr.mxu0 0.0
        %5199 = vmatpush1.msra.mxu0 0.0
        %5200 = vmatprep.subr.mxu0 0.0
        %5201 = vmatpush1.msra.mxu0 0.0
        %5202 = vmatprep.subr.mxu0 0.0
        %5203 = vmatpush1.msra.mxu0 0.0
        %5204 = vmatprep.subr.mxu0 0.0
        %5205 = vmatpush1.msra.mxu0 0.0
        %5206 = vmatprep.subr.mxu0 0.0
        %5207 = vmatpush1.msra.mxu0 0.0
        %5208 = vmatprep.subr.mxu0 0.0
        %5209 = vmatpush1.msra.mxu0 0.0
        %5210 = vmatprep.subr.mxu0 0.0
        %5211 = vmatpush1.msra.mxu0 0.0
        %5212 = vmatprep.subr.mxu0 0.0
        %5213 = vmatpush1.msra.mxu0 0.0
        %5214 = vmatprep.subr.mxu0 0.0
        %5215 = vmatpush1.msra.mxu0 0.0
        %5216 = vmatprep.subr.mxu0 0.0
        %5217 = vmatpush1.msra.mxu0 0.0
        %5218 = vmatprep.subr.mxu0 0.0
        %5219 = vmatpush1.msra.mxu0 0.0
        %5220 = vmatprep.mubr.f32.mxu0 0.0
        %5221 = vmatmul.mubr.f32.gmra.mrb[0].mxu0 %v4860
        %v5222 = vpop.f32.mrb[0].mxu0
        %v5223 = vadd.f32 0.0, %v5222
        %v5224 = vpop.f32.mrb[0].mxu0
        %5225 = vmatprep.mubr.f32.mxu0 0.0
        %5226 = vmatmul.mubr.f32.gmra.mrb[0].mxu0 %v4861
        %v5227 = vpop.f32.mrb[0].mxu0
        %v5228 = vadd.f32 0.0, %v5227
        %v5229 = vpop.f32.mrb[0].mxu0
        %5230 = vdwg.mxu0
        %v5231 = vadd.f32 %v5137, %v5223
        %v5232 = vadd.f32 %v5138, %v5228
        %v5233 = vld [vmem:[%s6] sm:$0x1]
        %v5235 = vlaneseq
        %v5236 = vshrl.u32 %v5235, 7
        %v5237 = vsub.s32 0, %v5236
        %v5238 = vrot.slane %v5233, %v5237
        %v5240 = vadd.f32 %v5231, %v5238
        %v5241 = vadd.f32 %v5232, %v5238
        %v5242 = vmax.f32 %v5240, 0.0
        %v5243 = vmax.f32 %v5241, 0.0
        %v5244 = vld [vmem:[#allocation5] sm:$0xff]
        %v5245 = vld [vmem:[#allocation5 + $0x8] sm:$0xff]
        %v5246 = vld [vmem:[#allocation5 + $0x10] sm:$0xff]
        %v5247 = vld [vmem:[#allocation5 + $0x18] sm:$0xff]
        %v5248 = vld [vmem:[#allocation5 + $0x20] sm:$0xff]
        %v5249 = vld [vmem:[#allocation5 + $0x28] sm:$0xff]
        %v5250 = vld [vmem:[#allocation5 + $0x30] sm:$0xff]
        %v5251 = vld [vmem:[#allocation5 + $0x38] sm:$0xff]
        %v5252 = vld [vmem:[#allocation5 + $0x40] sm:$0xff]
        %v5253 = vld [vmem:[#allocation5 + $0x48] sm:$0xff]
        %v5254 = vld [vmem:[#allocation5 + $0x50] sm:$0xff]
        %v5255 = vld [vmem:[#allocation5 + $0x58] sm:$0xff]
        %v5256 = vld [vmem:[#allocation5 + $0x60] sm:$0xff]
        %v5257 = vld [vmem:[#allocation5 + $0x68] sm:$0xff]
        %v5258 = vld [vmem:[#allocation5 + $0x70] sm:$0xff]
        %v5259 = vld [vmem:[#allocation5 + $0x78] sm:$0xff]
        %v5260 = vld [vmem:[%s8] sm:$0x1]
        %v5262 = vlaneseq
        %v5263 = vshrl.u32 %v5262, 7
        %v5264 = vsub.s32 0, %v5263
        %v5265 = vrot.slane %v5260, %v5264
        %5267 = vmatprep.subr.mxu0 0.0
        %5268 = vmatpush1.msra.mxu0 %v5244
        %5269 = vmatprep.subr.mxu0 0.0
        %5270 = vmatpush1.msra.mxu0 %v5245
        %5271 = vmatprep.subr.mxu0 0.0
        %5272 = vmatpush1.msra.mxu0 %v5246
        %5273 = vmatprep.subr.mxu0 0.0
        %5274 = vmatpush1.msra.mxu0 %v5247
        %5275 = vmatprep.subr.mxu0 0.0
        %5276 = vmatpush1.msra.mxu0 %v5248
        %5277 = vmatprep.subr.mxu0 0.0
        %5278 = vmatpush1.msra.mxu0 %v5249
        %5279 = vmatprep.subr.mxu0 0.0
        %5280 = vmatpush1.msra.mxu0 %v5250
        %5281 = vmatprep.subr.mxu0 0.0
        %5282 = vmatpush1.msra.mxu0 %v5251
        %5283 = vmatprep.subr.mxu0 0.0
        %5284 = vmatpush1.msra.mxu0 %v5252
        %5285 = vmatprep.subr.mxu0 0.0
        %5286 = vmatpush1.msra.mxu0 %v5253
        %5287 = vmatprep.subr.mxu0 0.0
        %5288 = vmatpush1.msra.mxu0 %v5254
        %5289 = vmatprep.subr.mxu0 0.0
        %5290 = vmatpush1.msra.mxu0 %v5255
        %5291 = vmatprep.subr.mxu0 0.0
        %5292 = vmatpush1.msra.mxu0 %v5256
        %5293 = vmatprep.subr.mxu0 0.0
        %5294 = vmatpush1.msra.mxu0 %v5257
        %5295 = vmatprep.subr.mxu0 0.0
        %5296 = vmatpush1.msra.mxu0 %v5258
        %5297 = vmatprep.subr.mxu0 0.0
        %5298 = vmatpush1.msra.mxu0 %v5259
        %5299 = vmatprep.subr.mxu0 0.0
        %5300 = vmatpush1.msra.mxu0 0.0
        %5301 = vmatprep.subr.mxu0 0.0
        %5302 = vmatpush1.msra.mxu0 0.0
        %5303 = vmatprep.subr.mxu0 0.0
        %5304 = vmatpush1.msra.mxu0 0.0
        %5305 = vmatprep.subr.mxu0 0.0
        %5306 = vmatpush1.msra.mxu0 0.0
        %5307 = vmatprep.subr.mxu0 0.0
        %5308 = vmatpush1.msra.mxu0 0.0
        %5309 = vmatprep.subr.mxu0 0.0
        %5310 = vmatpush1.msra.mxu0 0.0
        %5311 = vmatprep.subr.mxu0 0.0
        %5312 = vmatpush1.msra.mxu0 0.0
        %5313 = vmatprep.subr.mxu0 0.0
        %5314 = vmatpush1.msra.mxu0 0.0
        %5315 = vmatprep.subr.mxu0 0.0
        %5316 = vmatpush1.msra.mxu0 0.0
        %5317 = vmatprep.subr.mxu0 0.0
        %5318 = vmatpush1.msra.mxu0 0.0
        %5319 = vmatprep.subr.mxu0 0.0
        %5320 = vmatpush1.msra.mxu0 0.0
        %5321 = vmatprep.subr.mxu0 0.0
        %5322 = vmatpush1.msra.mxu0 0.0
        %5323 = vmatprep.subr.mxu0 0.0
        %5324 = vmatpush1.msra.mxu0 0.0
        %5325 = vmatprep.subr.mxu0 0.0
        %5326 = vmatpush1.msra.mxu0 0.0
        %5327 = vmatprep.subr.mxu0 0.0
        %5328 = vmatpush1.msra.mxu0 0.0
        %5329 = vmatprep.subr.mxu0 0.0
        %5330 = vmatpush1.msra.mxu0 0.0
        %5331 = vmatprep.mubr.f32.mxu0 0.0
        %5332 = vmatmul.mubr.f32.gmra.mrb[0].mxu0 %v5242
        %v5333 = vpop.f32.mrb[0].mxu0
        %v5334 = vadd.f32 %v5265, %v5333
        %v5335 = vpop.f32.mrb[0].mxu0
        %5336 = vmatprep.mubr.f32.mxu0 0.0
        %5337 = vmatmul.mubr.f32.gmra.mrb[0].mxu0 %v5243
        %v5338 = vpop.f32.mrb[0].mxu0
        %v5339 = vadd.f32 %v5265, %v5338
        %v5340 = vpop.f32.mrb[0].mxu0
        %5341 = vdwg.mxu0
        %5342 = vst [vmem:[%s618] sm:$0xff] %v5334
        %5343 = vst [vmem:[%s618 + $0x8] sm:$0xff] %v5339
        %s5344 = smul.u32 2, %s22
        %p5345 = scmp.lt.s32.totalorder %s5344, 3
        %s5346 = scalar_select %p5345, %s5344, 3
        %s5347 = smul.addr %s5346, 8
        %s5348 = scalar_lea.vmem %s9, %s5347
        // Predicated region
        $region103: #{forward.1} parent=89 // pred_check
          %p5349 = pneg %p234
        $region104: #{forward.1} parent=89 // pred_check_branch
          %5351 = sbr.rel (%p5349) target = $region106
        $region105: #{forward.1} parent=89 // pred_region
          %s5352 = smul.u32 2, %s22
        $region106: #{forward.1} parent=89 // pred_fallthru
          _
      $region90: #{forward.1} parent=5 // pred_fallthru
        _
      %p5353 = scmp.le.s32.totalorder 2, %s17
      // Predicated region
      $region107: #{forward.1} parent=5 // pred_check
        %p5354 = pneg %p5353
      $region108: #{forward.1} parent=5 // pred_check_branch
        %5356 = sbr.rel (%p5354) target = $region110
      $region109: #{forward.1} parent=5 // pred_region
        %s5357 = ssub.s32 %s17, 2
        // Predicated region
        $region111: #{forward.1} parent=109 // pred_check
          %p5358 = pneg %p240
        $region112: #{forward.1} parent=109 // pred_check_branch
          %5360 = sbr.rel (%p5358) target = $region114
        $region113: #{forward.1} parent=109 // pred_region
          %s5361 = smul.u32 2, %s23
          %p5362 = scmp.lt.s32.totalorder %s5361, 3
          %s5363 = scalar_select %p5362, %s5361, 3
          %s5364 = smul.addr %s5363, 8
          %s5365 = scalar_lea.vmem %s9, %s5364
        $region114: #{forward.1} parent=109 // pred_fallthru
          _
      $region110: #{forward.1} parent=5 // pred_fallthru
        _
    $region6: #{forward.1} parent=1 // loop_footer
      %s21 = sadd.s32 1, %s17
    $region7: #{forward.1} parent=1 // loop_footer_branch
      %16 = sbr.rel target = $region3
    $region8: #{forward.1} parent=1 // loop_exit
      _
    %5366 = vsyncpa [#allocation4], 1
    %s5367 = scalar_lea.sflag [#allocation4], 1
    %5368 = vsyncpa %s5367, 1
    %5369 = vsyncpa [#allocation6], 1

</llo_original>
